<compile_context>
chip_gen: v7x
topology: tpu7x:2x2x1
jax: 0.10.0
libtpu: 0.0.40
codegen_flags: <defaults>
</compile_context>

<pallas_src>
import functools

import jax
import jax.numpy as jnp
from jax.experimental import pallas as pl
from jax.experimental.pallas import tpu as pltpu

IN_DIM = 28 * 28                    # 784
LAYER_DIMS = [IN_DIM, 128, 64, 36, 18, 9, 18, 36, 64, 128, IN_DIM]
N_LAYERS = len(LAYER_DIMS) - 1      # 10 Linear layers total
BOTTLENECK = 4                      # no ReLU after layer 4 (Linear 18 -> 9)


def ae_kernel(x_ref, *refs):
    """Whole AE forward for one batch tile, entirely in VMEM.

    x_ref : (tile, 784) f32
    refs  : w0..w9 (bf16), b0..b9 (f32), o_ref (tile, 784) bf16
    """
    w_refs = refs[:N_LAYERS]
    b_refs = refs[N_LAYERS:2 * N_LAYERS]
    o_ref = refs[2 * N_LAYERS]

    # Stream f32 rows, cast to bf16 once in-kernel (VPU; avoids a wrapper HBM pass).
    h = x_ref[...].astype(jnp.bfloat16)
    for i in range(N_LAYERS):
        # bf16 x bf16 single-pass MXU matmul with f32 accumulation.
        acc = jnp.dot(h, w_refs[i][...], preferred_element_type=jnp.float32)
        acc = acc + b_refs[i][...]                 # f32 bias add (VPU)
        if i == N_LAYERS - 1:
            o_ref[...] = jax.nn.sigmoid(acc).astype(o_ref.dtype)   # EUP; free slot
        else:
            if i != BOTTLENECK:                    # PyTorch AE: no ReLU after 18->9
                acc = jnp.maximum(acc, 0.0)
            h = acc.astype(jnp.bfloat16)


def make_params(key):
    """Deterministic PyTorch-style (uniform +/- 1/sqrt(fan_in)) init, f32."""
    ws, bs = [], []
    keys = jax.random.split(key, 2 * N_LAYERS)
    for i in range(N_LAYERS):
        fan_in, fan_out = LAYER_DIMS[i], LAYER_DIMS[i + 1]
        bound = 1.0 / float(fan_in) ** 0.5
        ws.append(jax.random.uniform(keys[2 * i], (fan_in, fan_out),
                                     jnp.float32, -bound, bound))
        bs.append(jax.random.uniform(keys[2 * i + 1], (1, fan_out),
                                     jnp.float32, -bound, bound))
    return ws, bs


def ae_forward(x, ws, bs, *, batch_tile=512, out_dtype=jnp.bfloat16):
    """x: (B, 784) f32  ->  (B, 784) `out_dtype` (bf16 by default)."""
    B, D = x.shape
    assert D == IN_DIM

    # Batch tile: multiple of 16 (bf16 sublane packing of the output), capped at B.
    tile = max(16, (min(batch_tile, B) // 16) * 16)
    # Prefer >= 2 grid steps so the "parallel" batch axis can actually shard across
    # v7x's two TensorCores (a single-step grid leaves one core idle).
    if tile >= B and B >= 32 and (B // 2) % 16 == 0:
        tile = B // 2
    n_steps = pl.cdiv(B, tile)
    b_pad = n_steps * tile

    # Only pad batch rows when B is not a tile multiple (no feature-dim pad, no cast).
    x_in = x if b_pad == B else jnp.pad(x, ((0, b_pad - B), (0, 0)))

    # All weights bf16 (single-pass MXU); biases stay f32 for the VPU adds.
    ws_k = [w.astype(jnp.bfloat16) for w in ws]
    bs_k = [b.astype(jnp.float32) for b in bs]

    in_specs = [pl.BlockSpec((tile, IN_DIM), lambda i: (i, 0))]
    # Weights / biases: constant index_map -> resident in VMEM across all steps.
    in_specs += [pl.BlockSpec(w.shape, lambda i: (0, 0)) for w in ws_k]
    in_specs += [pl.BlockSpec(b.shape, lambda i: (0, 0)) for b in bs_k]
    out_spec = pl.BlockSpec((tile, IN_DIM), lambda i: (i, 0))

    flops = 2 * b_pad * sum(LAYER_DIMS[i] * LAYER_DIMS[i + 1] for i in range(N_LAYERS))
    bytes_accessed = (b_pad * IN_DIM * x.dtype.itemsize                 # x in (f32)
                      + b_pad * IN_DIM * jnp.dtype(out_dtype).itemsize  # out (bf16)
                      + sum(int(w.size) * 2 for w in ws_k)
                      + sum(int(b.size) * 4 for b in bs_k))

    out = pl.pallas_call(
        ae_kernel,
        out_shape=jax.ShapeDtypeStruct((b_pad, IN_DIM), out_dtype),
        grid=(n_steps,),
        in_specs=in_specs,
        out_specs=out_spec,
        compiler_params=pltpu.CompilerParams(
            dimension_semantics=("parallel",),           # megacore-shardable on v7x
            vmem_limit_bytes=40 * 1024 * 1024),          # allow larger tiles on v6e
        cost_estimate=pl.CostEstimate(
            flops=flops,
            transcendentals=b_pad * IN_DIM,              # sigmoid on every out elem
            bytes_accessed=bytes_accessed),
    )(x_in, *ws_k, *bs_k)

    return out if b_pad == B else out[:B]


def ae_forward_ref(x, ws, bs):
    """Pure-JAX f32 reference for correctness checking."""
    h = x
    for i in range(N_LAYERS):
        h = h @ ws[i] + bs[i]
        if i != BOTTLENECK and i != N_LAYERS - 1:
            h = jnp.maximum(h, 0.0)
    return jax.nn.sigmoid(h)


if __name__ == "__main__":
    key = jax.random.PRNGKey(0)
    k_x, k_p = jax.random.split(key)

    B = 256                                   # small test batch; 2 grid steps below
    x = jax.random.uniform(k_x, (B, IN_DIM), jnp.float32)
    ws, bs = make_params(k_p)

    fwd = jax.jit(functools.partial(ae_forward, batch_tile=128))
    out = jax.block_until_ready(fwd(x, ws, bs))

    ref = ae_forward_ref(x, ws, bs)
    assert out.shape == (B, IN_DIM)
    # All-layer bf16 matmuls + bf16 output -> relaxed tolerance vs the f32 reference.
    max_err = float(jnp.max(jnp.abs(out.astype(jnp.float32) - ref)))
    assert max_err < 4e-2, f"mismatch vs reference: max abs err = {max_err}"

    print("KERNEL_OK")
</pallas_src>

<mosaic_0001>
module attributes {stable_mosaic.version = 11 : i64} {
  func.func @ae_kernel(%arg0: i32, %arg1: memref<128x784xf32, #tpu.memory_space<vmem>>, %arg2: memref<784x128xbf16, #tpu.memory_space<vmem>>, %arg3: memref<128x64xbf16, #tpu.memory_space<vmem>>, %arg4: memref<64x36xbf16, #tpu.memory_space<vmem>>, %arg5: memref<36x18xbf16, #tpu.memory_space<vmem>>, %arg6: memref<18x9xbf16, #tpu.memory_space<vmem>>, %arg7: memref<9x18xbf16, #tpu.memory_space<vmem>>, %arg8: memref<18x36xbf16, #tpu.memory_space<vmem>>, %arg9: memref<36x64xbf16, #tpu.memory_space<vmem>>, %arg10: memref<64x128xbf16, #tpu.memory_space<vmem>>, %arg11: memref<128x784xbf16, #tpu.memory_space<vmem>>, %arg12: memref<1x128xf32, #tpu.memory_space<vmem>>, %arg13: memref<1x64xf32, #tpu.memory_space<vmem>>, %arg14: memref<1x36xf32, #tpu.memory_space<vmem>>, %arg15: memref<1x18xf32, #tpu.memory_space<vmem>>, %arg16: memref<1x9xf32, #tpu.memory_space<vmem>>, %arg17: memref<1x18xf32, #tpu.memory_space<vmem>>, %arg18: memref<1x36xf32, #tpu.memory_space<vmem>>, %arg19: memref<1x64xf32, #tpu.memory_space<vmem>>, %arg20: memref<1x128xf32, #tpu.memory_space<vmem>>, %arg21: memref<1x784xf32, #tpu.memory_space<vmem>>, %arg22: memref<128x784xbf16, #tpu.memory_space<vmem>>) attributes {dimension_semantics = [#tpu.dimension_semantics<parallel>], iteration_bounds = array<i64: 2>, scalar_prefetch = 0 : i64, scratch_operands = 0 : i64, tpu.core_type = #tpu.core_type<tc>, window_params = [{transform_indices = @transform_0, window_bounds = array<i64: 128, 784>}, {pipeline_mode = #tpu.pipeline_mode<synchronous>, transform_indices = @transform_1, window_bounds = array<i64: 784, 128>}, {pipeline_mode = #tpu.pipeline_mode<synchronous>, transform_indices = @transform_2, window_bounds = array<i64: 128, 64>}, {pipeline_mode = #tpu.pipeline_mode<synchronous>, transform_indices = @transform_3, window_bounds = array<i64: 64, 36>}, {pipeline_mode = #tpu.pipeline_mode<synchronous>, transform_indices = @transform_4, window_bounds = array<i64: 36, 18>}, {pipeline_mode = #tpu.pipeline_mode<synchronous>, transform_indices = @transform_5, window_bounds = array<i64: 18, 9>}, {pipeline_mode = #tpu.pipeline_mode<synchronous>, transform_indices = @transform_6, window_bounds = array<i64: 9, 18>}, {pipeline_mode = #tpu.pipeline_mode<synchronous>, transform_indices = @transform_7, window_bounds = array<i64: 18, 36>}, {pipeline_mode = #tpu.pipeline_mode<synchronous>, transform_indices = @transform_8, window_bounds = array<i64: 36, 64>}, {pipeline_mode = #tpu.pipeline_mode<synchronous>, transform_indices = @transform_9, window_bounds = array<i64: 64, 128>}, {pipeline_mode = #tpu.pipeline_mode<synchronous>, transform_indices = @transform_10, window_bounds = array<i64: 128, 784>}, {pipeline_mode = #tpu.pipeline_mode<synchronous>, transform_indices = @transform_11, window_bounds = array<i64: 1, 128>}, {pipeline_mode = #tpu.pipeline_mode<synchronous>, transform_indices = @transform_12, window_bounds = array<i64: 1, 64>}, {pipeline_mode = #tpu.pipeline_mode<synchronous>, transform_indices = @transform_13, window_bounds = array<i64: 1, 36>}, {pipeline_mode = #tpu.pipeline_mode<synchronous>, transform_indices = @transform_14, window_bounds = array<i64: 1, 18>}, {pipeline_mode = #tpu.pipeline_mode<synchronous>, transform_indices = @transform_15, window_bounds = array<i64: 1, 9>}, {pipeline_mode = #tpu.pipeline_mode<synchronous>, transform_indices = @transform_16, window_bounds = array<i64: 1, 18>}, {pipeline_mode = #tpu.pipeline_mode<synchronous>, transform_indices = @transform_17, window_bounds = array<i64: 1, 36>}, {pipeline_mode = #tpu.pipeline_mode<synchronous>, transform_indices = @transform_18, window_bounds = array<i64: 1, 64>}, {pipeline_mode = #tpu.pipeline_mode<synchronous>, transform_indices = @transform_19, window_bounds = array<i64: 1, 128>}, {pipeline_mode = #tpu.pipeline_mode<synchronous>, transform_indices = @transform_20, window_bounds = array<i64: 1, 784>}, {transform_indices = @transform_21, window_bounds = array<i64: 128, 784>}]} {
    %c0 = arith.constant 0 : index
    %c0_0 = arith.constant 0 : index
    %0 = vector.load %arg1[%c0, %c0_0] : memref<128x784xf32, #tpu.memory_space<vmem>>, vector<128x784xf32>
    %1 = arith.truncf %0 : vector<128x784xf32> to vector<128x784xbf16>
    %c0_1 = arith.constant 0 : index
    %c0_2 = arith.constant 0 : index
    %2 = vector.load %arg2[%c0_1, %c0_2] : memref<784x128xbf16, #tpu.memory_space<vmem>>, vector<784x128xbf16>
    %cst = arith.constant dense<0.000000e+00> : vector<128x128xf32>
    %3 = tpu.matmul %1, %2, %cst {dimension_numbers = #tpu.dot_dimension_numbers<[1], [0], [0], [1], [0, 0, 1, 1], [], []>} : vector<128x784xbf16>, vector<784x128xbf16>, vector<128x128xf32> -> vector<128x128xf32>
    %c0_3 = arith.constant 0 : index
    %c0_4 = arith.constant 0 : index
    %4 = vector.load %arg12[%c0_3, %c0_4] : memref<1x128xf32, #tpu.memory_space<vmem>>, vector<1x128xf32>
    %5 = vector.broadcast %4 : vector<1x128xf32> to vector<128x128xf32>
    %6 = arith.addf %3, %5 : vector<128x128xf32>
    %cst_5 = arith.constant 0.000000e+00 : f32
    %7 = vector.broadcast %cst_5 : f32 to vector<128x128xf32>
    %8 = arith.maximumf %6, %7 : vector<128x128xf32>
    %9 = arith.truncf %8 : vector<128x128xf32> to vector<128x128xbf16>
    %c0_6 = arith.constant 0 : index
    %c0_7 = arith.constant 0 : index
    %10 = vector.load %arg3[%c0_6, %c0_7] : memref<128x64xbf16, #tpu.memory_space<vmem>>, vector<128x64xbf16>
    %cst_8 = arith.constant dense<0.000000e+00> : vector<128x64xf32>
    %11 = tpu.matmul %9, %10, %cst_8 {dimension_numbers = #tpu.dot_dimension_numbers<[1], [0], [0], [1], [0, 0, 1, 1], [], []>} : vector<128x128xbf16>, vector<128x64xbf16>, vector<128x64xf32> -> vector<128x64xf32>
    %c0_9 = arith.constant 0 : index
    %c0_10 = arith.constant 0 : index
    %12 = vector.load %arg13[%c0_9, %c0_10] : memref<1x64xf32, #tpu.memory_space<vmem>>, vector<1x64xf32>
    %13 = vector.broadcast %12 : vector<1x64xf32> to vector<128x64xf32>
    %14 = arith.addf %11, %13 : vector<128x64xf32>
    %cst_11 = arith.constant 0.000000e+00 : f32
    %15 = vector.broadcast %cst_11 : f32 to vector<128x64xf32>
    %16 = arith.maximumf %14, %15 : vector<128x64xf32>
    %17 = arith.truncf %16 : vector<128x64xf32> to vector<128x64xbf16>
    %c0_12 = arith.constant 0 : index
    %c0_13 = arith.constant 0 : index
    %18 = vector.load %arg4[%c0_12, %c0_13] : memref<64x36xbf16, #tpu.memory_space<vmem>>, vector<64x36xbf16>
    %cst_14 = arith.constant dense<0.000000e+00> : vector<128x36xf32>
    %19 = tpu.matmul %17, %18, %cst_14 {dimension_numbers = #tpu.dot_dimension_numbers<[1], [0], [0], [1], [0, 0, 1, 1], [], []>} : vector<128x64xbf16>, vector<64x36xbf16>, vector<128x36xf32> -> vector<128x36xf32>
    %c0_15 = arith.constant 0 : index
    %c0_16 = arith.constant 0 : index
    %20 = vector.load %arg14[%c0_15, %c0_16] : memref<1x36xf32, #tpu.memory_space<vmem>>, vector<1x36xf32>
    %21 = vector.broadcast %20 : vector<1x36xf32> to vector<128x36xf32>
    %22 = arith.addf %19, %21 : vector<128x36xf32>
    %cst_17 = arith.constant 0.000000e+00 : f32
    %23 = vector.broadcast %cst_17 : f32 to vector<128x36xf32>
    %24 = arith.maximumf %22, %23 : vector<128x36xf32>
    %25 = arith.truncf %24 : vector<128x36xf32> to vector<128x36xbf16>
    %c0_18 = arith.constant 0 : index
    %c0_19 = arith.constant 0 : index
    %26 = vector.load %arg5[%c0_18, %c0_19] : memref<36x18xbf16, #tpu.memory_space<vmem>>, vector<36x18xbf16>
    %cst_20 = arith.constant dense<0.000000e+00> : vector<128x18xf32>
    %27 = tpu.matmul %25, %26, %cst_20 {dimension_numbers = #tpu.dot_dimension_numbers<[1], [0], [0], [1], [0, 0, 1, 1], [], []>} : vector<128x36xbf16>, vector<36x18xbf16>, vector<128x18xf32> -> vector<128x18xf32>
    %c0_21 = arith.constant 0 : index
    %c0_22 = arith.constant 0 : index
    %28 = vector.load %arg15[%c0_21, %c0_22] : memref<1x18xf32, #tpu.memory_space<vmem>>, vector<1x18xf32>
    %29 = vector.broadcast %28 : vector<1x18xf32> to vector<128x18xf32>
    %30 = arith.addf %27, %29 : vector<128x18xf32>
    %cst_23 = arith.constant 0.000000e+00 : f32
    %31 = vector.broadcast %cst_23 : f32 to vector<128x18xf32>
    %32 = arith.maximumf %30, %31 : vector<128x18xf32>
    %33 = arith.truncf %32 : vector<128x18xf32> to vector<128x18xbf16>
    %c0_24 = arith.constant 0 : index
    %c0_25 = arith.constant 0 : index
    %34 = vector.load %arg6[%c0_24, %c0_25] : memref<18x9xbf16, #tpu.memory_space<vmem>>, vector<18x9xbf16>
    %cst_26 = arith.constant dense<0.000000e+00> : vector<128x9xf32>
    %35 = tpu.matmul %33, %34, %cst_26 {dimension_numbers = #tpu.dot_dimension_numbers<[1], [0], [0], [1], [0, 0, 1, 1], [], []>} : vector<128x18xbf16>, vector<18x9xbf16>, vector<128x9xf32> -> vector<128x9xf32>
    %c0_27 = arith.constant 0 : index
    %c0_28 = arith.constant 0 : index
    %36 = vector.load %arg16[%c0_27, %c0_28] : memref<1x9xf32, #tpu.memory_space<vmem>>, vector<1x9xf32>
    %37 = vector.broadcast %36 : vector<1x9xf32> to vector<128x9xf32>
    %38 = arith.addf %35, %37 : vector<128x9xf32>
    %39 = arith.truncf %38 : vector<128x9xf32> to vector<128x9xbf16>
    %c0_29 = arith.constant 0 : index
    %c0_30 = arith.constant 0 : index
    %40 = vector.load %arg7[%c0_29, %c0_30] : memref<9x18xbf16, #tpu.memory_space<vmem>>, vector<9x18xbf16>
    %cst_31 = arith.constant dense<0.000000e+00> : vector<128x18xf32>
    %41 = tpu.matmul %39, %40, %cst_31 {dimension_numbers = #tpu.dot_dimension_numbers<[1], [0], [0], [1], [0, 0, 1, 1], [], []>} : vector<128x9xbf16>, vector<9x18xbf16>, vector<128x18xf32> -> vector<128x18xf32>
    %c0_32 = arith.constant 0 : index
    %c0_33 = arith.constant 0 : index
    %42 = vector.load %arg17[%c0_32, %c0_33] : memref<1x18xf32, #tpu.memory_space<vmem>>, vector<1x18xf32>
    %43 = vector.broadcast %42 : vector<1x18xf32> to vector<128x18xf32>
    %44 = arith.addf %41, %43 : vector<128x18xf32>
    %cst_34 = arith.constant 0.000000e+00 : f32
    %45 = vector.broadcast %cst_34 : f32 to vector<128x18xf32>
    %46 = arith.maximumf %44, %45 : vector<128x18xf32>
    %47 = arith.truncf %46 : vector<128x18xf32> to vector<128x18xbf16>
    %c0_35 = arith.constant 0 : index
    %c0_36 = arith.constant 0 : index
    %48 = vector.load %arg8[%c0_35, %c0_36] : memref<18x36xbf16, #tpu.memory_space<vmem>>, vector<18x36xbf16>
    %cst_37 = arith.constant dense<0.000000e+00> : vector<128x36xf32>
    %49 = tpu.matmul %47, %48, %cst_37 {dimension_numbers = #tpu.dot_dimension_numbers<[1], [0], [0], [1], [0, 0, 1, 1], [], []>} : vector<128x18xbf16>, vector<18x36xbf16>, vector<128x36xf32> -> vector<128x36xf32>
    %c0_38 = arith.constant 0 : index
    %c0_39 = arith.constant 0 : index
    %50 = vector.load %arg18[%c0_38, %c0_39] : memref<1x36xf32, #tpu.memory_space<vmem>>, vector<1x36xf32>
    %51 = vector.broadcast %50 : vector<1x36xf32> to vector<128x36xf32>
    %52 = arith.addf %49, %51 : vector<128x36xf32>
    %cst_40 = arith.constant 0.000000e+00 : f32
    %53 = vector.broadcast %cst_40 : f32 to vector<128x36xf32>
    %54 = arith.maximumf %52, %53 : vector<128x36xf32>
    %55 = arith.truncf %54 : vector<128x36xf32> to vector<128x36xbf16>
    %c0_41 = arith.constant 0 : index
    %c0_42 = arith.constant 0 : index
    %56 = vector.load %arg9[%c0_41, %c0_42] : memref<36x64xbf16, #tpu.memory_space<vmem>>, vector<36x64xbf16>
    %cst_43 = arith.constant dense<0.000000e+00> : vector<128x64xf32>
    %57 = tpu.matmul %55, %56, %cst_43 {dimension_numbers = #tpu.dot_dimension_numbers<[1], [0], [0], [1], [0, 0, 1, 1], [], []>} : vector<128x36xbf16>, vector<36x64xbf16>, vector<128x64xf32> -> vector<128x64xf32>
    %c0_44 = arith.constant 0 : index
    %c0_45 = arith.constant 0 : index
    %58 = vector.load %arg19[%c0_44, %c0_45] : memref<1x64xf32, #tpu.memory_space<vmem>>, vector<1x64xf32>
    %59 = vector.broadcast %58 : vector<1x64xf32> to vector<128x64xf32>
    %60 = arith.addf %57, %59 : vector<128x64xf32>
    %cst_46 = arith.constant 0.000000e+00 : f32
    %61 = vector.broadcast %cst_46 : f32 to vector<128x64xf32>
    %62 = arith.maximumf %60, %61 : vector<128x64xf32>
    %63 = arith.truncf %62 : vector<128x64xf32> to vector<128x64xbf16>
    %c0_47 = arith.constant 0 : index
    %c0_48 = arith.constant 0 : index
    %64 = vector.load %arg10[%c0_47, %c0_48] : memref<64x128xbf16, #tpu.memory_space<vmem>>, vector<64x128xbf16>
    %cst_49 = arith.constant dense<0.000000e+00> : vector<128x128xf32>
    %65 = tpu.matmul %63, %64, %cst_49 {dimension_numbers = #tpu.dot_dimension_numbers<[1], [0], [0], [1], [0, 0, 1, 1], [], []>} : vector<128x64xbf16>, vector<64x128xbf16>, vector<128x128xf32> -> vector<128x128xf32>
    %c0_50 = arith.constant 0 : index
    %c0_51 = arith.constant 0 : index
    %66 = vector.load %arg20[%c0_50, %c0_51] : memref<1x128xf32, #tpu.memory_space<vmem>>, vector<1x128xf32>
    %67 = vector.broadcast %66 : vector<1x128xf32> to vector<128x128xf32>
    %68 = arith.addf %65, %67 : vector<128x128xf32>
    %cst_52 = arith.constant 0.000000e+00 : f32
    %69 = vector.broadcast %cst_52 : f32 to vector<128x128xf32>
    %70 = arith.maximumf %68, %69 : vector<128x128xf32>
    %71 = arith.truncf %70 : vector<128x128xf32> to vector<128x128xbf16>
    %c0_53 = arith.constant 0 : index
    %c0_54 = arith.constant 0 : index
    %72 = vector.load %arg11[%c0_53, %c0_54] : memref<128x784xbf16, #tpu.memory_space<vmem>>, vector<128x784xbf16>
    %cst_55 = arith.constant dense<0.000000e+00> : vector<128x784xf32>
    %73 = tpu.matmul %71, %72, %cst_55 {dimension_numbers = #tpu.dot_dimension_numbers<[1], [0], [0], [1], [0, 0, 1, 1], [], []>} : vector<128x128xbf16>, vector<128x784xbf16>, vector<128x784xf32> -> vector<128x784xf32>
    %c0_56 = arith.constant 0 : index
    %c0_57 = arith.constant 0 : index
    %74 = vector.load %arg21[%c0_56, %c0_57] : memref<1x784xf32, #tpu.memory_space<vmem>>, vector<1x784xf32>
    %75 = vector.broadcast %74 : vector<1x784xf32> to vector<128x784xf32>
    %76 = arith.addf %73, %75 : vector<128x784xf32>
    %77 = arith.negf %76 : vector<128x784xf32>
    %78 = math.exp %77 : vector<128x784xf32>
    %cst_58 = arith.constant 1.000000e+00 : f32
    %79 = vector.broadcast %cst_58 : f32 to vector<128x784xf32>
    %80 = arith.addf %79, %78 : vector<128x784xf32>
    %81 = arith.divf %79, %80 : vector<128x784xf32>
    %82 = arith.truncf %81 : vector<128x784xf32> to vector<128x784xbf16>
    %c0_59 = arith.constant 0 : index
    %c0_60 = arith.constant 0 : index
    %83 = vector.load %arg22[%c0_59, %c0_60] : memref<128x784xbf16, #tpu.memory_space<vmem>>, vector<128x784xbf16>
    tpu.vector_store %arg22[%c0_59, %c0_60], %82 {strides = array<i32>} : memref<128x784xbf16, #tpu.memory_space<vmem>>, vector<128x784xbf16>,
    return
  }
  func.func @transform_0(%arg0: i32) -> (i32, i32) {
    %c0_i32 = arith.constant 0 : i32
    %c0_i32_0 = arith.constant 0 : i32
    return %arg0, %c0_i32 : i32, i32
  }
  func.func @transform_1(%arg0: i32) -> (i32, i32) {
    %c0_i32 = arith.constant 0 : i32
    %c0_i32_0 = arith.constant 0 : i32
    %c0_i32_1 = arith.constant 0 : i32
    return %c0_i32, %c0_i32_0 : i32, i32
  }
  func.func @transform_2(%arg0: i32) -> (i32, i32) {
    %c0_i32 = arith.constant 0 : i32
    %c0_i32_0 = arith.constant 0 : i32
    %c0_i32_1 = arith.constant 0 : i32
    return %c0_i32, %c0_i32_0 : i32, i32
  }
  func.func @transform_3(%arg0: i32) -> (i32, i32) {
    %c0_i32 = arith.constant 0 : i32
    %c0_i32_0 = arith.constant 0 : i32
    %c0_i32_1 = arith.constant 0 : i32
    return %c0_i32, %c0_i32_0 : i32, i32
  }
  func.func @transform_4(%arg0: i32) -> (i32, i32) {
    %c0_i32 = arith.constant 0 : i32
    %c0_i32_0 = arith.constant 0 : i32
    %c0_i32_1 = arith.constant 0 : i32
    return %c0_i32, %c0_i32_0 : i32, i32
  }
  func.func @transform_5(%arg0: i32) -> (i32, i32) {
    %c0_i32 = arith.constant 0 : i32
    %c0_i32_0 = arith.constant 0 : i32
    %c0_i32_1 = arith.constant 0 : i32
    return %c0_i32, %c0_i32_0 : i32, i32
  }
  func.func @transform_6(%arg0: i32) -> (i32, i32) {
    %c0_i32 = arith.constant 0 : i32
    %c0_i32_0 = arith.constant 0 : i32
    %c0_i32_1 = arith.constant 0 : i32
    return %c0_i32, %c0_i32_0 : i32, i32
  }
  func.func @transform_7(%arg0: i32) -> (i32, i32) {
    %c0_i32 = arith.constant 0 : i32
    %c0_i32_0 = arith.constant 0 : i32
    %c0_i32_1 = arith.constant 0 : i32
    return %c0_i32, %c0_i32_0 : i32, i32
  }
  func.func @transform_8(%arg0: i32) -> (i32, i32) {
    %c0_i32 = arith.constant 0 : i32
    %c0_i32_0 = arith.constant 0 : i32
    %c0_i32_1 = arith.constant 0 : i32
    return %c0_i32, %c0_i32_0 : i32, i32
  }
  func.func @transform_9(%arg0: i32) -> (i32, i32) {
    %c0_i32 = arith.constant 0 : i32
    %c0_i32_0 = arith.constant 0 : i32
    %c0_i32_1 = arith.constant 0 : i32
    return %c0_i32, %c0_i32_0 : i32, i32
  }
  func.func @transform_10(%arg0: i32) -> (i32, i32) {
    %c0_i32 = arith.constant 0 : i32
    %c0_i32_0 = arith.constant 0 : i32
    %c0_i32_1 = arith.constant 0 : i32
    return %c0_i32, %c0_i32_0 : i32, i32
  }
  func.func @transform_11(%arg0: i32) -> (i32, i32) {
    %c0_i32 = arith.constant 0 : i32
    %c0_i32_0 = arith.constant 0 : i32
    %c0_i32_1 = arith.constant 0 : i32
    return %c0_i32, %c0_i32_0 : i32, i32
  }
  func.func @transform_12(%arg0: i32) -> (i32, i32) {
    %c0_i32 = arith.constant 0 : i32
    %c0_i32_0 = arith.constant 0 : i32
    %c0_i32_1 = arith.constant 0 : i32
    return %c0_i32, %c0_i32_0 : i32, i32
  }
  func.func @transform_13(%arg0: i32) -> (i32, i32) {
    %c0_i32 = arith.constant 0 : i32
    %c0_i32_0 = arith.constant 0 : i32
    %c0_i32_1 = arith.constant 0 : i32
    return %c0_i32, %c0_i32_0 : i32, i32
  }
  func.func @transform_14(%arg0: i32) -> (i32, i32) {
    %c0_i32 = arith.constant 0 : i32
    %c0_i32_0 = arith.constant 0 : i32
    %c0_i32_1 = arith.constant 0 : i32
    return %c0_i32, %c0_i32_0 : i32, i32
  }
  func.func @transform_15(%arg0: i32) -> (i32, i32) {
    %c0_i32 = arith.constant 0 : i32
    %c0_i32_0 = arith.constant 0 : i32
    %c0_i32_1 = arith.constant 0 : i32
    return %c0_i32, %c0_i32_0 : i32, i32
  }
  func.func @transform_16(%arg0: i32) -> (i32, i32) {
    %c0_i32 = arith.constant 0 : i32
    %c0_i32_0 = arith.constant 0 : i32
    %c0_i32_1 = arith.constant 0 : i32
    return %c0_i32, %c0_i32_0 : i32, i32
  }
  func.func @transform_17(%arg0: i32) -> (i32, i32) {
    %c0_i32 = arith.constant 0 : i32
    %c0_i32_0 = arith.constant 0 : i32
    %c0_i32_1 = arith.constant 0 : i32
    return %c0_i32, %c0_i32_0 : i32, i32
  }
  func.func @transform_18(%arg0: i32) -> (i32, i32) {
    %c0_i32 = arith.constant 0 : i32
    %c0_i32_0 = arith.constant 0 : i32
    %c0_i32_1 = arith.constant 0 : i32
    return %c0_i32, %c0_i32_0 : i32, i32
  }
  func.func @transform_19(%arg0: i32) -> (i32, i32) {
    %c0_i32 = arith.constant 0 : i32
    %c0_i32_0 = arith.constant 0 : i32
    %c0_i32_1 = arith.constant 0 : i32
    return %c0_i32, %c0_i32_0 : i32, i32
  }
  func.func @transform_20(%arg0: i32) -> (i32, i32) {
    %c0_i32 = arith.constant 0 : i32
    %c0_i32_0 = arith.constant 0 : i32
    %c0_i32_1 = arith.constant 0 : i32
    return %c0_i32, %c0_i32_0 : i32, i32
  }
  func.func @transform_21(%arg0: i32) -> (i32, i32) {
    %c0_i32 = arith.constant 0 : i32
    %c0_i32_0 = arith.constant 0 : i32
    return %arg0, %c0_i32 : i32, i32
  }
}

</mosaic_0001>

<llo_original>
// kernel: ae_forward.1
$region0: #{ae_forward.1}
  #allocation0 [shape = 'u32[]', space=smem, size = 0x4, offset = 0x4, fixed_abs, tag = 'smem constant byte address 0x4 - core index']
  #allocation1 [shape = 'u32[144,128]{1,0:T(1,128)}', space=vmem, size = 0x12000, scoped, tag = 'internal scratch']
  %s0 = inlined_call_operand.vmem [shape: f32[256,784], index: 0, kind: input, shape index: {}]
  %s1 = inlined_call_operand.vmem [shape: bf16[784,128], index: 1, kind: input, shape index: {}]
  %s2 = inlined_call_operand.vmem [shape: bf16[128,64], index: 2, kind: input, shape index: {}]
  %s3 = inlined_call_operand.vmem [shape: bf16[64,36], index: 3, kind: input, shape index: {}]
  %s4 = inlined_call_operand.vmem [shape: bf16[36,18], index: 4, kind: input, shape index: {}]
  %s5 = inlined_call_operand.vmem [shape: bf16[18,9], index: 5, kind: input, shape index: {}]
  %s6 = inlined_call_operand.vmem [shape: bf16[9,18], index: 6, kind: input, shape index: {}]
  %s7 = inlined_call_operand.vmem [shape: bf16[18,36], index: 7, kind: input, shape index: {}]
  %s8 = inlined_call_operand.vmem [shape: bf16[36,64], index: 8, kind: input, shape index: {}]
  %s9 = inlined_call_operand.vmem [shape: bf16[64,128], index: 9, kind: input, shape index: {}]
  %s10 = inlined_call_operand.vmem [shape: bf16[128,784], index: 10, kind: input, shape index: {}]
  %s11 = inlined_call_operand.vmem [shape: f32[1,128], index: 11, kind: input, shape index: {}]
  %s12 = inlined_call_operand.vmem [shape: f32[1,64], index: 12, kind: input, shape index: {}]
  %s13 = inlined_call_operand.vmem [shape: f32[1,36], index: 13, kind: input, shape index: {}]
  %s14 = inlined_call_operand.vmem [shape: f32[1,18], index: 14, kind: input, shape index: {}]
  %s15 = inlined_call_operand.vmem [shape: f32[1,9], index: 15, kind: input, shape index: {}]
  %s16 = inlined_call_operand.vmem [shape: f32[1,18], index: 16, kind: input, shape index: {}]
  %s17 = inlined_call_operand.vmem [shape: f32[1,36], index: 17, kind: input, shape index: {}]
  %s18 = inlined_call_operand.vmem [shape: f32[1,64], index: 18, kind: input, shape index: {}]
  %s19 = inlined_call_operand.vmem [shape: f32[1,128], index: 19, kind: input, shape index: {}]
  %s20 = inlined_call_operand.vmem [shape: f32[1,784], index: 20, kind: input, shape index: {}]
  %s21 = inlined_call_operand.vmem [shape: bf16[256,784], index: 21, kind: output, shape index: {}]
  %s22 = sld [smem:[#allocation0]]
  $region117: #{ae_forward.1} parent=0
    _
  %s24 = ssub.s32 1, %s22
  %s25 = scalar_select 0, %s24, %s22
  loop: start=0, step=1, limit=4
  $region2: #{ae_forward.1} parent=0 // loop_pre_header
    _
  $region3: #{ae_forward.1} parent=0 // loop_header
    %s27 = sphi 0, %s31
    %p28 = scmp.ge.s32.totalorder %s27, 4
    %s37 = sphi 0, %s39
    %s40 = sphi 0, %s37
    %s41 = sphi 0, %s40
    %s57 = sphi 0, %s41
    %s61 = sphi 0, %s61
    %s63 = sphi 0, %s61
    %s64 = sphi 0, %s63
    %s78 = sphi 0, %s64
    %s82 = sphi 0, %s82
    %s84 = sphi 0, %s82
    %s85 = sphi 0, %s84
    %s99 = sphi 0, %s85
    %s103 = sphi 0, %s103
    %s105 = sphi 0, %s103
    %s106 = sphi 0, %s105
    %s120 = sphi 0, %s106
    %s124 = sphi 0, %s124
    %s126 = sphi 0, %s124
    %s127 = sphi 0, %s126
    %s141 = sphi 0, %s127
    %s145 = sphi 0, %s145
    %s147 = sphi 0, %s145
    %s148 = sphi 0, %s147
    %s162 = sphi 0, %s148
    %s166 = sphi 0, %s166
    %s168 = sphi 0, %s166
    %s169 = sphi 0, %s168
    %s183 = sphi 0, %s169
    %s187 = sphi 0, %s187
    %s189 = sphi 0, %s187
    %s190 = sphi 0, %s189
    %s204 = sphi 0, %s190
    %s208 = sphi 0, %s208
    %s210 = sphi 0, %s208
    %s211 = sphi 0, %s210
    %s225 = sphi 0, %s211
    %s229 = sphi 0, %s229
    %s231 = sphi 0, %s229
    %s232 = sphi 0, %s231
    %s246 = sphi 0, %s232
    %s250 = sphi 0, %s250
    %s252 = sphi 0, %s250
    %s253 = sphi 0, %s252
    %s267 = sphi 0, %s253
    %s271 = sphi 0, %s271
    %s273 = sphi 0, %s271
    %s274 = sphi 0, %s273
    %s288 = sphi 0, %s274
    %s292 = sphi 0, %s292
    %s294 = sphi 0, %s292
    %s295 = sphi 0, %s294
    %s309 = sphi 0, %s295
    %s313 = sphi 0, %s313
    %s315 = sphi 0, %s313
    %s316 = sphi 0, %s315
    %s330 = sphi 0, %s316
    %s334 = sphi 0, %s334
    %s336 = sphi 0, %s334
    %s337 = sphi 0, %s336
    %s351 = sphi 0, %s337
    %s355 = sphi 0, %s355
    %s357 = sphi 0, %s355
    %s358 = sphi 0, %s357
    %s372 = sphi 0, %s358
    %s376 = sphi 0, %s376
    %s378 = sphi 0, %s376
    %s379 = sphi 0, %s378
    %s393 = sphi 0, %s379
    %s397 = sphi 0, %s397
    %s399 = sphi 0, %s397
    %s400 = sphi 0, %s399
    %s414 = sphi 0, %s400
    %s418 = sphi 0, %s418
    %s420 = sphi 0, %s418
    %s421 = sphi 0, %s420
    %s435 = sphi 0, %s421
    %s439 = sphi 0, %s439
    %s441 = sphi 0, %s439
    %s442 = sphi 0, %s441
    %s456 = sphi 0, %s442
    %s460 = sphi 0, %s460
    %s462 = sphi 0, %s460
    %s463 = sphi 0, %s462
    %s477 = sphi 0, %s463
    %s483 = sphi 0, %s485
    %s486 = sphi 0, %s483
    %s487 = sphi 0, %s486
    %s503 = sphi 0, %s487
  $region4: #{ae_forward.1} parent=0 // loop_header_branch
    %30 = sbr.rel (%p28) target = $region8
  $region5: #{ae_forward.1} parent=0 // loop_body
    %s32 = ssub.s32 %s27, 1
    %s33 = ssub.s32 %s27, 2
    %s34 = sadd.s32 %s27, 1
    %s35 = ssub.s32 %s27, %s34
    %p36 = scmp.eq.s32.totalorder %s35, 0
    %s38 = sadd.s32 %s37, 1
    %s39 = scalar_select %p36, %s37, %s38
    %p42 = pneg %p36
    %p43 = scmp.eq.s32.totalorder %s27, 1
    %p44 = por %p42, %p43
    %p45 = scmp.ne.s32.totalorder %s37, %s40
    %p46 = scmp.eq.s32.totalorder %s27, 0
    %p47 = por %p45, %p46
    %p48 = scmp.ne.s32.totalorder %s37, %s40
    %p49 = scmp.eq.s32.totalorder %s32, 1
    %p50 = por %p48, %p49
    %p51 = scmp.ne.s32.totalorder %s40, %s41
    %p52 = scmp.eq.s32.totalorder %s32, 0
    %p53 = por %p51, %p52
    %p54 = scmp.ne.s32.totalorder %s40, %s41
    %p55 = scmp.eq.s32.totalorder %s33, 1
    %p56 = por %p54, %p55
    %p58 = scmp.ne.s32.totalorder %s41, %s57
    %p59 = scmp.eq.s32.totalorder %s33, 0
    %p60 = por %p58, %p59
    %s62 = sadd.s32 %s61, 1
    %p65 = scmp.eq.s32.totalorder %s27, 1
    %p66 = scmp.ne.s32.totalorder %s61, %s63
    %p67 = scmp.eq.s32.totalorder %s27, 0
    %p68 = por %p66, %p67
    %p69 = scmp.ne.s32.totalorder %s61, %s63
    %p70 = scmp.eq.s32.totalorder %s32, 1
    %p71 = por %p69, %p70
    %p72 = scmp.ne.s32.totalorder %s63, %s64
    %p73 = scmp.eq.s32.totalorder %s32, 0
    %p74 = por %p72, %p73
    %p75 = scmp.ne.s32.totalorder %s63, %s64
    %p76 = scmp.eq.s32.totalorder %s33, 1
    %p77 = por %p75, %p76
    %p79 = scmp.ne.s32.totalorder %s64, %s78
    %p80 = scmp.eq.s32.totalorder %s33, 0
    %p81 = por %p79, %p80
    %s83 = sadd.s32 %s82, 1
    %p86 = scmp.eq.s32.totalorder %s27, 1
    %p87 = scmp.ne.s32.totalorder %s82, %s84
    %p88 = scmp.eq.s32.totalorder %s27, 0
    %p89 = por %p87, %p88
    %p90 = scmp.ne.s32.totalorder %s82, %s84
    %p91 = scmp.eq.s32.totalorder %s32, 1
    %p92 = por %p90, %p91
    %p93 = scmp.ne.s32.totalorder %s84, %s85
    %p94 = scmp.eq.s32.totalorder %s32, 0
    %p95 = por %p93, %p94
    %p96 = scmp.ne.s32.totalorder %s84, %s85
    %p97 = scmp.eq.s32.totalorder %s33, 1
    %p98 = por %p96, %p97
    %p100 = scmp.ne.s32.totalorder %s85, %s99
    %p101 = scmp.eq.s32.totalorder %s33, 0
    %p102 = por %p100, %p101
    %s104 = sadd.s32 %s103, 1
    %p107 = scmp.eq.s32.totalorder %s27, 1
    %p108 = scmp.ne.s32.totalorder %s103, %s105
    %p109 = scmp.eq.s32.totalorder %s27, 0
    %p110 = por %p108, %p109
    %p111 = scmp.ne.s32.totalorder %s103, %s105
    %p112 = scmp.eq.s32.totalorder %s32, 1
    %p113 = por %p111, %p112
    %p114 = scmp.ne.s32.totalorder %s105, %s106
    %p115 = scmp.eq.s32.totalorder %s32, 0
    %p116 = por %p114, %p115
    %p117 = scmp.ne.s32.totalorder %s105, %s106
    %p118 = scmp.eq.s32.totalorder %s33, 1
    %p119 = por %p117, %p118
    %p121 = scmp.ne.s32.totalorder %s106, %s120
    %p122 = scmp.eq.s32.totalorder %s33, 0
    %p123 = por %p121, %p122
    %s125 = sadd.s32 %s124, 1
    %p128 = scmp.eq.s32.totalorder %s27, 1
    %p129 = scmp.ne.s32.totalorder %s124, %s126
    %p130 = scmp.eq.s32.totalorder %s27, 0
    %p131 = por %p129, %p130
    %p132 = scmp.ne.s32.totalorder %s124, %s126
    %p133 = scmp.eq.s32.totalorder %s32, 1
    %p134 = por %p132, %p133
    %p135 = scmp.ne.s32.totalorder %s126, %s127
    %p136 = scmp.eq.s32.totalorder %s32, 0
    %p137 = por %p135, %p136
    %p138 = scmp.ne.s32.totalorder %s126, %s127
    %p139 = scmp.eq.s32.totalorder %s33, 1
    %p140 = por %p138, %p139
    %p142 = scmp.ne.s32.totalorder %s127, %s141
    %p143 = scmp.eq.s32.totalorder %s33, 0
    %p144 = por %p142, %p143
    %s146 = sadd.s32 %s145, 1
    %p149 = scmp.eq.s32.totalorder %s27, 1
    %p150 = scmp.ne.s32.totalorder %s145, %s147
    %p151 = scmp.eq.s32.totalorder %s27, 0
    %p152 = por %p150, %p151
    %p153 = scmp.ne.s32.totalorder %s145, %s147
    %p154 = scmp.eq.s32.totalorder %s32, 1
    %p155 = por %p153, %p154
    %p156 = scmp.ne.s32.totalorder %s147, %s148
    %p157 = scmp.eq.s32.totalorder %s32, 0
    %p158 = por %p156, %p157
    %p159 = scmp.ne.s32.totalorder %s147, %s148
    %p160 = scmp.eq.s32.totalorder %s33, 1
    %p161 = por %p159, %p160
    %p163 = scmp.ne.s32.totalorder %s148, %s162
    %p164 = scmp.eq.s32.totalorder %s33, 0
    %p165 = por %p163, %p164
    %s167 = sadd.s32 %s166, 1
    %p170 = scmp.eq.s32.totalorder %s27, 1
    %p171 = scmp.ne.s32.totalorder %s166, %s168
    %p172 = scmp.eq.s32.totalorder %s27, 0
    %p173 = por %p171, %p172
    %p174 = scmp.ne.s32.totalorder %s166, %s168
    %p175 = scmp.eq.s32.totalorder %s32, 1
    %p176 = por %p174, %p175
    %p177 = scmp.ne.s32.totalorder %s168, %s169
    %p178 = scmp.eq.s32.totalorder %s32, 0
    %p179 = por %p177, %p178
    %p180 = scmp.ne.s32.totalorder %s168, %s169
    %p181 = scmp.eq.s32.totalorder %s33, 1
    %p182 = por %p180, %p181
    %p184 = scmp.ne.s32.totalorder %s169, %s183
    %p185 = scmp.eq.s32.totalorder %s33, 0
    %p186 = por %p184, %p185
    %s188 = sadd.s32 %s187, 1
    %p191 = scmp.eq.s32.totalorder %s27, 1
    %p192 = scmp.ne.s32.totalorder %s187, %s189
    %p193 = scmp.eq.s32.totalorder %s27, 0
    %p194 = por %p192, %p193
    %p195 = scmp.ne.s32.totalorder %s187, %s189
    %p196 = scmp.eq.s32.totalorder %s32, 1
    %p197 = por %p195, %p196
    %p198 = scmp.ne.s32.totalorder %s189, %s190
    %p199 = scmp.eq.s32.totalorder %s32, 0
    %p200 = por %p198, %p199
    %p201 = scmp.ne.s32.totalorder %s189, %s190
    %p202 = scmp.eq.s32.totalorder %s33, 1
    %p203 = por %p201, %p202
    %p205 = scmp.ne.s32.totalorder %s190, %s204
    %p206 = scmp.eq.s32.totalorder %s33, 0
    %p207 = por %p205, %p206
    %s209 = sadd.s32 %s208, 1
    %p212 = scmp.eq.s32.totalorder %s27, 1
    %p213 = scmp.ne.s32.totalorder %s208, %s210
    %p214 = scmp.eq.s32.totalorder %s27, 0
    %p215 = por %p213, %p214
    %p216 = scmp.ne.s32.totalorder %s208, %s210
    %p217 = scmp.eq.s32.totalorder %s32, 1
    %p218 = por %p216, %p217
    %p219 = scmp.ne.s32.totalorder %s210, %s211
    %p220 = scmp.eq.s32.totalorder %s32, 0
    %p221 = por %p219, %p220
    %p222 = scmp.ne.s32.totalorder %s210, %s211
    %p223 = scmp.eq.s32.totalorder %s33, 1
    %p224 = por %p222, %p223
    %p226 = scmp.ne.s32.totalorder %s211, %s225
    %p227 = scmp.eq.s32.totalorder %s33, 0
    %p228 = por %p226, %p227
    %s230 = sadd.s32 %s229, 1
    %p233 = scmp.eq.s32.totalorder %s27, 1
    %p234 = scmp.ne.s32.totalorder %s229, %s231
    %p235 = scmp.eq.s32.totalorder %s27, 0
    %p236 = por %p234, %p235
    %p237 = scmp.ne.s32.totalorder %s229, %s231
    %p238 = scmp.eq.s32.totalorder %s32, 1
    %p239 = por %p237, %p238
    %p240 = scmp.ne.s32.totalorder %s231, %s232
    %p241 = scmp.eq.s32.totalorder %s32, 0
    %p242 = por %p240, %p241
    %p243 = scmp.ne.s32.totalorder %s231, %s232
    %p244 = scmp.eq.s32.totalorder %s33, 1
    %p245 = por %p243, %p244
    %p247 = scmp.ne.s32.totalorder %s232, %s246
    %p248 = scmp.eq.s32.totalorder %s33, 0
    %p249 = por %p247, %p248
    %s251 = sadd.s32 %s250, 1
    %p254 = scmp.eq.s32.totalorder %s27, 1
    %p255 = scmp.ne.s32.totalorder %s250, %s252
    %p256 = scmp.eq.s32.totalorder %s27, 0
    %p257 = por %p255, %p256
    %p258 = scmp.ne.s32.totalorder %s250, %s252
    %p259 = scmp.eq.s32.totalorder %s32, 1
    %p260 = por %p258, %p259
    %p261 = scmp.ne.s32.totalorder %s252, %s253
    %p262 = scmp.eq.s32.totalorder %s32, 0
    %p263 = por %p261, %p262
    %p264 = scmp.ne.s32.totalorder %s252, %s253
    %p265 = scmp.eq.s32.totalorder %s33, 1
    %p266 = por %p264, %p265
    %p268 = scmp.ne.s32.totalorder %s253, %s267
    %p269 = scmp.eq.s32.totalorder %s33, 0
    %p270 = por %p268, %p269
    %s272 = sadd.s32 %s271, 1
    %p275 = scmp.eq.s32.totalorder %s27, 1
    %p276 = scmp.ne.s32.totalorder %s271, %s273
    %p277 = scmp.eq.s32.totalorder %s27, 0
    %p278 = por %p276, %p277
    %p279 = scmp.ne.s32.totalorder %s271, %s273
    %p280 = scmp.eq.s32.totalorder %s32, 1
    %p281 = por %p279, %p280
    %p282 = scmp.ne.s32.totalorder %s273, %s274
    %p283 = scmp.eq.s32.totalorder %s32, 0
    %p284 = por %p282, %p283
    %p285 = scmp.ne.s32.totalorder %s273, %s274
    %p286 = scmp.eq.s32.totalorder %s33, 1
    %p287 = por %p285, %p286
    %p289 = scmp.ne.s32.totalorder %s274, %s288
    %p290 = scmp.eq.s32.totalorder %s33, 0
    %p291 = por %p289, %p290
    %s293 = sadd.s32 %s292, 1
    %p296 = scmp.eq.s32.totalorder %s27, 1
    %p297 = scmp.ne.s32.totalorder %s292, %s294
    %p298 = scmp.eq.s32.totalorder %s27, 0
    %p299 = por %p297, %p298
    %p300 = scmp.ne.s32.totalorder %s292, %s294
    %p301 = scmp.eq.s32.totalorder %s32, 1
    %p302 = por %p300, %p301
    %p303 = scmp.ne.s32.totalorder %s294, %s295
    %p304 = scmp.eq.s32.totalorder %s32, 0
    %p305 = por %p303, %p304
    %p306 = scmp.ne.s32.totalorder %s294, %s295
    %p307 = scmp.eq.s32.totalorder %s33, 1
    %p308 = por %p306, %p307
    %p310 = scmp.ne.s32.totalorder %s295, %s309
    %p311 = scmp.eq.s32.totalorder %s33, 0
    %p312 = por %p310, %p311
    %s314 = sadd.s32 %s313, 1
    %p317 = scmp.eq.s32.totalorder %s27, 1
    %p318 = scmp.ne.s32.totalorder %s313, %s315
    %p319 = scmp.eq.s32.totalorder %s27, 0
    %p320 = por %p318, %p319
    %p321 = scmp.ne.s32.totalorder %s313, %s315
    %p322 = scmp.eq.s32.totalorder %s32, 1
    %p323 = por %p321, %p322
    %p324 = scmp.ne.s32.totalorder %s315, %s316
    %p325 = scmp.eq.s32.totalorder %s32, 0
    %p326 = por %p324, %p325
    %p327 = scmp.ne.s32.totalorder %s315, %s316
    %p328 = scmp.eq.s32.totalorder %s33, 1
    %p329 = por %p327, %p328
    %p331 = scmp.ne.s32.totalorder %s316, %s330
    %p332 = scmp.eq.s32.totalorder %s33, 0
    %p333 = por %p331, %p332
    %s335 = sadd.s32 %s334, 1
    %p338 = scmp.eq.s32.totalorder %s27, 1
    %p339 = scmp.ne.s32.totalorder %s334, %s336
    %p340 = scmp.eq.s32.totalorder %s27, 0
    %p341 = por %p339, %p340
    %p342 = scmp.ne.s32.totalorder %s334, %s336
    %p343 = scmp.eq.s32.totalorder %s32, 1
    %p344 = por %p342, %p343
    %p345 = scmp.ne.s32.totalorder %s336, %s337
    %p346 = scmp.eq.s32.totalorder %s32, 0
    %p347 = por %p345, %p346
    %p348 = scmp.ne.s32.totalorder %s336, %s337
    %p349 = scmp.eq.s32.totalorder %s33, 1
    %p350 = por %p348, %p349
    %p352 = scmp.ne.s32.totalorder %s337, %s351
    %p353 = scmp.eq.s32.totalorder %s33, 0
    %p354 = por %p352, %p353
    %s356 = sadd.s32 %s355, 1
    %p359 = scmp.eq.s32.totalorder %s27, 1
    %p360 = scmp.ne.s32.totalorder %s355, %s357
    %p361 = scmp.eq.s32.totalorder %s27, 0
    %p362 = por %p360, %p361
    %p363 = scmp.ne.s32.totalorder %s355, %s357
    %p364 = scmp.eq.s32.totalorder %s32, 1
    %p365 = por %p363, %p364
    %p366 = scmp.ne.s32.totalorder %s357, %s358
    %p367 = scmp.eq.s32.totalorder %s32, 0
    %p368 = por %p366, %p367
    %p369 = scmp.ne.s32.totalorder %s357, %s358
    %p370 = scmp.eq.s32.totalorder %s33, 1
    %p371 = por %p369, %p370
    %p373 = scmp.ne.s32.totalorder %s358, %s372
    %p374 = scmp.eq.s32.totalorder %s33, 0
    %p375 = por %p373, %p374
    %s377 = sadd.s32 %s376, 1
    %p380 = scmp.eq.s32.totalorder %s27, 1
    %p381 = scmp.ne.s32.totalorder %s376, %s378
    %p382 = scmp.eq.s32.totalorder %s27, 0
    %p383 = por %p381, %p382
    %p384 = scmp.ne.s32.totalorder %s376, %s378
    %p385 = scmp.eq.s32.totalorder %s32, 1
    %p386 = por %p384, %p385
    %p387 = scmp.ne.s32.totalorder %s378, %s379
    %p388 = scmp.eq.s32.totalorder %s32, 0
    %p389 = por %p387, %p388
    %p390 = scmp.ne.s32.totalorder %s378, %s379
    %p391 = scmp.eq.s32.totalorder %s33, 1
    %p392 = por %p390, %p391
    %p394 = scmp.ne.s32.totalorder %s379, %s393
    %p395 = scmp.eq.s32.totalorder %s33, 0
    %p396 = por %p394, %p395
    %s398 = sadd.s32 %s397, 1
    %p401 = scmp.eq.s32.totalorder %s27, 1
    %p402 = scmp.ne.s32.totalorder %s397, %s399
    %p403 = scmp.eq.s32.totalorder %s27, 0
    %p404 = por %p402, %p403
    %p405 = scmp.ne.s32.totalorder %s397, %s399
    %p406 = scmp.eq.s32.totalorder %s32, 1
    %p407 = por %p405, %p406
    %p408 = scmp.ne.s32.totalorder %s399, %s400
    %p409 = scmp.eq.s32.totalorder %s32, 0
    %p410 = por %p408, %p409
    %p411 = scmp.ne.s32.totalorder %s399, %s400
    %p412 = scmp.eq.s32.totalorder %s33, 1
    %p413 = por %p411, %p412
    %p415 = scmp.ne.s32.totalorder %s400, %s414
    %p416 = scmp.eq.s32.totalorder %s33, 0
    %p417 = por %p415, %p416
    %s419 = sadd.s32 %s418, 1
    %p422 = scmp.eq.s32.totalorder %s27, 1
    %p423 = scmp.ne.s32.totalorder %s418, %s420
    %p424 = scmp.eq.s32.totalorder %s27, 0
    %p425 = por %p423, %p424
    %p426 = scmp.ne.s32.totalorder %s418, %s420
    %p427 = scmp.eq.s32.totalorder %s32, 1
    %p428 = por %p426, %p427
    %p429 = scmp.ne.s32.totalorder %s420, %s421
    %p430 = scmp.eq.s32.totalorder %s32, 0
    %p431 = por %p429, %p430
    %p432 = scmp.ne.s32.totalorder %s420, %s421
    %p433 = scmp.eq.s32.totalorder %s33, 1
    %p434 = por %p432, %p433
    %p436 = scmp.ne.s32.totalorder %s421, %s435
    %p437 = scmp.eq.s32.totalorder %s33, 0
    %p438 = por %p436, %p437
    %s440 = sadd.s32 %s439, 1
    %p443 = scmp.eq.s32.totalorder %s27, 1
    %p444 = scmp.ne.s32.totalorder %s439, %s441
    %p445 = scmp.eq.s32.totalorder %s27, 0
    %p446 = por %p444, %p445
    %p447 = scmp.ne.s32.totalorder %s439, %s441
    %p448 = scmp.eq.s32.totalorder %s32, 1
    %p449 = por %p447, %p448
    %p450 = scmp.ne.s32.totalorder %s441, %s442
    %p451 = scmp.eq.s32.totalorder %s32, 0
    %p452 = por %p450, %p451
    %p453 = scmp.ne.s32.totalorder %s441, %s442
    %p454 = scmp.eq.s32.totalorder %s33, 1
    %p455 = por %p453, %p454
    %p457 = scmp.ne.s32.totalorder %s442, %s456
    %p458 = scmp.eq.s32.totalorder %s33, 0
    %p459 = por %p457, %p458
    %s461 = sadd.s32 %s460, 1
    %p464 = scmp.eq.s32.totalorder %s27, 1
    %p465 = scmp.ne.s32.totalorder %s460, %s462
    %p466 = scmp.eq.s32.totalorder %s27, 0
    %p467 = por %p465, %p466
    %p468 = scmp.ne.s32.totalorder %s460, %s462
    %p469 = scmp.eq.s32.totalorder %s32, 1
    %p470 = por %p468, %p469
    %p471 = scmp.ne.s32.totalorder %s462, %s463
    %p472 = scmp.eq.s32.totalorder %s32, 0
    %p473 = por %p471, %p472
    %p474 = scmp.ne.s32.totalorder %s462, %s463
    %p475 = scmp.eq.s32.totalorder %s33, 1
    %p476 = por %p474, %p475
    %p478 = scmp.ne.s32.totalorder %s463, %s477
    %p479 = scmp.eq.s32.totalorder %s33, 0
    %p480 = por %p478, %p479
    %s481 = ssub.s32 %s27, %s34
    %p482 = scmp.eq.s32.totalorder %s481, 0
    %s484 = sadd.s32 %s483, 1
    %s485 = scalar_select %p482, %s483, %s484
    %p488 = pneg %p482
    %p489 = scmp.eq.s32.totalorder %s27, 1
    %p490 = por %p488, %p489
    %p491 = scmp.ne.s32.totalorder %s483, %s486
    %p492 = scmp.eq.s32.totalorder %s27, 0
    %p493 = por %p491, %p492
    %p494 = scmp.ne.s32.totalorder %s483, %s486
    %p495 = scmp.eq.s32.totalorder %s32, 1
    %p496 = por %p494, %p495
    %p497 = scmp.ne.s32.totalorder %s486, %s487
    %p498 = scmp.eq.s32.totalorder %s32, 0
    %p499 = por %p497, %p498
    %p500 = scmp.ne.s32.totalorder %s486, %s487
    %p501 = scmp.eq.s32.totalorder %s33, 1
    %p502 = por %p500, %p501
    %p504 = scmp.ne.s32.totalorder %s487, %s503
    %p505 = scmp.eq.s32.totalorder %s33, 0
    %p506 = por %p504, %p505
    %p507 = scmp.le.s32.totalorder 1, %s27
    %p508 = scmp.lt.s32.totalorder %s27, 3
    %p509 = pnand %p507, %p508
    %p510 = pneg %p509
    // Predicated region
    $region9: #{ae_forward.1} parent=5 // pred_check
      _
    $region10: #{ae_forward.1} parent=5 // pred_check_branch
      %512 = sbr.rel (%p509) target = $region12
    $region11: #{ae_forward.1} parent=5 // pred_region
      %s513 = ssub.s32 %s27, 1
      // Predicated region
      $region13: #{ae_forward.1} parent=11 // pred_check
        %p514 = pneg %p74
      $region14: #{ae_forward.1} parent=11 // pred_check_branch
        %516 = sbr.rel (%p514) target = $region16
      $region15: #{ae_forward.1} parent=11 // pred_region
        _
      $region16: #{ae_forward.1} parent=11 // pred_fallthru
        _
      // Predicated region
      $region17: #{ae_forward.1} parent=11 // pred_check
        %p517 = pneg %p95
      $region18: #{ae_forward.1} parent=11 // pred_check_branch
        %519 = sbr.rel (%p517) target = $region20
      $region19: #{ae_forward.1} parent=11 // pred_region
        _
      $region20: #{ae_forward.1} parent=11 // pred_fallthru
        _
      // Predicated region
      $region21: #{ae_forward.1} parent=11 // pred_check
        %p520 = pneg %p116
      $region22: #{ae_forward.1} parent=11 // pred_check_branch
        %522 = sbr.rel (%p520) target = $region24
      $region23: #{ae_forward.1} parent=11 // pred_region
        _
      $region24: #{ae_forward.1} parent=11 // pred_fallthru
        _
      // Predicated region
      $region25: #{ae_forward.1} parent=11 // pred_check
        %p523 = pneg %p137
      $region26: #{ae_forward.1} parent=11 // pred_check_branch
        %525 = sbr.rel (%p523) target = $region28
      $region27: #{ae_forward.1} parent=11 // pred_region
        _
      $region28: #{ae_forward.1} parent=11 // pred_fallthru
        _
      // Predicated region
      $region29: #{ae_forward.1} parent=11 // pred_check
        %p526 = pneg %p158
      $region30: #{ae_forward.1} parent=11 // pred_check_branch
        %528 = sbr.rel (%p526) target = $region32
      $region31: #{ae_forward.1} parent=11 // pred_region
        _
      $region32: #{ae_forward.1} parent=11 // pred_fallthru
        _
      // Predicated region
      $region33: #{ae_forward.1} parent=11 // pred_check
        %p529 = pneg %p179
      $region34: #{ae_forward.1} parent=11 // pred_check_branch
        %531 = sbr.rel (%p529) target = $region36
      $region35: #{ae_forward.1} parent=11 // pred_region
        _
      $region36: #{ae_forward.1} parent=11 // pred_fallthru
        _
      // Predicated region
      $region37: #{ae_forward.1} parent=11 // pred_check
        %p532 = pneg %p200
      $region38: #{ae_forward.1} parent=11 // pred_check_branch
        %534 = sbr.rel (%p532) target = $region40
      $region39: #{ae_forward.1} parent=11 // pred_region
        _
      $region40: #{ae_forward.1} parent=11 // pred_fallthru
        _
      // Predicated region
      $region41: #{ae_forward.1} parent=11 // pred_check
        %p535 = pneg %p221
      $region42: #{ae_forward.1} parent=11 // pred_check_branch
        %537 = sbr.rel (%p535) target = $region44
      $region43: #{ae_forward.1} parent=11 // pred_region
        _
      $region44: #{ae_forward.1} parent=11 // pred_fallthru
        _
      // Predicated region
      $region45: #{ae_forward.1} parent=11 // pred_check
        %p538 = pneg %p242
      $region46: #{ae_forward.1} parent=11 // pred_check_branch
        %540 = sbr.rel (%p538) target = $region48
      $region47: #{ae_forward.1} parent=11 // pred_region
        _
      $region48: #{ae_forward.1} parent=11 // pred_fallthru
        _
      // Predicated region
      $region49: #{ae_forward.1} parent=11 // pred_check
        %p541 = pneg %p263
      $region50: #{ae_forward.1} parent=11 // pred_check_branch
        %543 = sbr.rel (%p541) target = $region52
      $region51: #{ae_forward.1} parent=11 // pred_region
        _
      $region52: #{ae_forward.1} parent=11 // pred_fallthru
        _
      // Predicated region
      $region53: #{ae_forward.1} parent=11 // pred_check
        %p544 = pneg %p284
      $region54: #{ae_forward.1} parent=11 // pred_check_branch
        %546 = sbr.rel (%p544) target = $region56
      $region55: #{ae_forward.1} parent=11 // pred_region
        _
      $region56: #{ae_forward.1} parent=11 // pred_fallthru
        _
      // Predicated region
      $region57: #{ae_forward.1} parent=11 // pred_check
        %p547 = pneg %p305
      $region58: #{ae_forward.1} parent=11 // pred_check_branch
        %549 = sbr.rel (%p547) target = $region60
      $region59: #{ae_forward.1} parent=11 // pred_region
        _
      $region60: #{ae_forward.1} parent=11 // pred_fallthru
        _
      // Predicated region
      $region61: #{ae_forward.1} parent=11 // pred_check
        %p550 = pneg %p326
      $region62: #{ae_forward.1} parent=11 // pred_check_branch
        %552 = sbr.rel (%p550) target = $region64
      $region63: #{ae_forward.1} parent=11 // pred_region
        _
      $region64: #{ae_forward.1} parent=11 // pred_fallthru
        _
      // Predicated region
      $region65: #{ae_forward.1} parent=11 // pred_check
        %p553 = pneg %p347
      $region66: #{ae_forward.1} parent=11 // pred_check_branch
        %555 = sbr.rel (%p553) target = $region68
      $region67: #{ae_forward.1} parent=11 // pred_region
        _
      $region68: #{ae_forward.1} parent=11 // pred_fallthru
        _
      // Predicated region
      $region69: #{ae_forward.1} parent=11 // pred_check
        %p556 = pneg %p368
      $region70: #{ae_forward.1} parent=11 // pred_check_branch
        %558 = sbr.rel (%p556) target = $region72
      $region71: #{ae_forward.1} parent=11 // pred_region
        _
      $region72: #{ae_forward.1} parent=11 // pred_fallthru
        _
      // Predicated region
      $region73: #{ae_forward.1} parent=11 // pred_check
        %p559 = pneg %p389
      $region74: #{ae_forward.1} parent=11 // pred_check_branch
        %561 = sbr.rel (%p559) target = $region76
      $region75: #{ae_forward.1} parent=11 // pred_region
        _
      $region76: #{ae_forward.1} parent=11 // pred_fallthru
        _
      // Predicated region
      $region77: #{ae_forward.1} parent=11 // pred_check
        %p562 = pneg %p410
      $region78: #{ae_forward.1} parent=11 // pred_check_branch
        %564 = sbr.rel (%p562) target = $region80
      $region79: #{ae_forward.1} parent=11 // pred_region
        _
      $region80: #{ae_forward.1} parent=11 // pred_fallthru
        _
      // Predicated region
      $region81: #{ae_forward.1} parent=11 // pred_check
        %p565 = pneg %p431
      $region82: #{ae_forward.1} parent=11 // pred_check_branch
        %567 = sbr.rel (%p565) target = $region84
      $region83: #{ae_forward.1} parent=11 // pred_region
        _
      $region84: #{ae_forward.1} parent=11 // pred_fallthru
        _
      // Predicated region
      $region85: #{ae_forward.1} parent=11 // pred_check
        %p568 = pneg %p452
      $region86: #{ae_forward.1} parent=11 // pred_check_branch
        %570 = sbr.rel (%p568) target = $region88
      $region87: #{ae_forward.1} parent=11 // pred_region
        _
      $region88: #{ae_forward.1} parent=11 // pred_fallthru
        _
      // Predicated region
      $region89: #{ae_forward.1} parent=11 // pred_check
        %p571 = pneg %p473
      $region90: #{ae_forward.1} parent=11 // pred_check_branch
        %573 = sbr.rel (%p571) target = $region92
      $region91: #{ae_forward.1} parent=11 // pred_region
        _
      $region92: #{ae_forward.1} parent=11 // pred_fallthru
        _
    $region12: #{ae_forward.1} parent=5 // pred_fallthru
      _
    %p574 = scmp.lt.s32.totalorder %s27, 2
    // Predicated region
    $region93: #{ae_forward.1} parent=5 // pred_check
      %p575 = pneg %p574
    $region94: #{ae_forward.1} parent=5 // pred_check_branch
      %577 = sbr.rel (%p575) target = $region96
    $region95: #{ae_forward.1} parent=5 // pred_region
      // Predicated region
      $region97: #{ae_forward.1} parent=95 // pred_check
        %p578 = pneg %p47
      $region98: #{ae_forward.1} parent=95 // pred_check_branch
        %580 = sbr.rel (%p578) target = $region100
      $region99: #{ae_forward.1} parent=95 // pred_region
        %s581 = smul.u32 16, %s27
        %p582 = scmp.lt.s32.totalorder %s581, 31
        %s583 = scalar_select %p582, %s581, 31
        %s584 = smul.addr %s583, 7
        %s585 = smul.addr %s584, 8
        %s586 = scalar_lea.vmem %s0, %s585
        %s587 = smul.u32 16, %s27
      $region100: #{ae_forward.1} parent=95 // pred_fallthru
        _
    $region96: #{ae_forward.1} parent=5 // pred_fallthru
      _
    %p588 = scmp.le.s32.totalorder 1, %s27
    %p589 = scmp.lt.s32.totalorder %s27, 3
    %p590 = pnand %p588, %p589
    %p591 = pneg %p590
    // Predicated region
    $region101: #{ae_forward.1} parent=5 // pred_check
      _
    $region102: #{ae_forward.1} parent=5 // pred_check_branch
      %593 = sbr.rel (%p590) target = $region104
    $region103: #{ae_forward.1} parent=5 // pred_region
      %s594 = ssub.s32 %s27, 1
      %s595 = smul.u32 16, %s32
      %p596 = scmp.lt.s32.totalorder %s595, 31
      %s597 = scalar_select %p596, %s595, 31
      %s598 = smul.addr %s597, 7
      %s599 = smul.addr %s598, 8
      %s600 = scalar_lea.vmem %s0, %s599
      %p601 = pneg %p53
      %p602 = pneg %p50
      %p603 = pneg %p74
      %p604 = pneg %p71
      %p605 = pneg %p95
      %p606 = pneg %p92
      %p607 = pneg %p116
      %p608 = pneg %p113
      %p609 = pneg %p137
      %p610 = pneg %p134
      %p611 = pneg %p158
      %p612 = pneg %p155
      %p613 = pneg %p179
      %p614 = pneg %p176
      %p615 = pneg %p200
      %p616 = pneg %p197
      %p617 = pneg %p221
      %p618 = pneg %p218
      %p619 = pneg %p242
      %p620 = pneg %p239
      %p621 = pneg %p263
      %p622 = pneg %p260
      %p623 = pneg %p284
      %p624 = pneg %p281
      %p625 = pneg %p305
      %p626 = pneg %p302
      %p627 = pneg %p326
      %p628 = pneg %p323
      %p629 = pneg %p347
      %p630 = pneg %p344
      %p631 = pneg %p368
      %p632 = pneg %p365
      %p633 = pneg %p389
      %p634 = pneg %p386
      %p635 = pneg %p410
      %p636 = pneg %p407
      %p637 = pneg %p431
      %p638 = pneg %p428
      %p639 = pneg %p452
      %p640 = pneg %p449
      %p641 = pneg %p473
      %p642 = pneg %p470
      %p643 = pneg %p499
      %p644 = pneg %p496
      %s645 = smul.u32 16, %s32
      %p646 = scmp.lt.s32.totalorder %s645, 31
      %s647 = scalar_select %p646, %s645, 31
      %s648 = smul.addr %s647, 7
      %s649 = smul.addr %s648, 4
      %s650 = scalar_lea.vmem %s21, %s649
      %s651 = smul.u32 16, %s32
      %p652 = scmp.lt.s32.totalorder %s651, 31
      %s653 = scalar_select %p652, %s651, 31
      %s654 = smul.addr %s653, 7
      %s655 = smul.addr %s654, 8
      %s656 = scalar_lea.vmem %s0, %s655
      %s657 = smul.u32 16, %s32
      %s658 = smul.u32 16, %s32
      %p659 = scmp.lt.s32.totalorder %s658, 31
      %s660 = scalar_select %p659, %s658, 31
      %s661 = smul.addr %s660, 7
      %s662 = smul.addr %s661, 4
      %s663 = scalar_lea.vmem %s21, %s662
      %s664 = smul.u32 16, %s32
      %v666 = vld [vmem:[%s656] sm:$0xff]
      %v667 = vld [vmem:[%s656 + $0x8] sm:$0xff]
      %v668 = vld [vmem:[%s656 + $0x10] sm:$0xff]
      %v669 = vld [vmem:[%s656 + $0x18] sm:$0xff]
      %v670 = vld [vmem:[%s656 + $0x20] sm:$0xff]
      %v671 = vld [vmem:[%s656 + $0x28] sm:$0xff]
      %v672 = vld [vmem:[%s656 + $0x30] sm:$0xff]
      %v673 = vld [vmem:[%s656 + $0x38] sm:$0xff]
      %v674 = vld [vmem:[%s656 + $0x40] sm:$0xff]
      %v675 = vld [vmem:[%s656 + $0x48] sm:$0xff]
      %v676 = vld [vmem:[%s656 + $0x50] sm:$0xff]
      %v677 = vld [vmem:[%s656 + $0x58] sm:$0xff]
      %v678 = vld [vmem:[%s656 + $0x60] sm:$0xff]
      %v679 = vld [vmem:[%s656 + $0x68] sm:$0xff]
      %v680 = vld [vmem:[%s656 + $0x70] sm:$0xff]
      %v681 = vld [vmem:[%s656 + $0x78] sm:$0xff]
      %v682 = vld [vmem:[%s656 + $0x80] sm:$0xff]
      %v683 = vld [vmem:[%s656 + $0x88] sm:$0xff]
      %v684 = vld [vmem:[%s656 + $0x90] sm:$0xff]
      %v685 = vld [vmem:[%s656 + $0x98] sm:$0xff]
      %v686 = vld [vmem:[%s656 + $0xa0] sm:$0xff]
      %v687 = vld [vmem:[%s656 + $0xa8] sm:$0xff]
      %v688 = vld [vmem:[%s656 + $0xb0] sm:$0xff]
      %v689 = vld [vmem:[%s656 + $0xb8] sm:$0xff]
      %v690 = vld [vmem:[%s656 + $0xc0] sm:$0xff]
      %v691 = vld [vmem:[%s656 + $0xc8] sm:$0xff]
      %v692 = vld [vmem:[%s656 + $0xd0] sm:$0xff]
      %v693 = vld [vmem:[%s656 + $0xd8] sm:$0xff]
      %v694 = vld [vmem:[%s656 + $0xe0] sm:$0xff]
      %v695 = vld [vmem:[%s656 + $0xe8] sm:$0xff]
      %v696 = vld [vmem:[%s656 + $0xf0] sm:$0xff]
      %v697 = vld [vmem:[%s656 + $0xf8] sm:$0xff]
      %v698 = vld [vmem:[%s656 + $0x100] sm:$0xff]
      %v699 = vld [vmem:[%s656 + $0x108] sm:$0xff]
      %v700 = vld [vmem:[%s656 + $0x110] sm:$0xff]
      %v701 = vld [vmem:[%s656 + $0x118] sm:$0xff]
      %v702 = vld [vmem:[%s656 + $0x120] sm:$0xff]
      %v703 = vld [vmem:[%s656 + $0x128] sm:$0xff]
      %v704 = vld [vmem:[%s656 + $0x130] sm:$0xff]
      %v705 = vld [vmem:[%s656 + $0x138] sm:$0xff]
      %v706 = vld [vmem:[%s656 + $0x140] sm:$0xff]
      %v707 = vld [vmem:[%s656 + $0x148] sm:$0xff]
      %v708 = vld [vmem:[%s656 + $0x150] sm:$0xff]
      %v709 = vld [vmem:[%s656 + $0x158] sm:$0xff]
      %v710 = vld [vmem:[%s656 + $0x160] sm:$0xff]
      %v711 = vld [vmem:[%s656 + $0x168] sm:$0xff]
      %v712 = vld [vmem:[%s656 + $0x170] sm:$0xff]
      %v713 = vld [vmem:[%s656 + $0x178] sm:$0xff]
      %v714 = vld [vmem:[%s656 + $0x180] sm:$0xff]
      %v715 = vld [vmem:[%s656 + $0x188] sm:$0xff]
      %v716 = vld [vmem:[%s656 + $0x190] sm:$0xff]
      %v717 = vld [vmem:[%s656 + $0x198] sm:$0xff]
      %v718 = vld [vmem:[%s656 + $0x1a0] sm:$0xff]
      %v719 = vld [vmem:[%s656 + $0x1a8] sm:$0xff]
      %v720 = vld [vmem:[%s656 + $0x1b0] sm:$0xff]
      %v721 = vld [vmem:[%s656 + $0x1b8] sm:$0xff]
      %v722 = vld [vmem:[%s656 + $0x1c0] sm:$0xff]
      %v723 = vld [vmem:[%s656 + $0x1c8] sm:$0xff]
      %v724 = vld [vmem:[%s656 + $0x1d0] sm:$0xff]
      %v725 = vld [vmem:[%s656 + $0x1d8] sm:$0xff]
      %v726 = vld [vmem:[%s656 + $0x1e0] sm:$0xff]
      %v727 = vld [vmem:[%s656 + $0x1e8] sm:$0xff]
      %v728 = vld [vmem:[%s656 + $0x1f0] sm:$0xff]
      %v729 = vld [vmem:[%s656 + $0x1f8] sm:$0xff]
      %v730 = vld [vmem:[%s656 + $0x200] sm:$0xff]
      %v731 = vld [vmem:[%s656 + $0x208] sm:$0xff]
      %v732 = vld [vmem:[%s656 + $0x210] sm:$0xff]
      %v733 = vld [vmem:[%s656 + $0x218] sm:$0xff]
      %v734 = vld [vmem:[%s656 + $0x220] sm:$0xff]
      %v735 = vld [vmem:[%s656 + $0x228] sm:$0xff]
      %v736 = vld [vmem:[%s656 + $0x230] sm:$0xff]
      %v737 = vld [vmem:[%s656 + $0x238] sm:$0xff]
      %v738 = vld [vmem:[%s656 + $0x240] sm:$0xff]
      %v739 = vld [vmem:[%s656 + $0x248] sm:$0xff]
      %v740 = vld [vmem:[%s656 + $0x250] sm:$0xff]
      %v741 = vld [vmem:[%s656 + $0x258] sm:$0xff]
      %v742 = vld [vmem:[%s656 + $0x260] sm:$0xff]
      %v743 = vld [vmem:[%s656 + $0x268] sm:$0xff]
      %v744 = vld [vmem:[%s656 + $0x270] sm:$0xff]
      %v745 = vld [vmem:[%s656 + $0x278] sm:$0xff]
      %v746 = vld [vmem:[%s656 + $0x280] sm:$0xff]
      %v747 = vld [vmem:[%s656 + $0x288] sm:$0xff]
      %v748 = vld [vmem:[%s656 + $0x290] sm:$0xff]
      %v749 = vld [vmem:[%s656 + $0x298] sm:$0xff]
      %v750 = vld [vmem:[%s656 + $0x2a0] sm:$0xff]
      %v751 = vld [vmem:[%s656 + $0x2a8] sm:$0xff]
      %v752 = vld [vmem:[%s656 + $0x2b0] sm:$0xff]
      %v753 = vld [vmem:[%s656 + $0x2b8] sm:$0xff]
      %v754 = vld [vmem:[%s656 + $0x2c0] sm:$0xff]
      %v755 = vld [vmem:[%s656 + $0x2c8] sm:$0xff]
      %v756 = vld [vmem:[%s656 + $0x2d0] sm:$0xff]
      %v757 = vld [vmem:[%s656 + $0x2d8] sm:$0xff]
      %v758 = vld [vmem:[%s656 + $0x2e0] sm:$0xff]
      %v759 = vld [vmem:[%s656 + $0x2e8] sm:$0xff]
      %v760 = vld [vmem:[%s656 + $0x2f0] sm:$0xff]
      %v761 = vld [vmem:[%s656 + $0x2f8] sm:$0xff]
      %v762 = vld [vmem:[%s656 + $0x300] sm:$0xff]
      %v763 = vld [vmem:[%s656 + $0x308] sm:$0xff]
      %v764 = vld [vmem:[%s656 + $0x310] sm:$0xff]
      %v765 = vld [vmem:[%s656 + $0x318] sm:$0xff]
      %v766 = vld [vmem:[%s656 + $0x320] sm:$0xff]
      %v767 = vld [vmem:[%s656 + $0x328] sm:$0xff]
      %v768 = vld [vmem:[%s656 + $0x330] sm:$0xff]
      %v769 = vld [vmem:[%s656 + $0x338] sm:$0xff]
      %v770 = vld [vmem:[%s656 + $0x340] sm:$0xff]
      %v771 = vld [vmem:[%s656 + $0x348] sm:$0xff]
      %v772 = vld [vmem:[%s656 + $0x350] sm:$0xff]
      %v773 = vld [vmem:[%s656 + $0x358] sm:$0xff]
      %v774 = vld [vmem:[%s656 + $0x360] sm:$0xff]
      %v775 = vld [vmem:[%s656 + $0x368] sm:$0xff]
      %v776 = vld [vmem:[%s656 + $0x370] sm:$0xff]
      %v777 = vld [vmem:[%s656 + $0x378] sm:$0xff]
      %v778 = vpack.c.bf16 %v673, %v666
      %v779 = vpack.c.bf16 %v674, %v667
      %v780 = vpack.c.bf16 %v675, %v668
      %v781 = vpack.c.bf16 %v676, %v669
      %v782 = vpack.c.bf16 %v677, %v670
      %v783 = vpack.c.bf16 %v678, %v671
      %v784 = vpack.c.bf16 %v679, %v672
      %v785 = vpack.c.bf16 %v687, %v680
      %v786 = vpack.c.bf16 %v688, %v681
      %v787 = vpack.c.bf16 %v689, %v682
      %v788 = vpack.c.bf16 %v690, %v683
      %v789 = vpack.c.bf16 %v691, %v684
      %v790 = vpack.c.bf16 %v692, %v685
      %v791 = vpack.c.bf16 %v693, %v686
      %v792 = vpack.c.bf16 %v701, %v694
      %v793 = vpack.c.bf16 %v702, %v695
      %v794 = vpack.c.bf16 %v703, %v696
      %v795 = vpack.c.bf16 %v704, %v697
      %v796 = vpack.c.bf16 %v705, %v698
      %v797 = vpack.c.bf16 %v706, %v699
      %v798 = vpack.c.bf16 %v707, %v700
      %v799 = vpack.c.bf16 %v715, %v708
      %v800 = vpack.c.bf16 %v716, %v709
      %v801 = vpack.c.bf16 %v717, %v710
      %v802 = vpack.c.bf16 %v718, %v711
      %v803 = vpack.c.bf16 %v719, %v712
      %v804 = vpack.c.bf16 %v720, %v713
      %v805 = vpack.c.bf16 %v721, %v714
      %v806 = vpack.c.bf16 %v729, %v722
      %v807 = vpack.c.bf16 %v730, %v723
      %v808 = vpack.c.bf16 %v731, %v724
      %v809 = vpack.c.bf16 %v732, %v725
      %v810 = vpack.c.bf16 %v733, %v726
      %v811 = vpack.c.bf16 %v734, %v727
      %v812 = vpack.c.bf16 %v735, %v728
      %v813 = vpack.c.bf16 %v743, %v736
      %v814 = vpack.c.bf16 %v744, %v737
      %v815 = vpack.c.bf16 %v745, %v738
      %v816 = vpack.c.bf16 %v746, %v739
      %v817 = vpack.c.bf16 %v747, %v740
      %v818 = vpack.c.bf16 %v748, %v741
      %v819 = vpack.c.bf16 %v749, %v742
      %v820 = vpack.c.bf16 %v757, %v750
      %v821 = vpack.c.bf16 %v758, %v751
      %v822 = vpack.c.bf16 %v759, %v752
      %v823 = vpack.c.bf16 %v760, %v753
      %v824 = vpack.c.bf16 %v761, %v754
      %v825 = vpack.c.bf16 %v762, %v755
      %v826 = vpack.c.bf16 %v763, %v756
      %v827 = vpack.c.bf16 %v771, %v764
      %v828 = vpack.c.bf16 %v772, %v765
      %v829 = vpack.c.bf16 %v773, %v766
      %v830 = vpack.c.bf16 %v774, %v767
      %v831 = vpack.c.bf16 %v775, %v768
      %v832 = vpack.c.bf16 %v776, %v769
      %v833 = vpack.c.bf16 %v777, %v770
      %v834 = vld [vmem:[%s1] sm:$0xf]
      %v835 = vld [vmem:[%s1 + $0x4] sm:$0xf]
      %v836 = vld [vmem:[%s1 + $0x8] sm:$0xf]
      %v837 = vld [vmem:[%s1 + $0xc] sm:$0xf]
      %v838 = vld [vmem:[%s1 + $0x10] sm:$0xf]
      %v839 = vld [vmem:[%s1 + $0x14] sm:$0xf]
      %v840 = vld [vmem:[%s1 + $0x18] sm:$0xf]
      %v841 = vld [vmem:[%s1 + $0x1c] sm:$0xf]
      %v842 = vld [vmem:[%s1 + $0x20] sm:$0xf]
      %v843 = vld [vmem:[%s1 + $0x24] sm:$0xf]
      %v844 = vld [vmem:[%s1 + $0x28] sm:$0xf]
      %v845 = vld [vmem:[%s1 + $0x2c] sm:$0xf]
      %v846 = vld [vmem:[%s1 + $0x30] sm:$0xf]
      %v847 = vld [vmem:[%s1 + $0x34] sm:$0xf]
      %v848 = vld [vmem:[%s1 + $0x38] sm:$0xf]
      %v849 = vld [vmem:[%s1 + $0x3c] sm:$0xf]
      %v850 = vld [vmem:[%s1 + $0x40] sm:$0xf]
      %v851 = vld [vmem:[%s1 + $0x44] sm:$0xf]
      %v852 = vld [vmem:[%s1 + $0x48] sm:$0xf]
      %v853 = vld [vmem:[%s1 + $0x4c] sm:$0xf]
      %v854 = vld [vmem:[%s1 + $0x50] sm:$0xf]
      %v855 = vld [vmem:[%s1 + $0x54] sm:$0xf]
      %v856 = vld [vmem:[%s1 + $0x58] sm:$0xf]
      %v857 = vld [vmem:[%s1 + $0x5c] sm:$0xf]
      %v858 = vld [vmem:[%s1 + $0x60] sm:$0xf]
      %v859 = vld [vmem:[%s1 + $0x64] sm:$0xf]
      %v860 = vld [vmem:[%s1 + $0x68] sm:$0xf]
      %v861 = vld [vmem:[%s1 + $0x6c] sm:$0xf]
      %v862 = vld [vmem:[%s1 + $0x70] sm:$0xf]
      %v863 = vld [vmem:[%s1 + $0x74] sm:$0xf]
      %v864 = vld [vmem:[%s1 + $0x78] sm:$0xf]
      %v865 = vld [vmem:[%s1 + $0x7c] sm:$0xf]
      %v866 = vld [vmem:[%s1 + $0x80] sm:$0xf]
      %v867 = vld [vmem:[%s1 + $0x84] sm:$0xf]
      %v868 = vld [vmem:[%s1 + $0x88] sm:$0xf]
      %v869 = vld [vmem:[%s1 + $0x8c] sm:$0xf]
      %v870 = vld [vmem:[%s1 + $0x90] sm:$0xf]
      %v871 = vld [vmem:[%s1 + $0x94] sm:$0xf]
      %v872 = vld [vmem:[%s1 + $0x98] sm:$0xf]
      %v873 = vld [vmem:[%s1 + $0x9c] sm:$0xf]
      %v874 = vld [vmem:[%s1 + $0xa0] sm:$0xf]
      %v875 = vld [vmem:[%s1 + $0xa4] sm:$0xf]
      %v876 = vld [vmem:[%s1 + $0xa8] sm:$0xf]
      %v877 = vld [vmem:[%s1 + $0xac] sm:$0xf]
      %v878 = vld [vmem:[%s1 + $0xb0] sm:$0xf]
      %v879 = vld [vmem:[%s1 + $0xb4] sm:$0xf]
      %v880 = vld [vmem:[%s1 + $0xb8] sm:$0xf]
      %v881 = vld [vmem:[%s1 + $0xbc] sm:$0xf]
      %v882 = vld [vmem:[%s1 + $0xc0] sm:$0xf]
      %v883 = vld [vmem:[%s1 + $0xc4] sm:$0xf]
      %v884 = vld [vmem:[%s1 + $0xc8] sm:$0xf]
      %v885 = vld [vmem:[%s1 + $0xcc] sm:$0xf]
      %v886 = vld [vmem:[%s1 + $0xd0] sm:$0xf]
      %v887 = vld [vmem:[%s1 + $0xd4] sm:$0xf]
      %v888 = vld [vmem:[%s1 + $0xd8] sm:$0xf]
      %v889 = vld [vmem:[%s1 + $0xdc] sm:$0xf]
      %v890 = vld [vmem:[%s1 + $0xe0] sm:$0xf]
      %v891 = vld [vmem:[%s1 + $0xe4] sm:$0xf]
      %v892 = vld [vmem:[%s1 + $0xe8] sm:$0xf]
      %v893 = vld [vmem:[%s1 + $0xec] sm:$0xf]
      %v894 = vld [vmem:[%s1 + $0xf0] sm:$0xf]
      %v895 = vld [vmem:[%s1 + $0xf4] sm:$0xf]
      %v896 = vld [vmem:[%s1 + $0xf8] sm:$0xf]
      %v897 = vld [vmem:[%s1 + $0xfc] sm:$0xf]
      %v898 = vld [vmem:[%s1 + $0x100] sm:$0xf]
      %v899 = vld [vmem:[%s1 + $0x104] sm:$0xf]
      %v900 = vld [vmem:[%s1 + $0x108] sm:$0xf]
      %v901 = vld [vmem:[%s1 + $0x10c] sm:$0xf]
      %v902 = vld [vmem:[%s1 + $0x110] sm:$0xf]
      %v903 = vld [vmem:[%s1 + $0x114] sm:$0xf]
      %v904 = vld [vmem:[%s1 + $0x118] sm:$0xf]
      %v905 = vld [vmem:[%s1 + $0x11c] sm:$0xf]
      %v906 = vld [vmem:[%s1 + $0x120] sm:$0xf]
      %v907 = vld [vmem:[%s1 + $0x124] sm:$0xf]
      %v908 = vld [vmem:[%s1 + $0x128] sm:$0xf]
      %v909 = vld [vmem:[%s1 + $0x12c] sm:$0xf]
      %v910 = vld [vmem:[%s1 + $0x130] sm:$0xf]
      %v911 = vld [vmem:[%s1 + $0x134] sm:$0xf]
      %v912 = vld [vmem:[%s1 + $0x138] sm:$0xf]
      %v913 = vld [vmem:[%s1 + $0x13c] sm:$0xf]
      %v914 = vld [vmem:[%s1 + $0x140] sm:$0xf]
      %v915 = vld [vmem:[%s1 + $0x144] sm:$0xf]
      %v916 = vld [vmem:[%s1 + $0x148] sm:$0xf]
      %v917 = vld [vmem:[%s1 + $0x14c] sm:$0xf]
      %v918 = vld [vmem:[%s1 + $0x150] sm:$0xf]
      %v919 = vld [vmem:[%s1 + $0x154] sm:$0xf]
      %v920 = vld [vmem:[%s1 + $0x158] sm:$0xf]
      %v921 = vld [vmem:[%s1 + $0x15c] sm:$0xf]
      %v922 = vld [vmem:[%s1 + $0x160] sm:$0xf]
      %v923 = vld [vmem:[%s1 + $0x164] sm:$0xf]
      %v924 = vld [vmem:[%s1 + $0x168] sm:$0xf]
      %v925 = vld [vmem:[%s1 + $0x16c] sm:$0xf]
      %v926 = vld [vmem:[%s1 + $0x170] sm:$0xf]
      %v927 = vld [vmem:[%s1 + $0x174] sm:$0xf]
      %v928 = vld [vmem:[%s1 + $0x178] sm:$0xf]
      %v929 = vld [vmem:[%s1 + $0x17c] sm:$0xf]
      %v930 = vld [vmem:[%s1 + $0x180] sm:$0xf]
      %v931 = vld [vmem:[%s1 + $0x184] sm:$0xf]
      %v932 = vld [vmem:[%s11] sm:$0x1]
      %v934 = vlaneseq
      %v935 = vshrl.u32 %v934, 7
      %v936 = vsub.s32 0, %v935
      %v937 = vrot.slane %v932, %v936
      %v1037 = vunpack.c.l.b16 %v834
      %v1038 = vunpack.c.l.b16 %v835
      %v1039 = vunpack.c.l.b16 %v836
      %v1040 = vunpack.c.l.b16 %v837
      %v1041 = vunpack.c.l.b16 %v838
      %v1042 = vunpack.c.l.b16 %v839
      %v1043 = vunpack.c.l.b16 %v840
      %v1044 = vunpack.c.l.b16 %v841
      %v1045 = vunpack.c.l.b16 %v842
      %v1046 = vunpack.c.l.b16 %v843
      %v1047 = vunpack.c.l.b16 %v844
      %v1048 = vunpack.c.l.b16 %v845
      %v1049 = vunpack.c.l.b16 %v846
      %v1050 = vunpack.c.l.b16 %v847
      %v1051 = vunpack.c.l.b16 %v848
      %v1052 = vunpack.c.l.b16 %v849
      %v1053 = vunpack.c.l.b16 %v850
      %v1054 = vunpack.c.l.b16 %v851
      %v1055 = vunpack.c.l.b16 %v852
      %v1056 = vunpack.c.l.b16 %v853
      %v1057 = vunpack.c.l.b16 %v854
      %v1058 = vunpack.c.l.b16 %v855
      %v1059 = vunpack.c.l.b16 %v856
      %v1060 = vunpack.c.l.b16 %v857
      %v1061 = vunpack.c.l.b16 %v858
      %v1062 = vunpack.c.l.b16 %v859
      %v1063 = vunpack.c.l.b16 %v860
      %v1064 = vunpack.c.l.b16 %v861
      %v1065 = vunpack.c.l.b16 %v862
      %v1066 = vunpack.c.l.b16 %v863
      %v1067 = vunpack.c.l.b16 %v864
      %v1068 = vunpack.c.l.b16 %v865
      %v1069 = vunpack.c.l.b16 %v866
      %v1070 = vunpack.c.l.b16 %v867
      %v1071 = vunpack.c.l.b16 %v868
      %v1072 = vunpack.c.l.b16 %v869
      %v1073 = vunpack.c.l.b16 %v870
      %v1074 = vunpack.c.l.b16 %v871
      %v1075 = vunpack.c.l.b16 %v872
      %v1076 = vunpack.c.l.b16 %v873
      %v1077 = vunpack.c.l.b16 %v874
      %v1078 = vunpack.c.l.b16 %v875
      %v1079 = vunpack.c.l.b16 %v876
      %v1080 = vunpack.c.l.b16 %v877
      %v1081 = vunpack.c.l.b16 %v878
      %v1082 = vunpack.c.l.b16 %v879
      %v1083 = vunpack.c.l.b16 %v880
      %v1084 = vunpack.c.l.b16 %v881
      %v1085 = vunpack.c.l.b16 %v882
      %v1086 = vunpack.c.l.b16 %v883
      %v1087 = vunpack.c.l.b16 %v884
      %v1088 = vunpack.c.l.b16 %v885
      %v1089 = vunpack.c.l.b16 %v886
      %v1090 = vunpack.c.l.b16 %v887
      %v1091 = vunpack.c.l.b16 %v888
      %v1092 = vunpack.c.l.b16 %v889
      %v1093 = vunpack.c.l.b16 %v890
      %v1094 = vunpack.c.l.b16 %v891
      %v1095 = vunpack.c.l.b16 %v892
      %v1096 = vunpack.c.l.b16 %v893
      %v1097 = vunpack.c.l.b16 %v894
      %v1098 = vunpack.c.l.b16 %v895
      %v1099 = vunpack.c.l.b16 %v896
      %v1100 = vunpack.c.l.b16 %v897
      %v1101 = vunpack.c.l.b16 %v898
      %v1102 = vunpack.c.l.b16 %v899
      %v1103 = vunpack.c.l.b16 %v900
      %v1104 = vunpack.c.l.b16 %v901
      %v1105 = vunpack.c.l.b16 %v902
      %v1106 = vunpack.c.l.b16 %v903
      %v1107 = vunpack.c.l.b16 %v904
      %v1108 = vunpack.c.l.b16 %v905
      %v1109 = vunpack.c.l.b16 %v906
      %v1110 = vunpack.c.l.b16 %v907
      %v1111 = vunpack.c.l.b16 %v908
      %v1112 = vunpack.c.l.b16 %v909
      %v1113 = vunpack.c.l.b16 %v910
      %v1114 = vunpack.c.l.b16 %v911
      %v1115 = vunpack.c.l.b16 %v912
      %v1116 = vunpack.c.l.b16 %v913
      %v1117 = vunpack.c.l.b16 %v914
      %v1118 = vunpack.c.l.b16 %v915
      %v1119 = vunpack.c.l.b16 %v916
      %v1120 = vunpack.c.l.b16 %v917
      %v1121 = vunpack.c.l.b16 %v918
      %v1122 = vunpack.c.l.b16 %v919
      %v1123 = vunpack.c.l.b16 %v920
      %v1124 = vunpack.c.l.b16 %v921
      %v1125 = vunpack.c.l.b16 %v922
      %v1126 = vunpack.c.l.b16 %v923
      %v1127 = vunpack.c.l.b16 %v924
      %v1128 = vunpack.c.l.b16 %v925
      %v1129 = vunpack.c.l.b16 %v926
      %v1130 = vunpack.c.l.b16 %v927
      %v1131 = vunpack.c.l.b16 %v928
      %v1132 = vunpack.c.l.b16 %v929
      %v1133 = vunpack.c.l.b16 %v930
      %v1134 = vunpack.c.l.b16 %v931
      %v1135 = vpack.c.b16 %v1038, %v1037
      %v1136 = vpack.c.b16 %v1040, %v1039
      %v1137 = vpack.c.b16 %v1042, %v1041
      %v1138 = vpack.c.b16 %v1044, %v1043
      %v1139 = vpack.c.b16 %v1046, %v1045
      %v1140 = vpack.c.b16 %v1048, %v1047
      %v1141 = vpack.c.b16 %v1050, %v1049
      %v1142 = vpack.c.b16 %v1052, %v1051
      %v1143 = vpack.c.b16 %v1054, %v1053
      %v1144 = vpack.c.b16 %v1056, %v1055
      %v1145 = vpack.c.b16 %v1058, %v1057
      %v1146 = vpack.c.b16 %v1060, %v1059
      %v1147 = vpack.c.b16 %v1062, %v1061
      %v1148 = vpack.c.b16 %v1064, %v1063
      %v1149 = vpack.c.b16 %v1066, %v1065
      %v1150 = vpack.c.b16 %v1068, %v1067
      %v1151 = vpack.c.b16 %v1070, %v1069
      %v1152 = vpack.c.b16 %v1072, %v1071
      %v1153 = vpack.c.b16 %v1074, %v1073
      %v1154 = vpack.c.b16 %v1076, %v1075
      %v1155 = vpack.c.b16 %v1078, %v1077
      %v1156 = vpack.c.b16 %v1080, %v1079
      %v1157 = vpack.c.b16 %v1082, %v1081
      %v1158 = vpack.c.b16 %v1084, %v1083
      %v1159 = vpack.c.b16 %v1086, %v1085
      %v1160 = vpack.c.b16 %v1088, %v1087
      %v1161 = vpack.c.b16 %v1090, %v1089
      %v1162 = vpack.c.b16 %v1092, %v1091
      %v1163 = vpack.c.b16 %v1094, %v1093
      %v1164 = vpack.c.b16 %v1096, %v1095
      %v1165 = vpack.c.b16 %v1098, %v1097
      %v1166 = vpack.c.b16 %v1100, %v1099
      %v1167 = vpack.c.b16 %v1102, %v1101
      %v1168 = vpack.c.b16 %v1104, %v1103
      %v1169 = vpack.c.b16 %v1106, %v1105
      %v1170 = vpack.c.b16 %v1108, %v1107
      %v1171 = vpack.c.b16 %v1110, %v1109
      %v1172 = vpack.c.b16 %v1112, %v1111
      %v1173 = vpack.c.b16 %v1114, %v1113
      %v1174 = vpack.c.b16 %v1116, %v1115
      %v1175 = vpack.c.b16 %v1118, %v1117
      %v1176 = vpack.c.b16 %v1120, %v1119
      %v1177 = vpack.c.b16 %v1122, %v1121
      %v1178 = vpack.c.b16 %v1124, %v1123
      %v1179 = vpack.c.b16 %v1126, %v1125
      %v1180 = vpack.c.b16 %v1128, %v1127
      %v1181 = vpack.c.b16 %v1130, %v1129
      %v1182 = vpack.c.b16 %v1132, %v1131
      %v1183 = vpack.c.b16 %v1134, %v1133
      %vm1233 = vcmask 130048
      %v1235 = vsel %vm1233, %v784, 0
      %v1238 = vsel %vm1233, %v791, 0
      %v1241 = vsel %vm1233, %v798, 0
      %v1244 = vsel %vm1233, %v805, 0
      %v1247 = vsel %vm1233, %v812, 0
      %v1250 = vsel %vm1233, %v819, 0
      %v1253 = vsel %vm1233, %v826, 0
      %v1256 = vsel %vm1233, %v833, 0
      %1258 = vmatprep.subr.bf16.mxu0 0
      %1259 = vmatpush1.bf16.msra.mxu0 %v1135
      %1260 = vmatprep.subr.bf16.mxu0 0
      %1261 = vmatpush1.bf16.msra.mxu0 %v1136
      %1262 = vmatprep.subr.bf16.mxu0 0
      %1263 = vmatpush1.bf16.msra.mxu0 %v1137
      %1264 = vmatprep.subr.bf16.mxu0 0
      %1265 = vmatpush1.bf16.msra.mxu0 %v1138
      %1266 = vmatprep.subr.bf16.mxu0 0
      %1267 = vmatpush1.bf16.msra.mxu0 %v1139
      %1268 = vmatprep.subr.bf16.mxu0 0
      %1269 = vmatpush1.bf16.msra.mxu0 %v1140
      %1270 = vmatprep.subr.bf16.mxu0 0
      %1271 = vmatpush1.bf16.msra.mxu0 %v1141
      %1272 = vmatprep.subr.bf16.mxu0 0
      %1273 = vmatpush1.bf16.msra.mxu0 %v1142
      %1274 = vmatprep.subr.bf16.mxu0 0
      %1275 = vmatpush1.bf16.msra.mxu0 %v1143
      %1276 = vmatprep.subr.bf16.mxu0 0
      %1277 = vmatpush1.bf16.msra.mxu0 %v1144
      %1278 = vmatprep.subr.bf16.mxu0 0
      %1279 = vmatpush1.bf16.msra.mxu0 %v1145
      %1280 = vmatprep.subr.bf16.mxu0 0
      %1281 = vmatpush1.bf16.msra.mxu0 %v1146
      %1282 = vmatprep.subr.bf16.mxu0 0
      %1283 = vmatpush1.bf16.msra.mxu0 %v1147
      %1284 = vmatprep.subr.bf16.mxu0 0
      %1285 = vmatpush1.bf16.msra.mxu0 %v1148
      %1286 = vmatprep.subr.bf16.mxu0 0
      %1287 = vmatpush1.bf16.msra.mxu0 %v1149
      %1288 = vmatprep.subr.bf16.mxu0 0
      %1289 = vmatpush1.bf16.msra.mxu0 %v1150
      %1290 = vmatprep.mubr.bf16.mxu0 %v779
      %1291 = vmatmul.mubr.bf16.gmra.mrb[0].mxu0 %v778
      %v1292 = vpop.f32.mrb[0].mxu0
      %v1293 = vadd.f32 %v937, %v1292
      %v1294 = vpop.f32.mrb[0].mxu0
      %v1295 = vpop.f32.mrb[0].mxu0
      %v1296 = vadd.f32 %v937, %v1295
      %v1297 = vpop.f32.mrb[0].mxu0
      %1298 = vmatprep.mubr.bf16.mxu0 %v786
      %1299 = vmatmul.mubr.bf16.gmra.mrb[0].mxu0 %v785
      %v1300 = vpop.f32.mrb[0].mxu0
      %v1301 = vadd.f32 %v937, %v1300
      %v1302 = vpop.f32.mrb[0].mxu0
      %v1303 = vpop.f32.mrb[0].mxu0
      %v1304 = vadd.f32 %v937, %v1303
      %v1305 = vpop.f32.mrb[0].mxu0
      %1306 = vmatprep.mubr.bf16.mxu0 %v793
      %1307 = vmatmul.mubr.bf16.gmra.mrb[0].mxu0 %v792
      %v1308 = vpop.f32.mrb[0].mxu0
      %v1309 = vadd.f32 %v937, %v1308
      %v1310 = vpop.f32.mrb[0].mxu0
      %v1311 = vpop.f32.mrb[0].mxu0
      %v1312 = vadd.f32 %v937, %v1311
      %v1313 = vpop.f32.mrb[0].mxu0
      %1314 = vmatprep.mubr.bf16.mxu0 %v800
      %1315 = vmatmul.mubr.bf16.gmra.mrb[0].mxu0 %v799
      %v1316 = vpop.f32.mrb[0].mxu0
      %v1317 = vadd.f32 %v937, %v1316
      %v1318 = vpop.f32.mrb[0].mxu0
      %v1319 = vpop.f32.mrb[0].mxu0
      %v1320 = vadd.f32 %v937, %v1319
      %v1321 = vpop.f32.mrb[0].mxu0
      %1322 = vmatprep.mubr.bf16.mxu0 %v807
      %1323 = vmatmul.mubr.bf16.gmra.mrb[0].mxu0 %v806
      %v1324 = vpop.f32.mrb[0].mxu0
      %v1325 = vadd.f32 %v937, %v1324
      %v1326 = vpop.f32.mrb[0].mxu0
      %v1327 = vpop.f32.mrb[0].mxu0
      %v1328 = vadd.f32 %v937, %v1327
      %v1329 = vpop.f32.mrb[0].mxu0
      %1330 = vmatprep.mubr.bf16.mxu0 %v814
      %1331 = vmatmul.mubr.bf16.gmra.mrb[0].mxu0 %v813
      %v1332 = vpop.f32.mrb[0].mxu0
      %v1333 = vadd.f32 %v937, %v1332
      %v1334 = vpop.f32.mrb[0].mxu0
      %v1335 = vpop.f32.mrb[0].mxu0
      %v1336 = vadd.f32 %v937, %v1335
      %v1337 = vpop.f32.mrb[0].mxu0
      %1338 = vmatprep.mubr.bf16.mxu0 %v821
      %1339 = vmatmul.mubr.bf16.gmra.mrb[0].mxu0 %v820
      %v1340 = vpop.f32.mrb[0].mxu0
      %v1341 = vadd.f32 %v937, %v1340
      %v1342 = vpop.f32.mrb[0].mxu0
      %v1343 = vpop.f32.mrb[0].mxu0
      %v1344 = vadd.f32 %v937, %v1343
      %v1345 = vpop.f32.mrb[0].mxu0
      %1346 = vmatprep.mubr.bf16.mxu0 %v828
      %1347 = vmatmul.mubr.bf16.gmra.mrb[0].mxu0 %v827
      %v1348 = vpop.f32.mrb[0].mxu0
      %v1349 = vadd.f32 %v937, %v1348
      %v1350 = vpop.f32.mrb[0].mxu0
      %v1351 = vpop.f32.mrb[0].mxu0
      %v1352 = vadd.f32 %v937, %v1351
      %v1353 = vpop.f32.mrb[0].mxu0
      %1354 = vdwg.mxu0
      %1355 = vmatprep.subr.bf16.mxu0 0
      %1356 = vmatpush1.bf16.msra.mxu0 %v1151
      %1357 = vmatprep.subr.bf16.mxu0 0
      %1358 = vmatpush1.bf16.msra.mxu0 %v1152
      %1359 = vmatprep.subr.bf16.mxu0 0
      %1360 = vmatpush1.bf16.msra.mxu0 %v1153
      %1361 = vmatprep.subr.bf16.mxu0 0
      %1362 = vmatpush1.bf16.msra.mxu0 %v1154
      %1363 = vmatprep.subr.bf16.mxu0 0
      %1364 = vmatpush1.bf16.msra.mxu0 %v1155
      %1365 = vmatprep.subr.bf16.mxu0 0
      %1366 = vmatpush1.bf16.msra.mxu0 %v1156
      %1367 = vmatprep.subr.bf16.mxu0 0
      %1368 = vmatpush1.bf16.msra.mxu0 %v1157
      %1369 = vmatprep.subr.bf16.mxu0 0
      %1370 = vmatpush1.bf16.msra.mxu0 %v1158
      %1371 = vmatprep.subr.bf16.mxu0 0
      %1372 = vmatpush1.bf16.msra.mxu0 %v1159
      %1373 = vmatprep.subr.bf16.mxu0 0
      %1374 = vmatpush1.bf16.msra.mxu0 %v1160
      %1375 = vmatprep.subr.bf16.mxu0 0
      %1376 = vmatpush1.bf16.msra.mxu0 %v1161
      %1377 = vmatprep.subr.bf16.mxu0 0
      %1378 = vmatpush1.bf16.msra.mxu0 %v1162
      %1379 = vmatprep.subr.bf16.mxu0 0
      %1380 = vmatpush1.bf16.msra.mxu0 %v1163
      %1381 = vmatprep.subr.bf16.mxu0 0
      %1382 = vmatpush1.bf16.msra.mxu0 %v1164
      %1383 = vmatprep.subr.bf16.mxu0 0
      %1384 = vmatpush1.bf16.msra.mxu0 %v1165
      %1385 = vmatprep.subr.bf16.mxu0 0
      %1386 = vmatpush1.bf16.msra.mxu0 %v1166
      %1387 = vmatprep.mubr.bf16.mxu0 %v781
      %1388 = vmatmul.mubr.bf16.gmra.mrb[0].mxu0 %v780
      %v1389 = vpop.f32.mrb[0].mxu0
      %v1390 = vadd.f32 %v1293, %v1389
      %v1391 = vpop.f32.mrb[0].mxu0
      %v1392 = vpop.f32.mrb[0].mxu0
      %v1393 = vadd.f32 %v1296, %v1392
      %v1394 = vpop.f32.mrb[0].mxu0
      %1395 = vmatprep.mubr.bf16.mxu0 %v788
      %1396 = vmatmul.mubr.bf16.gmra.mrb[0].mxu0 %v787
      %v1397 = vpop.f32.mrb[0].mxu0
      %v1398 = vadd.f32 %v1301, %v1397
      %v1399 = vpop.f32.mrb[0].mxu0
      %v1400 = vpop.f32.mrb[0].mxu0
      %v1401 = vadd.f32 %v1304, %v1400
      %v1402 = vpop.f32.mrb[0].mxu0
      %1403 = vmatprep.mubr.bf16.mxu0 %v795
      %1404 = vmatmul.mubr.bf16.gmra.mrb[0].mxu0 %v794
      %v1405 = vpop.f32.mrb[0].mxu0
      %v1406 = vadd.f32 %v1309, %v1405
      %v1407 = vpop.f32.mrb[0].mxu0
      %v1408 = vpop.f32.mrb[0].mxu0
      %v1409 = vadd.f32 %v1312, %v1408
      %v1410 = vpop.f32.mrb[0].mxu0
      %1411 = vmatprep.mubr.bf16.mxu0 %v802
      %1412 = vmatmul.mubr.bf16.gmra.mrb[0].mxu0 %v801
      %v1413 = vpop.f32.mrb[0].mxu0
      %v1414 = vadd.f32 %v1317, %v1413
      %v1415 = vpop.f32.mrb[0].mxu0
      %v1416 = vpop.f32.mrb[0].mxu0
      %v1417 = vadd.f32 %v1320, %v1416
      %v1418 = vpop.f32.mrb[0].mxu0
      %1419 = vmatprep.mubr.bf16.mxu0 %v809
      %1420 = vmatmul.mubr.bf16.gmra.mrb[0].mxu0 %v808
      %v1421 = vpop.f32.mrb[0].mxu0
      %v1422 = vadd.f32 %v1325, %v1421
      %v1423 = vpop.f32.mrb[0].mxu0
      %v1424 = vpop.f32.mrb[0].mxu0
      %v1425 = vadd.f32 %v1328, %v1424
      %v1426 = vpop.f32.mrb[0].mxu0
      %1427 = vmatprep.mubr.bf16.mxu0 %v816
      %1428 = vmatmul.mubr.bf16.gmra.mrb[0].mxu0 %v815
      %v1429 = vpop.f32.mrb[0].mxu0
      %v1430 = vadd.f32 %v1333, %v1429
      %v1431 = vpop.f32.mrb[0].mxu0
      %v1432 = vpop.f32.mrb[0].mxu0
      %v1433 = vadd.f32 %v1336, %v1432
      %v1434 = vpop.f32.mrb[0].mxu0
      %1435 = vmatprep.mubr.bf16.mxu0 %v823
      %1436 = vmatmul.mubr.bf16.gmra.mrb[0].mxu0 %v822
      %v1437 = vpop.f32.mrb[0].mxu0
      %v1438 = vadd.f32 %v1341, %v1437
      %v1439 = vpop.f32.mrb[0].mxu0
      %v1440 = vpop.f32.mrb[0].mxu0
      %v1441 = vadd.f32 %v1344, %v1440
      %v1442 = vpop.f32.mrb[0].mxu0
      %1443 = vmatprep.mubr.bf16.mxu0 %v830
      %1444 = vmatmul.mubr.bf16.gmra.mrb[0].mxu0 %v829
      %v1445 = vpop.f32.mrb[0].mxu0
      %v1446 = vadd.f32 %v1349, %v1445
      %v1447 = vpop.f32.mrb[0].mxu0
      %v1448 = vpop.f32.mrb[0].mxu0
      %v1449 = vadd.f32 %v1352, %v1448
      %v1450 = vpop.f32.mrb[0].mxu0
      %1451 = vdwg.mxu0
      %1452 = vmatprep.subr.bf16.mxu0 0
      %1453 = vmatpush1.bf16.msra.mxu0 %v1167
      %1454 = vmatprep.subr.bf16.mxu0 0
      %1455 = vmatpush1.bf16.msra.mxu0 %v1168
      %1456 = vmatprep.subr.bf16.mxu0 0
      %1457 = vmatpush1.bf16.msra.mxu0 %v1169
      %1458 = vmatprep.subr.bf16.mxu0 0
      %1459 = vmatpush1.bf16.msra.mxu0 %v1170
      %1460 = vmatprep.subr.bf16.mxu0 0
      %1461 = vmatpush1.bf16.msra.mxu0 %v1171
      %1462 = vmatprep.subr.bf16.mxu0 0
      %1463 = vmatpush1.bf16.msra.mxu0 %v1172
      %1464 = vmatprep.subr.bf16.mxu0 0
      %1465 = vmatpush1.bf16.msra.mxu0 %v1173
      %1466 = vmatprep.subr.bf16.mxu0 0
      %1467 = vmatpush1.bf16.msra.mxu0 %v1174
      %1468 = vmatprep.subr.bf16.mxu0 0
      %1469 = vmatpush1.bf16.msra.mxu0 %v1175
      %1470 = vmatprep.subr.bf16.mxu0 0
      %1471 = vmatpush1.bf16.msra.mxu0 %v1176
      %1472 = vmatprep.subr.bf16.mxu0 0
      %1473 = vmatpush1.bf16.msra.mxu0 %v1177
      %1474 = vmatprep.subr.bf16.mxu0 0
      %1475 = vmatpush1.bf16.msra.mxu0 %v1178
      %1476 = vmatprep.subr.bf16.mxu0 0
      %1477 = vmatpush1.bf16.msra.mxu0 %v1179
      %1478 = vmatprep.subr.bf16.mxu0 0
      %1479 = vmatpush1.bf16.msra.mxu0 %v1180
      %1480 = vmatprep.subr.bf16.mxu0 0
      %1481 = vmatpush1.bf16.msra.mxu0 %v1181
      %1482 = vmatprep.subr.bf16.mxu0 0
      %1483 = vmatpush1.bf16.msra.mxu0 %v1182
      %1484 = vmatprep.mubr.bf16.mxu0 %v783
      %1485 = vmatmul.mubr.bf16.gmra.mrb[0].mxu0 %v782
      %v1486 = vpop.f32.mrb[0].mxu0
      %v1487 = vadd.f32 %v1390, %v1486
      %v1488 = vpop.f32.mrb[0].mxu0
      %v1489 = vpop.f32.mrb[0].mxu0
      %v1490 = vadd.f32 %v1393, %v1489
      %v1491 = vpop.f32.mrb[0].mxu0
      %1492 = vmatprep.mubr.bf16.mxu0 %v790
      %1493 = vmatmul.mubr.bf16.gmra.mrb[0].mxu0 %v789
      %v1494 = vpop.f32.mrb[0].mxu0
      %v1495 = vadd.f32 %v1398, %v1494
      %v1496 = vpop.f32.mrb[0].mxu0
      %v1497 = vpop.f32.mrb[0].mxu0
      %v1498 = vadd.f32 %v1401, %v1497
      %v1499 = vpop.f32.mrb[0].mxu0
      %1500 = vmatprep.mubr.bf16.mxu0 %v797
      %1501 = vmatmul.mubr.bf16.gmra.mrb[0].mxu0 %v796
      %v1502 = vpop.f32.mrb[0].mxu0
      %v1503 = vadd.f32 %v1406, %v1502
      %v1504 = vpop.f32.mrb[0].mxu0
      %v1505 = vpop.f32.mrb[0].mxu0
      %v1506 = vadd.f32 %v1409, %v1505
      %v1507 = vpop.f32.mrb[0].mxu0
      %1508 = vmatprep.mubr.bf16.mxu0 %v804
      %1509 = vmatmul.mubr.bf16.gmra.mrb[0].mxu0 %v803
      %v1510 = vpop.f32.mrb[0].mxu0
      %v1511 = vadd.f32 %v1414, %v1510
      %v1512 = vpop.f32.mrb[0].mxu0
      %v1513 = vpop.f32.mrb[0].mxu0
      %v1514 = vadd.f32 %v1417, %v1513
      %v1515 = vpop.f32.mrb[0].mxu0
      %1516 = vmatprep.mubr.bf16.mxu0 %v811
      %1517 = vmatmul.mubr.bf16.gmra.mrb[0].mxu0 %v810
      %v1518 = vpop.f32.mrb[0].mxu0
      %v1519 = vadd.f32 %v1422, %v1518
      %v1520 = vpop.f32.mrb[0].mxu0
      %v1521 = vpop.f32.mrb[0].mxu0
      %v1522 = vadd.f32 %v1425, %v1521
      %v1523 = vpop.f32.mrb[0].mxu0
      %1524 = vmatprep.mubr.bf16.mxu0 %v818
      %1525 = vmatmul.mubr.bf16.gmra.mrb[0].mxu0 %v817
      %v1526 = vpop.f32.mrb[0].mxu0
      %v1527 = vadd.f32 %v1430, %v1526
      %v1528 = vpop.f32.mrb[0].mxu0
      %v1529 = vpop.f32.mrb[0].mxu0
      %v1530 = vadd.f32 %v1433, %v1529
      %v1531 = vpop.f32.mrb[0].mxu0
      %1532 = vmatprep.mubr.bf16.mxu0 %v825
      %1533 = vmatmul.mubr.bf16.gmra.mrb[0].mxu0 %v824
      %v1534 = vpop.f32.mrb[0].mxu0
      %v1535 = vadd.f32 %v1438, %v1534
      %v1536 = vpop.f32.mrb[0].mxu0
      %v1537 = vpop.f32.mrb[0].mxu0
      %v1538 = vadd.f32 %v1441, %v1537
      %v1539 = vpop.f32.mrb[0].mxu0
      %1540 = vmatprep.mubr.bf16.mxu0 %v832
      %1541 = vmatmul.mubr.bf16.gmra.mrb[0].mxu0 %v831
      %v1542 = vpop.f32.mrb[0].mxu0
      %v1543 = vadd.f32 %v1446, %v1542
      %v1544 = vpop.f32.mrb[0].mxu0
      %v1545 = vpop.f32.mrb[0].mxu0
      %v1546 = vadd.f32 %v1449, %v1545
      %v1547 = vpop.f32.mrb[0].mxu0
      %1548 = vdwg.mxu0
      %1549 = vmatprep.subr.bf16.mxu0 0
      %1550 = vmatpush1.bf16.msra.mxu0 %v1183
      %1551 = vmatprep.subr.bf16.mxu0 0
      %1552 = vmatpush1.bf16.msra.mxu0 0
      %1553 = vmatprep.subr.bf16.mxu0 0
      %1554 = vmatpush1.bf16.msra.mxu0 0
      %1555 = vmatprep.subr.bf16.mxu0 0
      %1556 = vmatpush1.bf16.msra.mxu0 0
      %1557 = vmatprep.subr.bf16.mxu0 0
      %1558 = vmatpush1.bf16.msra.mxu0 0
      %1559 = vmatprep.subr.bf16.mxu0 0
      %1560 = vmatpush1.bf16.msra.mxu0 0
      %1561 = vmatprep.subr.bf16.mxu0 0
      %1562 = vmatpush1.bf16.msra.mxu0 0
      %1563 = vmatprep.subr.bf16.mxu0 0
      %1564 = vmatpush1.bf16.msra.mxu0 0
      %1565 = vmatprep.subr.bf16.mxu0 0
      %1566 = vmatpush1.bf16.msra.mxu0 0
      %1567 = vmatprep.subr.bf16.mxu0 0
      %1568 = vmatpush1.bf16.msra.mxu0 0
      %1569 = vmatprep.subr.bf16.mxu0 0
      %1570 = vmatpush1.bf16.msra.mxu0 0
      %1571 = vmatprep.subr.bf16.mxu0 0
      %1572 = vmatpush1.bf16.msra.mxu0 0
      %1573 = vmatprep.subr.bf16.mxu0 0
      %1574 = vmatpush1.bf16.msra.mxu0 0
      %1575 = vmatprep.subr.bf16.mxu0 0
      %1576 = vmatpush1.bf16.msra.mxu0 0
      %1577 = vmatprep.subr.bf16.mxu0 0
      %1578 = vmatpush1.bf16.msra.mxu0 0
      %1579 = vmatprep.subr.bf16.mxu0 0
      %1580 = vmatpush1.bf16.msra.mxu0 0
      %1581 = vmatprep.mubr.bf16.mxu0 0
      %1582 = vmatmul.mubr.bf16.gmra.mrb[0].mxu0 %v1235
      %v1583 = vpop.f32.mrb[0].mxu0
      %v1584 = vadd.f32 %v1487, %v1583
      %v1585 = vpop.f32.mrb[0].mxu0
      %v1586 = vpop.f32.mrb[0].mxu0
      %v1587 = vadd.f32 %v1490, %v1586
      %v1588 = vpop.f32.mrb[0].mxu0
      %1589 = vmatprep.mubr.bf16.mxu0 0
      %1590 = vmatmul.mubr.bf16.gmra.mrb[0].mxu0 %v1238
      %v1591 = vpop.f32.mrb[0].mxu0
      %v1592 = vadd.f32 %v1495, %v1591
      %v1593 = vpop.f32.mrb[0].mxu0
      %v1594 = vpop.f32.mrb[0].mxu0
      %v1595 = vadd.f32 %v1498, %v1594
      %v1596 = vpop.f32.mrb[0].mxu0
      %1597 = vmatprep.mubr.bf16.mxu0 0
      %1598 = vmatmul.mubr.bf16.gmra.mrb[0].mxu0 %v1241
      %v1599 = vpop.f32.mrb[0].mxu0
      %v1600 = vadd.f32 %v1503, %v1599
      %v1601 = vpop.f32.mrb[0].mxu0
      %v1602 = vpop.f32.mrb[0].mxu0
      %v1603 = vadd.f32 %v1506, %v1602
      %v1604 = vpop.f32.mrb[0].mxu0
      %1605 = vmatprep.mubr.bf16.mxu0 0
      %1606 = vmatmul.mubr.bf16.gmra.mrb[0].mxu0 %v1244
      %v1607 = vpop.f32.mrb[0].mxu0
      %v1608 = vadd.f32 %v1511, %v1607
      %v1609 = vpop.f32.mrb[0].mxu0
      %v1610 = vpop.f32.mrb[0].mxu0
      %v1611 = vadd.f32 %v1514, %v1610
      %v1612 = vpop.f32.mrb[0].mxu0
      %1613 = vmatprep.mubr.bf16.mxu0 0
      %1614 = vmatmul.mubr.bf16.gmra.mrb[0].mxu0 %v1247
      %v1615 = vpop.f32.mrb[0].mxu0
      %v1616 = vadd.f32 %v1519, %v1615
      %v1617 = vpop.f32.mrb[0].mxu0
      %v1618 = vpop.f32.mrb[0].mxu0
      %v1619 = vadd.f32 %v1522, %v1618
      %v1620 = vpop.f32.mrb[0].mxu0
      %1621 = vmatprep.mubr.bf16.mxu0 0
      %1622 = vmatmul.mubr.bf16.gmra.mrb[0].mxu0 %v1250
      %v1623 = vpop.f32.mrb[0].mxu0
      %v1624 = vadd.f32 %v1527, %v1623
      %v1625 = vpop.f32.mrb[0].mxu0
      %v1626 = vpop.f32.mrb[0].mxu0
      %v1627 = vadd.f32 %v1530, %v1626
      %v1628 = vpop.f32.mrb[0].mxu0
      %1629 = vmatprep.mubr.bf16.mxu0 0
      %1630 = vmatmul.mubr.bf16.gmra.mrb[0].mxu0 %v1253
      %v1631 = vpop.f32.mrb[0].mxu0
      %v1632 = vadd.f32 %v1535, %v1631
      %v1633 = vpop.f32.mrb[0].mxu0
      %v1634 = vpop.f32.mrb[0].mxu0
      %v1635 = vadd.f32 %v1538, %v1634
      %v1636 = vpop.f32.mrb[0].mxu0
      %1637 = vmatprep.mubr.bf16.mxu0 0
      %1638 = vmatmul.mubr.bf16.gmra.mrb[0].mxu0 %v1256
      %v1639 = vpop.f32.mrb[0].mxu0
      %v1640 = vadd.f32 %v1543, %v1639
      %v1641 = vpop.f32.mrb[0].mxu0
      %v1642 = vpop.f32.mrb[0].mxu0
      %v1643 = vadd.f32 %v1546, %v1642
      %v1644 = vpop.f32.mrb[0].mxu0
      %1645 = vdwg.mxu0
      %v1646 = vmax.f32 %v1584, 0.0
      %v1647 = vmax.f32 %v1587, 0.0
      %v1648 = vmax.f32 %v1592, 0.0
      %v1649 = vmax.f32 %v1595, 0.0
      %v1650 = vmax.f32 %v1600, 0.0
      %v1651 = vmax.f32 %v1603, 0.0
      %v1652 = vmax.f32 %v1608, 0.0
      %v1653 = vmax.f32 %v1611, 0.0
      %v1654 = vmax.f32 %v1616, 0.0
      %v1655 = vmax.f32 %v1619, 0.0
      %v1656 = vmax.f32 %v1624, 0.0
      %v1657 = vmax.f32 %v1627, 0.0
      %v1658 = vmax.f32 %v1632, 0.0
      %v1659 = vmax.f32 %v1635, 0.0
      %v1660 = vmax.f32 %v1640, 0.0
      %v1661 = vmax.f32 %v1643, 0.0
      %v1662 = vpack.c.bf16 %v1647, %v1646
      %v1663 = vpack.c.bf16 %v1649, %v1648
      %v1664 = vpack.c.bf16 %v1651, %v1650
      %v1665 = vpack.c.bf16 %v1653, %v1652
      %v1666 = vpack.c.bf16 %v1655, %v1654
      %v1667 = vpack.c.bf16 %v1657, %v1656
      %v1668 = vpack.c.bf16 %v1659, %v1658
      %v1669 = vpack.c.bf16 %v1661, %v1660
      %v1670 = vld [vmem:[%s2] sm:$0xf]
      %v1671 = vld [vmem:[%s2 + $0x4] sm:$0xf]
      %v1672 = vld [vmem:[%s2 + $0x8] sm:$0xf]
      %v1673 = vld [vmem:[%s2 + $0xc] sm:$0xf]
      %v1674 = vld [vmem:[%s2 + $0x10] sm:$0xf]
      %v1675 = vld [vmem:[%s2 + $0x14] sm:$0xf]
      %v1676 = vld [vmem:[%s2 + $0x18] sm:$0xf]
      %v1677 = vld [vmem:[%s2 + $0x1c] sm:$0xf]
      %v1678 = vld [vmem:[%s2 + $0x20] sm:$0xf]
      %v1679 = vld [vmem:[%s2 + $0x24] sm:$0xf]
      %v1680 = vld [vmem:[%s2 + $0x28] sm:$0xf]
      %v1681 = vld [vmem:[%s2 + $0x2c] sm:$0xf]
      %v1682 = vld [vmem:[%s2 + $0x30] sm:$0xf]
      %v1683 = vld [vmem:[%s2 + $0x34] sm:$0xf]
      %v1684 = vld [vmem:[%s2 + $0x38] sm:$0xf]
      %v1685 = vld [vmem:[%s2 + $0x3c] sm:$0xf]
      %v1686 = vld [vmem:[%s12] sm:$0x1]
      %v1688 = vlaneseq
      %v1689 = vshrl.u32 %v1688, 7
      %v1690 = vsub.s32 0, %v1689
      %v1691 = vrot.slane %v1686, %v1690
      %v1709 = vunpack.c.l.b16 %v1670
      %v1710 = vunpack.c.l.b16 %v1671
      %v1711 = vunpack.c.l.b16 %v1672
      %v1712 = vunpack.c.l.b16 %v1673
      %v1713 = vunpack.c.l.b16 %v1674
      %v1714 = vunpack.c.l.b16 %v1675
      %v1715 = vunpack.c.l.b16 %v1676
      %v1716 = vunpack.c.l.b16 %v1677
      %v1717 = vunpack.c.l.b16 %v1678
      %v1718 = vunpack.c.l.b16 %v1679
      %v1719 = vunpack.c.l.b16 %v1680
      %v1720 = vunpack.c.l.b16 %v1681
      %v1721 = vunpack.c.l.b16 %v1682
      %v1722 = vunpack.c.l.b16 %v1683
      %v1723 = vunpack.c.l.b16 %v1684
      %v1724 = vunpack.c.l.b16 %v1685
      %v1725 = vpack.c.b16 %v1710, %v1709
      %v1726 = vpack.c.b16 %v1712, %v1711
      %v1727 = vpack.c.b16 %v1714, %v1713
      %v1728 = vpack.c.b16 %v1716, %v1715
      %v1729 = vpack.c.b16 %v1718, %v1717
      %v1730 = vpack.c.b16 %v1720, %v1719
      %v1731 = vpack.c.b16 %v1722, %v1721
      %v1732 = vpack.c.b16 %v1724, %v1723
      %1741 = vmatprep.subr.bf16.mxu0 0
      %1742 = vmatpush1.bf16.msra.mxu0 %v1725
      %1743 = vmatprep.subr.bf16.mxu0 0
      %1744 = vmatpush1.bf16.msra.mxu0 %v1726
      %1745 = vmatprep.subr.bf16.mxu0 0
      %1746 = vmatpush1.bf16.msra.mxu0 %v1727
      %1747 = vmatprep.subr.bf16.mxu0 0
      %1748 = vmatpush1.bf16.msra.mxu0 %v1728
      %1749 = vmatprep.subr.bf16.mxu0 0
      %1750 = vmatpush1.bf16.msra.mxu0 %v1729
      %1751 = vmatprep.subr.bf16.mxu0 0
      %1752 = vmatpush1.bf16.msra.mxu0 %v1730
      %1753 = vmatprep.subr.bf16.mxu0 0
      %1754 = vmatpush1.bf16.msra.mxu0 %v1731
      %1755 = vmatprep.subr.bf16.mxu0 0
      %1756 = vmatpush1.bf16.msra.mxu0 %v1732
      %1757 = vmatprep.subr.bf16.mxu0 0
      %1758 = vmatpush1.bf16.msra.mxu0 0
      %1759 = vmatprep.subr.bf16.mxu0 0
      %1760 = vmatpush1.bf16.msra.mxu0 0
      %1761 = vmatprep.subr.bf16.mxu0 0
      %1762 = vmatpush1.bf16.msra.mxu0 0
      %1763 = vmatprep.subr.bf16.mxu0 0
      %1764 = vmatpush1.bf16.msra.mxu0 0
      %1765 = vmatprep.subr.bf16.mxu0 0
      %1766 = vmatpush1.bf16.msra.mxu0 0
      %1767 = vmatprep.subr.bf16.mxu0 0
      %1768 = vmatpush1.bf16.msra.mxu0 0
      %1769 = vmatprep.subr.bf16.mxu0 0
      %1770 = vmatpush1.bf16.msra.mxu0 0
      %1771 = vmatprep.subr.bf16.mxu0 0
      %1772 = vmatpush1.bf16.msra.mxu0 0
      %1773 = vmatprep.mubr.bf16.mxu0 0
      %1774 = vmatmul.mubr.bf16.gmra.mrb[0].mxu0 %v1662
      %v1775 = vpop.f32.mrb[0].mxu0
      %v1776 = vadd.f32 %v1691, %v1775
      %v1777 = vpop.f32.mrb[0].mxu0
      %v1778 = vpop.f32.mrb[0].mxu0
      %v1779 = vadd.f32 %v1691, %v1778
      %v1780 = vpop.f32.mrb[0].mxu0
      %1781 = vmatprep.mubr.bf16.mxu0 0
      %1782 = vmatmul.mubr.bf16.gmra.mrb[0].mxu0 %v1663
      %v1783 = vpop.f32.mrb[0].mxu0
      %v1784 = vadd.f32 %v1691, %v1783
      %v1785 = vpop.f32.mrb[0].mxu0
      %v1786 = vpop.f32.mrb[0].mxu0
      %v1787 = vadd.f32 %v1691, %v1786
      %v1788 = vpop.f32.mrb[0].mxu0
      %1789 = vmatprep.mubr.bf16.mxu0 0
      %1790 = vmatmul.mubr.bf16.gmra.mrb[0].mxu0 %v1664
      %v1791 = vpop.f32.mrb[0].mxu0
      %v1792 = vadd.f32 %v1691, %v1791
      %v1793 = vpop.f32.mrb[0].mxu0
      %v1794 = vpop.f32.mrb[0].mxu0
      %v1795 = vadd.f32 %v1691, %v1794
      %v1796 = vpop.f32.mrb[0].mxu0
      %1797 = vmatprep.mubr.bf16.mxu0 0
      %1798 = vmatmul.mubr.bf16.gmra.mrb[0].mxu0 %v1665
      %v1799 = vpop.f32.mrb[0].mxu0
      %v1800 = vadd.f32 %v1691, %v1799
      %v1801 = vpop.f32.mrb[0].mxu0
      %v1802 = vpop.f32.mrb[0].mxu0
      %v1803 = vadd.f32 %v1691, %v1802
      %v1804 = vpop.f32.mrb[0].mxu0
      %1805 = vmatprep.mubr.bf16.mxu0 0
      %1806 = vmatmul.mubr.bf16.gmra.mrb[0].mxu0 %v1666
      %v1807 = vpop.f32.mrb[0].mxu0
      %v1808 = vadd.f32 %v1691, %v1807
      %v1809 = vpop.f32.mrb[0].mxu0
      %v1810 = vpop.f32.mrb[0].mxu0
      %v1811 = vadd.f32 %v1691, %v1810
      %v1812 = vpop.f32.mrb[0].mxu0
      %1813 = vmatprep.mubr.bf16.mxu0 0
      %1814 = vmatmul.mubr.bf16.gmra.mrb[0].mxu0 %v1667
      %v1815 = vpop.f32.mrb[0].mxu0
      %v1816 = vadd.f32 %v1691, %v1815
      %v1817 = vpop.f32.mrb[0].mxu0
      %v1818 = vpop.f32.mrb[0].mxu0
      %v1819 = vadd.f32 %v1691, %v1818
      %v1820 = vpop.f32.mrb[0].mxu0
      %1821 = vmatprep.mubr.bf16.mxu0 0
      %1822 = vmatmul.mubr.bf16.gmra.mrb[0].mxu0 %v1668
      %v1823 = vpop.f32.mrb[0].mxu0
      %v1824 = vadd.f32 %v1691, %v1823
      %v1825 = vpop.f32.mrb[0].mxu0
      %v1826 = vpop.f32.mrb[0].mxu0
      %v1827 = vadd.f32 %v1691, %v1826
      %v1828 = vpop.f32.mrb[0].mxu0
      %1829 = vmatprep.mubr.bf16.mxu0 0
      %1830 = vmatmul.mubr.bf16.gmra.mrb[0].mxu0 %v1669
      %v1831 = vpop.f32.mrb[0].mxu0
      %v1832 = vadd.f32 %v1691, %v1831
      %v1833 = vpop.f32.mrb[0].mxu0
      %v1834 = vpop.f32.mrb[0].mxu0
      %v1835 = vadd.f32 %v1691, %v1834
      %v1836 = vpop.f32.mrb[0].mxu0
      %1837 = vdwg.mxu0
      %v1838 = vmax.f32 %v1776, 0.0
      %v1839 = vmax.f32 %v1779, 0.0
      %v1840 = vmax.f32 %v1784, 0.0
      %v1841 = vmax.f32 %v1787, 0.0
      %v1842 = vmax.f32 %v1792, 0.0
      %v1843 = vmax.f32 %v1795, 0.0
      %v1844 = vmax.f32 %v1800, 0.0
      %v1845 = vmax.f32 %v1803, 0.0
      %v1846 = vmax.f32 %v1808, 0.0
      %v1847 = vmax.f32 %v1811, 0.0
      %v1848 = vmax.f32 %v1816, 0.0
      %v1849 = vmax.f32 %v1819, 0.0
      %v1850 = vmax.f32 %v1824, 0.0
      %v1851 = vmax.f32 %v1827, 0.0
      %v1852 = vmax.f32 %v1832, 0.0
      %v1853 = vmax.f32 %v1835, 0.0
      %v1854 = vpack.c.bf16 %v1839, %v1838
      %v1855 = vpack.c.bf16 %v1841, %v1840
      %v1856 = vpack.c.bf16 %v1843, %v1842
      %v1857 = vpack.c.bf16 %v1845, %v1844
      %v1858 = vpack.c.bf16 %v1847, %v1846
      %v1859 = vpack.c.bf16 %v1849, %v1848
      %v1860 = vpack.c.bf16 %v1851, %v1850
      %v1861 = vpack.c.bf16 %v1853, %v1852
      %v1862 = vld [vmem:[%s3] sm:$0xf]
      %v1863 = vld [vmem:[%s3 + $0x4] sm:$0xf]
      %v1864 = vld [vmem:[%s3 + $0x8] sm:$0xf]
      %v1865 = vld [vmem:[%s3 + $0xc] sm:$0xf]
      %v1866 = vld [vmem:[%s3 + $0x10] sm:$0xf]
      %v1867 = vld [vmem:[%s3 + $0x14] sm:$0xf]
      %v1868 = vld [vmem:[%s3 + $0x18] sm:$0xf]
      %v1869 = vld [vmem:[%s3 + $0x1c] sm:$0xf]
      %v1870 = vld [vmem:[%s13] sm:$0x1]
      %v1872 = vlaneseq
      %v1873 = vshrl.u32 %v1872, 7
      %v1874 = vsub.s32 0, %v1873
      %v1875 = vrot.slane %v1870, %v1874
      %v1885 = vunpack.c.l.b16 %v1862
      %v1886 = vunpack.c.l.b16 %v1863
      %v1887 = vunpack.c.l.b16 %v1864
      %v1888 = vunpack.c.l.b16 %v1865
      %v1889 = vunpack.c.l.b16 %v1866
      %v1890 = vunpack.c.l.b16 %v1867
      %v1891 = vunpack.c.l.b16 %v1868
      %v1892 = vunpack.c.l.b16 %v1869
      %v1893 = vpack.c.b16 %v1886, %v1885
      %v1894 = vpack.c.b16 %v1888, %v1887
      %v1895 = vpack.c.b16 %v1890, %v1889
      %v1896 = vpack.c.b16 %v1892, %v1891
      %vm1901 = vcmask 523264
      %v1903 = vsel %vm1901, %v1854, 0
      %v1906 = vsel %vm1901, %v1855, 0
      %v1909 = vsel %vm1901, %v1856, 0
      %v1912 = vsel %vm1901, %v1857, 0
      %v1915 = vsel %vm1901, %v1858, 0
      %v1918 = vsel %vm1901, %v1859, 0
      %v1921 = vsel %vm1901, %v1860, 0
      %v1924 = vsel %vm1901, %v1861, 0
      %1926 = vmatprep.subr.bf16.mxu0 0
      %1927 = vmatpush1.bf16.msra.mxu0 %v1893
      %1928 = vmatprep.subr.bf16.mxu0 0
      %1929 = vmatpush1.bf16.msra.mxu0 %v1894
      %1930 = vmatprep.subr.bf16.mxu0 0
      %1931 = vmatpush1.bf16.msra.mxu0 %v1895
      %1932 = vmatprep.subr.bf16.mxu0 0
      %1933 = vmatpush1.bf16.msra.mxu0 %v1896
      %1934 = vmatprep.subr.bf16.mxu0 0
      %1935 = vmatpush1.bf16.msra.mxu0 0
      %1936 = vmatprep.subr.bf16.mxu0 0
      %1937 = vmatpush1.bf16.msra.mxu0 0
      %1938 = vmatprep.subr.bf16.mxu0 0
      %1939 = vmatpush1.bf16.msra.mxu0 0
      %1940 = vmatprep.subr.bf16.mxu0 0
      %1941 = vmatpush1.bf16.msra.mxu0 0
      %1942 = vmatprep.subr.bf16.mxu0 0
      %1943 = vmatpush1.bf16.msra.mxu0 0
      %1944 = vmatprep.subr.bf16.mxu0 0
      %1945 = vmatpush1.bf16.msra.mxu0 0
      %1946 = vmatprep.subr.bf16.mxu0 0
      %1947 = vmatpush1.bf16.msra.mxu0 0
      %1948 = vmatprep.subr.bf16.mxu0 0
      %1949 = vmatpush1.bf16.msra.mxu0 0
      %1950 = vmatprep.subr.bf16.mxu0 0
      %1951 = vmatpush1.bf16.msra.mxu0 0
      %1952 = vmatprep.subr.bf16.mxu0 0
      %1953 = vmatpush1.bf16.msra.mxu0 0
      %1954 = vmatprep.subr.bf16.mxu0 0
      %1955 = vmatpush1.bf16.msra.mxu0 0
      %1956 = vmatprep.subr.bf16.mxu0 0
      %1957 = vmatpush1.bf16.msra.mxu0 0
      %1958 = vmatprep.mubr.bf16.mxu0 0
      %1959 = vmatmul.mubr.bf16.gmra.mrb[0].mxu0 %v1903
      %v1960 = vpop.f32.mrb[0].mxu0
      %v1961 = vadd.f32 %v1875, %v1960
      %v1962 = vpop.f32.mrb[0].mxu0
      %v1963 = vpop.f32.mrb[0].mxu0
      %v1964 = vadd.f32 %v1875, %v1963
      %v1965 = vpop.f32.mrb[0].mxu0
      %1966 = vmatprep.mubr.bf16.mxu0 0
      %1967 = vmatmul.mubr.bf16.gmra.mrb[0].mxu0 %v1906
      %v1968 = vpop.f32.mrb[0].mxu0
      %v1969 = vadd.f32 %v1875, %v1968
      %v1970 = vpop.f32.mrb[0].mxu0
      %v1971 = vpop.f32.mrb[0].mxu0
      %v1972 = vadd.f32 %v1875, %v1971
      %v1973 = vpop.f32.mrb[0].mxu0
      %1974 = vmatprep.mubr.bf16.mxu0 0
      %1975 = vmatmul.mubr.bf16.gmra.mrb[0].mxu0 %v1909
      %v1976 = vpop.f32.mrb[0].mxu0
      %v1977 = vadd.f32 %v1875, %v1976
      %v1978 = vpop.f32.mrb[0].mxu0
      %v1979 = vpop.f32.mrb[0].mxu0
      %v1980 = vadd.f32 %v1875, %v1979
      %v1981 = vpop.f32.mrb[0].mxu0
      %1982 = vmatprep.mubr.bf16.mxu0 0
      %1983 = vmatmul.mubr.bf16.gmra.mrb[0].mxu0 %v1912
      %v1984 = vpop.f32.mrb[0].mxu0
      %v1985 = vadd.f32 %v1875, %v1984
      %v1986 = vpop.f32.mrb[0].mxu0
      %v1987 = vpop.f32.mrb[0].mxu0
      %v1988 = vadd.f32 %v1875, %v1987
      %v1989 = vpop.f32.mrb[0].mxu0
      %1990 = vmatprep.mubr.bf16.mxu0 0
      %1991 = vmatmul.mubr.bf16.gmra.mrb[0].mxu0 %v1915
      %v1992 = vpop.f32.mrb[0].mxu0
      %v1993 = vadd.f32 %v1875, %v1992
      %v1994 = vpop.f32.mrb[0].mxu0
      %v1995 = vpop.f32.mrb[0].mxu0
      %v1996 = vadd.f32 %v1875, %v1995
      %v1997 = vpop.f32.mrb[0].mxu0
      %1998 = vmatprep.mubr.bf16.mxu0 0
      %1999 = vmatmul.mubr.bf16.gmra.mrb[0].mxu0 %v1918
      %v2000 = vpop.f32.mrb[0].mxu0
      %v2001 = vadd.f32 %v1875, %v2000
      %v2002 = vpop.f32.mrb[0].mxu0
      %v2003 = vpop.f32.mrb[0].mxu0
      %v2004 = vadd.f32 %v1875, %v2003
      %v2005 = vpop.f32.mrb[0].mxu0
      %2006 = vmatprep.mubr.bf16.mxu0 0
      %2007 = vmatmul.mubr.bf16.gmra.mrb[0].mxu0 %v1921
      %v2008 = vpop.f32.mrb[0].mxu0
      %v2009 = vadd.f32 %v1875, %v2008
      %v2010 = vpop.f32.mrb[0].mxu0
      %v2011 = vpop.f32.mrb[0].mxu0
      %v2012 = vadd.f32 %v1875, %v2011
      %v2013 = vpop.f32.mrb[0].mxu0
      %2014 = vmatprep.mubr.bf16.mxu0 0
      %2015 = vmatmul.mubr.bf16.gmra.mrb[0].mxu0 %v1924
      %v2016 = vpop.f32.mrb[0].mxu0
      %v2017 = vadd.f32 %v1875, %v2016
      %v2018 = vpop.f32.mrb[0].mxu0
      %v2019 = vpop.f32.mrb[0].mxu0
      %v2020 = vadd.f32 %v1875, %v2019
      %v2021 = vpop.f32.mrb[0].mxu0
      %2022 = vdwg.mxu0
      %v2023 = vmax.f32 %v1961, 0.0
      %v2024 = vmax.f32 %v1964, 0.0
      %v2025 = vmax.f32 %v1969, 0.0
      %v2026 = vmax.f32 %v1972, 0.0
      %v2027 = vmax.f32 %v1977, 0.0
      %v2028 = vmax.f32 %v1980, 0.0
      %v2029 = vmax.f32 %v1985, 0.0
      %v2030 = vmax.f32 %v1988, 0.0
      %v2031 = vmax.f32 %v1993, 0.0
      %v2032 = vmax.f32 %v1996, 0.0
      %v2033 = vmax.f32 %v2001, 0.0
      %v2034 = vmax.f32 %v2004, 0.0
      %v2035 = vmax.f32 %v2009, 0.0
      %v2036 = vmax.f32 %v2012, 0.0
      %v2037 = vmax.f32 %v2017, 0.0
      %v2038 = vmax.f32 %v2020, 0.0
      %v2039 = vpack.c.bf16 %v2024, %v2023
      %v2040 = vpack.c.bf16 %v2026, %v2025
      %v2041 = vpack.c.bf16 %v2028, %v2027
      %v2042 = vpack.c.bf16 %v2030, %v2029
      %v2043 = vpack.c.bf16 %v2032, %v2031
      %v2044 = vpack.c.bf16 %v2034, %v2033
      %v2045 = vpack.c.bf16 %v2036, %v2035
      %v2046 = vpack.c.bf16 %v2038, %v2037
      %v2047 = vld [vmem:[%s4] sm:$0xf]
      %v2048 = vld [vmem:[%s4 + $0x4] sm:$0xf]
      %v2049 = vld [vmem:[%s4 + $0x8] sm:$0xf]
      %v2050 = vld [vmem:[%s4 + $0xc] sm:$0xf]
      %v2051 = vld [vmem:[%s4 + $0x10] sm:$0x3]
      %v2052 = vld [vmem:[%s14] sm:$0x1]
      %v2054 = vlaneseq
      %v2055 = vshrl.u32 %v2054, 7
      %v2056 = vsub.s32 0, %v2055
      %v2057 = vrot.slane %v2052, %v2056
      %v2064 = vunpack.c.l.b16 %v2047
      %v2065 = vunpack.c.l.b16 %v2048
      %v2066 = vunpack.c.l.b16 %v2049
      %v2067 = vunpack.c.l.b16 %v2050
      %v2068 = vunpack.c.l.b16 %v2051
      %v2069 = vpack.c.b16 %v2065, %v2064
      %v2070 = vpack.c.b16 %v2067, %v2066
      %v2071 = vpack.c.b16 %v2068, %v2068
      %vm2074 = vcmask 293888
      %v2076 = vsel %vm2074, %v2039, 0
      %v2079 = vsel %vm2074, %v2040, 0
      %v2082 = vsel %vm2074, %v2041, 0
      %v2085 = vsel %vm2074, %v2042, 0
      %v2088 = vsel %vm2074, %v2043, 0
      %v2091 = vsel %vm2074, %v2044, 0
      %v2094 = vsel %vm2074, %v2045, 0
      %v2097 = vsel %vm2074, %v2046, 0
      %vm2099 = vcmask 1041408
      %v2101 = vsel %vm2099, %v2071, 0
      %2103 = vmatprep.subr.bf16.mxu0 0
      %2104 = vmatpush1.bf16.msra.mxu0 %v2069
      %2105 = vmatprep.subr.bf16.mxu0 0
      %2106 = vmatpush1.bf16.msra.mxu0 %v2070
      %2107 = vmatprep.subr.bf16.mxu0 0
      %2108 = vmatpush1.bf16.msra.mxu0 %v2101
      %2109 = vmatprep.subr.bf16.mxu0 0
      %2110 = vmatpush1.bf16.msra.mxu0 0
      %2111 = vmatprep.subr.bf16.mxu0 0
      %2112 = vmatpush1.bf16.msra.mxu0 0
      %2113 = vmatprep.subr.bf16.mxu0 0
      %2114 = vmatpush1.bf16.msra.mxu0 0
      %2115 = vmatprep.subr.bf16.mxu0 0
      %2116 = vmatpush1.bf16.msra.mxu0 0
      %2117 = vmatprep.subr.bf16.mxu0 0
      %2118 = vmatpush1.bf16.msra.mxu0 0
      %2119 = vmatprep.subr.bf16.mxu0 0
      %2120 = vmatpush1.bf16.msra.mxu0 0
      %2121 = vmatprep.subr.bf16.mxu0 0
      %2122 = vmatpush1.bf16.msra.mxu0 0
      %2123 = vmatprep.subr.bf16.mxu0 0
      %2124 = vmatpush1.bf16.msra.mxu0 0
      %2125 = vmatprep.subr.bf16.mxu0 0
      %2126 = vmatpush1.bf16.msra.mxu0 0
      %2127 = vmatprep.subr.bf16.mxu0 0
      %2128 = vmatpush1.bf16.msra.mxu0 0
      %2129 = vmatprep.subr.bf16.mxu0 0
      %2130 = vmatpush1.bf16.msra.mxu0 0
      %2131 = vmatprep.subr.bf16.mxu0 0
      %2132 = vmatpush1.bf16.msra.mxu0 0
      %2133 = vmatprep.subr.bf16.mxu0 0
      %2134 = vmatpush1.bf16.msra.mxu0 0
      %2135 = vmatprep.mubr.bf16.mxu0 0
      %2136 = vmatmul.mubr.bf16.gmra.mrb[0].mxu0 %v2076
      %v2137 = vpop.f32.mrb[0].mxu0
      %v2138 = vadd.f32 %v2057, %v2137
      %v2139 = vpop.f32.mrb[0].mxu0
      %v2140 = vpop.f32.mrb[0].mxu0
      %v2141 = vadd.f32 %v2057, %v2140
      %v2142 = vpop.f32.mrb[0].mxu0
      %2143 = vmatprep.mubr.bf16.mxu0 0
      %2144 = vmatmul.mubr.bf16.gmra.mrb[0].mxu0 %v2079
      %v2145 = vpop.f32.mrb[0].mxu0
      %v2146 = vadd.f32 %v2057, %v2145
      %v2147 = vpop.f32.mrb[0].mxu0
      %v2148 = vpop.f32.mrb[0].mxu0
      %v2149 = vadd.f32 %v2057, %v2148
      %v2150 = vpop.f32.mrb[0].mxu0
      %2151 = vmatprep.mubr.bf16.mxu0 0
      %2152 = vmatmul.mubr.bf16.gmra.mrb[0].mxu0 %v2082
      %v2153 = vpop.f32.mrb[0].mxu0
      %v2154 = vadd.f32 %v2057, %v2153
      %v2155 = vpop.f32.mrb[0].mxu0
      %v2156 = vpop.f32.mrb[0].mxu0
      %v2157 = vadd.f32 %v2057, %v2156
      %v2158 = vpop.f32.mrb[0].mxu0
      %2159 = vmatprep.mubr.bf16.mxu0 0
      %2160 = vmatmul.mubr.bf16.gmra.mrb[0].mxu0 %v2085
      %v2161 = vpop.f32.mrb[0].mxu0
      %v2162 = vadd.f32 %v2057, %v2161
      %v2163 = vpop.f32.mrb[0].mxu0
      %v2164 = vpop.f32.mrb[0].mxu0
      %v2165 = vadd.f32 %v2057, %v2164
      %v2166 = vpop.f32.mrb[0].mxu0
      %2167 = vmatprep.mubr.bf16.mxu0 0
      %2168 = vmatmul.mubr.bf16.gmra.mrb[0].mxu0 %v2088
      %v2169 = vpop.f32.mrb[0].mxu0
      %v2170 = vadd.f32 %v2057, %v2169
      %v2171 = vpop.f32.mrb[0].mxu0
      %v2172 = vpop.f32.mrb[0].mxu0
      %v2173 = vadd.f32 %v2057, %v2172
      %v2174 = vpop.f32.mrb[0].mxu0
      %2175 = vmatprep.mubr.bf16.mxu0 0
      %2176 = vmatmul.mubr.bf16.gmra.mrb[0].mxu0 %v2091
      %v2177 = vpop.f32.mrb[0].mxu0
      %v2178 = vadd.f32 %v2057, %v2177
      %v2179 = vpop.f32.mrb[0].mxu0
      %v2180 = vpop.f32.mrb[0].mxu0
      %v2181 = vadd.f32 %v2057, %v2180
      %v2182 = vpop.f32.mrb[0].mxu0
      %2183 = vmatprep.mubr.bf16.mxu0 0
      %2184 = vmatmul.mubr.bf16.gmra.mrb[0].mxu0 %v2094
      %v2185 = vpop.f32.mrb[0].mxu0
      %v2186 = vadd.f32 %v2057, %v2185
      %v2187 = vpop.f32.mrb[0].mxu0
      %v2188 = vpop.f32.mrb[0].mxu0
      %v2189 = vadd.f32 %v2057, %v2188
      %v2190 = vpop.f32.mrb[0].mxu0
      %2191 = vmatprep.mubr.bf16.mxu0 0
      %2192 = vmatmul.mubr.bf16.gmra.mrb[0].mxu0 %v2097
      %v2193 = vpop.f32.mrb[0].mxu0
      %v2194 = vadd.f32 %v2057, %v2193
      %v2195 = vpop.f32.mrb[0].mxu0
      %v2196 = vpop.f32.mrb[0].mxu0
      %v2197 = vadd.f32 %v2057, %v2196
      %v2198 = vpop.f32.mrb[0].mxu0
      %2199 = vdwg.mxu0
      %v2200 = vmax.f32 %v2138, 0.0
      %v2201 = vmax.f32 %v2141, 0.0
      %v2202 = vmax.f32 %v2146, 0.0
      %v2203 = vmax.f32 %v2149, 0.0
      %v2204 = vmax.f32 %v2154, 0.0
      %v2205 = vmax.f32 %v2157, 0.0
      %v2206 = vmax.f32 %v2162, 0.0
      %v2207 = vmax.f32 %v2165, 0.0
      %v2208 = vmax.f32 %v2170, 0.0
      %v2209 = vmax.f32 %v2173, 0.0
      %v2210 = vmax.f32 %v2178, 0.0
      %v2211 = vmax.f32 %v2181, 0.0
      %v2212 = vmax.f32 %v2186, 0.0
      %v2213 = vmax.f32 %v2189, 0.0
      %v2214 = vmax.f32 %v2194, 0.0
      %v2215 = vmax.f32 %v2197, 0.0
      %v2216 = vpack.c.bf16 %v2201, %v2200
      %v2217 = vpack.c.bf16 %v2203, %v2202
      %v2218 = vpack.c.bf16 %v2205, %v2204
      %v2219 = vpack.c.bf16 %v2207, %v2206
      %v2220 = vpack.c.bf16 %v2209, %v2208
      %v2221 = vpack.c.bf16 %v2211, %v2210
      %v2222 = vpack.c.bf16 %v2213, %v2212
      %v2223 = vpack.c.bf16 %v2215, %v2214
      %v2224 = vld [vmem:[%s5] sm:$0xf]
      %v2225 = vld [vmem:[%s5 + $0x4] sm:$0xf]
      %v2226 = vld [vmem:[%s5 + $0x8] sm:$0x1]
      %v2227 = vld [vmem:[%s15] sm:$0x1]
      %v2229 = vlaneseq
      %v2230 = vshrl.u32 %v2229, 7
      %v2231 = vsub.s32 0, %v2230
      %v2232 = vrot.slane %v2227, %v2231
      %v2237 = vunpack.c.l.b16 %v2224
      %v2238 = vunpack.c.l.b16 %v2225
      %v2239 = vunpack.c.l.b16 %v2226
      %v2240 = vpack.c.b16 %v2238, %v2237
      %v2241 = vpack.c.b16 %v2239, %v2239
      %vm2243 = vcmask 146432
      %v2245 = vsel %vm2243, %v2216, 0
      %v2248 = vsel %vm2243, %v2217, 0
      %v2251 = vsel %vm2243, %v2218, 0
      %v2254 = vsel %vm2243, %v2219, 0
      %v2257 = vsel %vm2243, %v2220, 0
      %v2260 = vsel %vm2243, %v2221, 0
      %v2263 = vsel %vm2243, %v2222, 0
      %v2266 = vsel %vm2243, %v2223, 0
      %vm2268 = vcmask 1040384
      %v2270 = vsel %vm2268, %v2241, 0
      %2272 = vmatprep.subr.bf16.mxu0 0
      %2273 = vmatpush1.bf16.msra.mxu0 %v2240
      %2274 = vmatprep.subr.bf16.mxu0 0
      %2275 = vmatpush1.bf16.msra.mxu0 %v2270
      %2276 = vmatprep.subr.bf16.mxu0 0
      %2277 = vmatpush1.bf16.msra.mxu0 0
      %2278 = vmatprep.subr.bf16.mxu0 0
      %2279 = vmatpush1.bf16.msra.mxu0 0
      %2280 = vmatprep.subr.bf16.mxu0 0
      %2281 = vmatpush1.bf16.msra.mxu0 0
      %2282 = vmatprep.subr.bf16.mxu0 0
      %2283 = vmatpush1.bf16.msra.mxu0 0
      %2284 = vmatprep.subr.bf16.mxu0 0
      %2285 = vmatpush1.bf16.msra.mxu0 0
      %2286 = vmatprep.subr.bf16.mxu0 0
      %2287 = vmatpush1.bf16.msra.mxu0 0
      %2288 = vmatprep.subr.bf16.mxu0 0
      %2289 = vmatpush1.bf16.msra.mxu0 0
      %2290 = vmatprep.subr.bf16.mxu0 0
      %2291 = vmatpush1.bf16.msra.mxu0 0
      %2292 = vmatprep.subr.bf16.mxu0 0
      %2293 = vmatpush1.bf16.msra.mxu0 0
      %2294 = vmatprep.subr.bf16.mxu0 0
      %2295 = vmatpush1.bf16.msra.mxu0 0
      %2296 = vmatprep.subr.bf16.mxu0 0
      %2297 = vmatpush1.bf16.msra.mxu0 0
      %2298 = vmatprep.subr.bf16.mxu0 0
      %2299 = vmatpush1.bf16.msra.mxu0 0
      %2300 = vmatprep.subr.bf16.mxu0 0
      %2301 = vmatpush1.bf16.msra.mxu0 0
      %2302 = vmatprep.subr.bf16.mxu0 0
      %2303 = vmatpush1.bf16.msra.mxu0 0
      %2304 = vmatprep.mubr.bf16.mxu0 0
      %2305 = vmatmul.mubr.bf16.gmra.mrb[0].mxu0 %v2245
      %v2306 = vpop.f32.mrb[0].mxu0
      %v2307 = vadd.f32 %v2232, %v2306
      %v2308 = vpop.f32.mrb[0].mxu0
      %v2309 = vpop.f32.mrb[0].mxu0
      %v2310 = vadd.f32 %v2232, %v2309
      %v2311 = vpop.f32.mrb[0].mxu0
      %2312 = vmatprep.mubr.bf16.mxu0 0
      %2313 = vmatmul.mubr.bf16.gmra.mrb[0].mxu0 %v2248
      %v2314 = vpop.f32.mrb[0].mxu0
      %v2315 = vadd.f32 %v2232, %v2314
      %v2316 = vpop.f32.mrb[0].mxu0
      %v2317 = vpop.f32.mrb[0].mxu0
      %v2318 = vadd.f32 %v2232, %v2317
      %v2319 = vpop.f32.mrb[0].mxu0
      %2320 = vmatprep.mubr.bf16.mxu0 0
      %2321 = vmatmul.mubr.bf16.gmra.mrb[0].mxu0 %v2251
      %v2322 = vpop.f32.mrb[0].mxu0
      %v2323 = vadd.f32 %v2232, %v2322
      %v2324 = vpop.f32.mrb[0].mxu0
      %v2325 = vpop.f32.mrb[0].mxu0
      %v2326 = vadd.f32 %v2232, %v2325
      %v2327 = vpop.f32.mrb[0].mxu0
      %2328 = vmatprep.mubr.bf16.mxu0 0
      %2329 = vmatmul.mubr.bf16.gmra.mrb[0].mxu0 %v2254
      %v2330 = vpop.f32.mrb[0].mxu0
      %v2331 = vadd.f32 %v2232, %v2330
      %v2332 = vpop.f32.mrb[0].mxu0
      %v2333 = vpop.f32.mrb[0].mxu0
      %v2334 = vadd.f32 %v2232, %v2333
      %v2335 = vpop.f32.mrb[0].mxu0
      %2336 = vmatprep.mubr.bf16.mxu0 0
      %2337 = vmatmul.mubr.bf16.gmra.mrb[0].mxu0 %v2257
      %v2338 = vpop.f32.mrb[0].mxu0
      %v2339 = vadd.f32 %v2232, %v2338
      %v2340 = vpop.f32.mrb[0].mxu0
      %v2341 = vpop.f32.mrb[0].mxu0
      %v2342 = vadd.f32 %v2232, %v2341
      %v2343 = vpop.f32.mrb[0].mxu0
      %2344 = vmatprep.mubr.bf16.mxu0 0
      %2345 = vmatmul.mubr.bf16.gmra.mrb[0].mxu0 %v2260
      %v2346 = vpop.f32.mrb[0].mxu0
      %v2347 = vadd.f32 %v2232, %v2346
      %v2348 = vpop.f32.mrb[0].mxu0
      %v2349 = vpop.f32.mrb[0].mxu0
      %v2350 = vadd.f32 %v2232, %v2349
      %v2351 = vpop.f32.mrb[0].mxu0
      %2352 = vmatprep.mubr.bf16.mxu0 0
      %2353 = vmatmul.mubr.bf16.gmra.mrb[0].mxu0 %v2263
      %v2354 = vpop.f32.mrb[0].mxu0
      %v2355 = vadd.f32 %v2232, %v2354
      %v2356 = vpop.f32.mrb[0].mxu0
      %v2357 = vpop.f32.mrb[0].mxu0
      %v2358 = vadd.f32 %v2232, %v2357
      %v2359 = vpop.f32.mrb[0].mxu0
      %2360 = vmatprep.mubr.bf16.mxu0 0
      %2361 = vmatmul.mubr.bf16.gmra.mrb[0].mxu0 %v2266
      %v2362 = vpop.f32.mrb[0].mxu0
      %v2363 = vadd.f32 %v2232, %v2362
      %v2364 = vpop.f32.mrb[0].mxu0
      %v2365 = vpop.f32.mrb[0].mxu0
      %v2366 = vadd.f32 %v2232, %v2365
      %v2367 = vpop.f32.mrb[0].mxu0
      %2368 = vdwg.mxu0
      %v2369 = vpack.c.bf16 %v2310, %v2307
      %v2370 = vpack.c.bf16 %v2318, %v2315
      %v2371 = vpack.c.bf16 %v2326, %v2323
      %v2372 = vpack.c.bf16 %v2334, %v2331
      %v2373 = vpack.c.bf16 %v2342, %v2339
      %v2374 = vpack.c.bf16 %v2350, %v2347
      %v2375 = vpack.c.bf16 %v2358, %v2355
      %v2376 = vpack.c.bf16 %v2366, %v2363
      %v2377 = vld [vmem:[%s6] sm:$0xf]
      %v2378 = vld [vmem:[%s6 + $0x4] sm:$0x1]
      %v2379 = vld [vmem:[%s16] sm:$0x1]
      %v2381 = vlaneseq
      %v2382 = vshrl.u32 %v2381, 7
      %v2383 = vsub.s32 0, %v2382
      %v2384 = vrot.slane %v2379, %v2383
      %v2388 = vunpack.c.l.b16 %v2377
      %v2389 = vunpack.c.l.b16 %v2378
      %v2390 = vpack.c.b16 %v2389, %v2388
      %vm2391 = vcmask 72704
      %v2393 = vsel %vm2391, %v2369, 0
      %v2396 = vsel %vm2391, %v2370, 0
      %v2399 = vsel %vm2391, %v2371, 0
      %v2402 = vsel %vm2391, %v2372, 0
      %v2405 = vsel %vm2391, %v2373, 0
      %v2408 = vsel %vm2391, %v2374, 0
      %v2411 = vsel %vm2391, %v2375, 0
      %v2414 = vsel %vm2391, %v2376, 0
      %vm2416 = vcmask 1043456
      %vm2417 = vcmask 1044480
      %v2418 = vsel %vm2416, 4294967295, 65535
      %v2419 = vsel %vm2417, %v2418, 0
      %v2421 = vand.u32 %v2390, %v2419
      %2423 = vmatprep.subr.bf16.mxu0 0
      %2424 = vmatpush1.bf16.msra.mxu0 %v2421
      %2425 = vmatprep.subr.bf16.mxu0 0
      %2426 = vmatpush1.bf16.msra.mxu0 0
      %2427 = vmatprep.subr.bf16.mxu0 0
      %2428 = vmatpush1.bf16.msra.mxu0 0
      %2429 = vmatprep.subr.bf16.mxu0 0
      %2430 = vmatpush1.bf16.msra.mxu0 0
      %2431 = vmatprep.subr.bf16.mxu0 0
      %2432 = vmatpush1.bf16.msra.mxu0 0
      %2433 = vmatprep.subr.bf16.mxu0 0
      %2434 = vmatpush1.bf16.msra.mxu0 0
      %2435 = vmatprep.subr.bf16.mxu0 0
      %2436 = vmatpush1.bf16.msra.mxu0 0
      %2437 = vmatprep.subr.bf16.mxu0 0
      %2438 = vmatpush1.bf16.msra.mxu0 0
      %2439 = vmatprep.subr.bf16.mxu0 0
      %2440 = vmatpush1.bf16.msra.mxu0 0
      %2441 = vmatprep.subr.bf16.mxu0 0
      %2442 = vmatpush1.bf16.msra.mxu0 0
      %2443 = vmatprep.subr.bf16.mxu0 0
      %2444 = vmatpush1.bf16.msra.mxu0 0
      %2445 = vmatprep.subr.bf16.mxu0 0
      %2446 = vmatpush1.bf16.msra.mxu0 0
      %2447 = vmatprep.subr.bf16.mxu0 0
      %2448 = vmatpush1.bf16.msra.mxu0 0
      %2449 = vmatprep.subr.bf16.mxu0 0
      %2450 = vmatpush1.bf16.msra.mxu0 0
      %2451 = vmatprep.subr.bf16.mxu0 0
      %2452 = vmatpush1.bf16.msra.mxu0 0
      %2453 = vmatprep.subr.bf16.mxu0 0
      %2454 = vmatpush1.bf16.msra.mxu0 0
      %2455 = vmatprep.mubr.bf16.mxu0 0
      %2456 = vmatmul.mubr.bf16.gmra.mrb[0].mxu0 %v2393
      %v2457 = vpop.f32.mrb[0].mxu0
      %v2458 = vadd.f32 %v2384, %v2457
      %v2459 = vpop.f32.mrb[0].mxu0
      %v2460 = vpop.f32.mrb[0].mxu0
      %v2461 = vadd.f32 %v2384, %v2460
      %v2462 = vpop.f32.mrb[0].mxu0
      %2463 = vmatprep.mubr.bf16.mxu0 0
      %2464 = vmatmul.mubr.bf16.gmra.mrb[0].mxu0 %v2396
      %v2465 = vpop.f32.mrb[0].mxu0
      %v2466 = vadd.f32 %v2384, %v2465
      %v2467 = vpop.f32.mrb[0].mxu0
      %v2468 = vpop.f32.mrb[0].mxu0
      %v2469 = vadd.f32 %v2384, %v2468
      %v2470 = vpop.f32.mrb[0].mxu0
      %2471 = vmatprep.mubr.bf16.mxu0 0
      %2472 = vmatmul.mubr.bf16.gmra.mrb[0].mxu0 %v2399
      %v2473 = vpop.f32.mrb[0].mxu0
      %v2474 = vadd.f32 %v2384, %v2473
      %v2475 = vpop.f32.mrb[0].mxu0
      %v2476 = vpop.f32.mrb[0].mxu0
      %v2477 = vadd.f32 %v2384, %v2476
      %v2478 = vpop.f32.mrb[0].mxu0
      %2479 = vmatprep.mubr.bf16.mxu0 0
      %2480 = vmatmul.mubr.bf16.gmra.mrb[0].mxu0 %v2402
      %v2481 = vpop.f32.mrb[0].mxu0
      %v2482 = vadd.f32 %v2384, %v2481
      %v2483 = vpop.f32.mrb[0].mxu0
      %v2484 = vpop.f32.mrb[0].mxu0
      %v2485 = vadd.f32 %v2384, %v2484
      %v2486 = vpop.f32.mrb[0].mxu0
      %2487 = vmatprep.mubr.bf16.mxu0 0
      %2488 = vmatmul.mubr.bf16.gmra.mrb[0].mxu0 %v2405
      %v2489 = vpop.f32.mrb[0].mxu0
      %v2490 = vadd.f32 %v2384, %v2489
      %v2491 = vpop.f32.mrb[0].mxu0
      %v2492 = vpop.f32.mrb[0].mxu0
      %v2493 = vadd.f32 %v2384, %v2492
      %v2494 = vpop.f32.mrb[0].mxu0
      %2495 = vmatprep.mubr.bf16.mxu0 0
      %2496 = vmatmul.mubr.bf16.gmra.mrb[0].mxu0 %v2408
      %v2497 = vpop.f32.mrb[0].mxu0
      %v2498 = vadd.f32 %v2384, %v2497
      %v2499 = vpop.f32.mrb[0].mxu0
      %v2500 = vpop.f32.mrb[0].mxu0
      %v2501 = vadd.f32 %v2384, %v2500
      %v2502 = vpop.f32.mrb[0].mxu0
      %2503 = vmatprep.mubr.bf16.mxu0 0
      %2504 = vmatmul.mubr.bf16.gmra.mrb[0].mxu0 %v2411
      %v2505 = vpop.f32.mrb[0].mxu0
      %v2506 = vadd.f32 %v2384, %v2505
      %v2507 = vpop.f32.mrb[0].mxu0
      %v2508 = vpop.f32.mrb[0].mxu0
      %v2509 = vadd.f32 %v2384, %v2508
      %v2510 = vpop.f32.mrb[0].mxu0
      %2511 = vmatprep.mubr.bf16.mxu0 0
      %2512 = vmatmul.mubr.bf16.gmra.mrb[0].mxu0 %v2414
      %v2513 = vpop.f32.mrb[0].mxu0
      %v2514 = vadd.f32 %v2384, %v2513
      %v2515 = vpop.f32.mrb[0].mxu0
      %v2516 = vpop.f32.mrb[0].mxu0
      %v2517 = vadd.f32 %v2384, %v2516
      %v2518 = vpop.f32.mrb[0].mxu0
      %2519 = vdwg.mxu0
      %v2520 = vmax.f32 %v2458, 0.0
      %v2521 = vmax.f32 %v2461, 0.0
      %v2522 = vmax.f32 %v2466, 0.0
      %v2523 = vmax.f32 %v2469, 0.0
      %v2524 = vmax.f32 %v2474, 0.0
      %v2525 = vmax.f32 %v2477, 0.0
      %v2526 = vmax.f32 %v2482, 0.0
      %v2527 = vmax.f32 %v2485, 0.0
      %v2528 = vmax.f32 %v2490, 0.0
      %v2529 = vmax.f32 %v2493, 0.0
      %v2530 = vmax.f32 %v2498, 0.0
      %v2531 = vmax.f32 %v2501, 0.0
      %v2532 = vmax.f32 %v2506, 0.0
      %v2533 = vmax.f32 %v2509, 0.0
      %v2534 = vmax.f32 %v2514, 0.0
      %v2535 = vmax.f32 %v2517, 0.0
      %v2536 = vpack.c.bf16 %v2521, %v2520
      %v2537 = vpack.c.bf16 %v2523, %v2522
      %v2538 = vpack.c.bf16 %v2525, %v2524
      %v2539 = vpack.c.bf16 %v2527, %v2526
      %v2540 = vpack.c.bf16 %v2529, %v2528
      %v2541 = vpack.c.bf16 %v2531, %v2530
      %v2542 = vpack.c.bf16 %v2533, %v2532
      %v2543 = vpack.c.bf16 %v2535, %v2534
      %v2544 = vld [vmem:[%s7] sm:$0xf]
      %v2545 = vld [vmem:[%s7 + $0x4] sm:$0xf]
      %v2546 = vld [vmem:[%s7 + $0x8] sm:$0x1]
      %v2547 = vld [vmem:[%s17] sm:$0x1]
      %v2549 = vlaneseq
      %v2550 = vshrl.u32 %v2549, 7
      %v2551 = vsub.s32 0, %v2550
      %v2552 = vrot.slane %v2547, %v2551
      %v2557 = vunpack.c.l.b16 %v2544
      %v2558 = vunpack.c.l.b16 %v2545
      %v2559 = vunpack.c.l.b16 %v2546
      %v2560 = vpack.c.b16 %v2558, %v2557
      %v2561 = vpack.c.b16 %v2559, %v2559
      %v2564 = vsel %vm2243, %v2536, 0
      %v2567 = vsel %vm2243, %v2537, 0
      %v2570 = vsel %vm2243, %v2538, 0
      %v2573 = vsel %vm2243, %v2539, 0
      %v2576 = vsel %vm2243, %v2540, 0
      %v2579 = vsel %vm2243, %v2541, 0
      %v2582 = vsel %vm2243, %v2542, 0
      %v2585 = vsel %vm2243, %v2543, 0
      %v2588 = vsel %vm2268, %v2561, 0
      %2590 = vmatprep.subr.bf16.mxu0 0
      %2591 = vmatpush1.bf16.msra.mxu0 %v2560
      %2592 = vmatprep.subr.bf16.mxu0 0
      %2593 = vmatpush1.bf16.msra.mxu0 %v2588
      %2594 = vmatprep.subr.bf16.mxu0 0
      %2595 = vmatpush1.bf16.msra.mxu0 0
      %2596 = vmatprep.subr.bf16.mxu0 0
      %2597 = vmatpush1.bf16.msra.mxu0 0
      %2598 = vmatprep.subr.bf16.mxu0 0
      %2599 = vmatpush1.bf16.msra.mxu0 0
      %2600 = vmatprep.subr.bf16.mxu0 0
      %2601 = vmatpush1.bf16.msra.mxu0 0
      %2602 = vmatprep.subr.bf16.mxu0 0
      %2603 = vmatpush1.bf16.msra.mxu0 0
      %2604 = vmatprep.subr.bf16.mxu0 0
      %2605 = vmatpush1.bf16.msra.mxu0 0
      %2606 = vmatprep.subr.bf16.mxu0 0
      %2607 = vmatpush1.bf16.msra.mxu0 0
      %2608 = vmatprep.subr.bf16.mxu0 0
      %2609 = vmatpush1.bf16.msra.mxu0 0
      %2610 = vmatprep.subr.bf16.mxu0 0
      %2611 = vmatpush1.bf16.msra.mxu0 0
      %2612 = vmatprep.subr.bf16.mxu0 0
      %2613 = vmatpush1.bf16.msra.mxu0 0
      %2614 = vmatprep.subr.bf16.mxu0 0
      %2615 = vmatpush1.bf16.msra.mxu0 0
      %2616 = vmatprep.subr.bf16.mxu0 0
      %2617 = vmatpush1.bf16.msra.mxu0 0
      %2618 = vmatprep.subr.bf16.mxu0 0
      %2619 = vmatpush1.bf16.msra.mxu0 0
      %2620 = vmatprep.subr.bf16.mxu0 0
      %2621 = vmatpush1.bf16.msra.mxu0 0
      %2622 = vmatprep.mubr.bf16.mxu0 0
      %2623 = vmatmul.mubr.bf16.gmra.mrb[0].mxu0 %v2564
      %v2624 = vpop.f32.mrb[0].mxu0
      %v2625 = vadd.f32 %v2552, %v2624
      %v2626 = vpop.f32.mrb[0].mxu0
      %v2627 = vpop.f32.mrb[0].mxu0
      %v2628 = vadd.f32 %v2552, %v2627
      %v2629 = vpop.f32.mrb[0].mxu0
      %2630 = vmatprep.mubr.bf16.mxu0 0
      %2631 = vmatmul.mubr.bf16.gmra.mrb[0].mxu0 %v2567
      %v2632 = vpop.f32.mrb[0].mxu0
      %v2633 = vadd.f32 %v2552, %v2632
      %v2634 = vpop.f32.mrb[0].mxu0
      %v2635 = vpop.f32.mrb[0].mxu0
      %v2636 = vadd.f32 %v2552, %v2635
      %v2637 = vpop.f32.mrb[0].mxu0
      %2638 = vmatprep.mubr.bf16.mxu0 0
      %2639 = vmatmul.mubr.bf16.gmra.mrb[0].mxu0 %v2570
      %v2640 = vpop.f32.mrb[0].mxu0
      %v2641 = vadd.f32 %v2552, %v2640
      %v2642 = vpop.f32.mrb[0].mxu0
      %v2643 = vpop.f32.mrb[0].mxu0
      %v2644 = vadd.f32 %v2552, %v2643
      %v2645 = vpop.f32.mrb[0].mxu0
      %2646 = vmatprep.mubr.bf16.mxu0 0
      %2647 = vmatmul.mubr.bf16.gmra.mrb[0].mxu0 %v2573
      %v2648 = vpop.f32.mrb[0].mxu0
      %v2649 = vadd.f32 %v2552, %v2648
      %v2650 = vpop.f32.mrb[0].mxu0
      %v2651 = vpop.f32.mrb[0].mxu0
      %v2652 = vadd.f32 %v2552, %v2651
      %v2653 = vpop.f32.mrb[0].mxu0
      %2654 = vmatprep.mubr.bf16.mxu0 0
      %2655 = vmatmul.mubr.bf16.gmra.mrb[0].mxu0 %v2576
      %v2656 = vpop.f32.mrb[0].mxu0
      %v2657 = vadd.f32 %v2552, %v2656
      %v2658 = vpop.f32.mrb[0].mxu0
      %v2659 = vpop.f32.mrb[0].mxu0
      %v2660 = vadd.f32 %v2552, %v2659
      %v2661 = vpop.f32.mrb[0].mxu0
      %2662 = vmatprep.mubr.bf16.mxu0 0
      %2663 = vmatmul.mubr.bf16.gmra.mrb[0].mxu0 %v2579
      %v2664 = vpop.f32.mrb[0].mxu0
      %v2665 = vadd.f32 %v2552, %v2664
      %v2666 = vpop.f32.mrb[0].mxu0
      %v2667 = vpop.f32.mrb[0].mxu0
      %v2668 = vadd.f32 %v2552, %v2667
      %v2669 = vpop.f32.mrb[0].mxu0
      %2670 = vmatprep.mubr.bf16.mxu0 0
      %2671 = vmatmul.mubr.bf16.gmra.mrb[0].mxu0 %v2582
      %v2672 = vpop.f32.mrb[0].mxu0
      %v2673 = vadd.f32 %v2552, %v2672
      %v2674 = vpop.f32.mrb[0].mxu0
      %v2675 = vpop.f32.mrb[0].mxu0
      %v2676 = vadd.f32 %v2552, %v2675
      %v2677 = vpop.f32.mrb[0].mxu0
      %2678 = vmatprep.mubr.bf16.mxu0 0
      %2679 = vmatmul.mubr.bf16.gmra.mrb[0].mxu0 %v2585
      %v2680 = vpop.f32.mrb[0].mxu0
      %v2681 = vadd.f32 %v2552, %v2680
      %v2682 = vpop.f32.mrb[0].mxu0
      %v2683 = vpop.f32.mrb[0].mxu0
      %v2684 = vadd.f32 %v2552, %v2683
      %v2685 = vpop.f32.mrb[0].mxu0
      %2686 = vdwg.mxu0
      %v2687 = vmax.f32 %v2625, 0.0
      %v2688 = vmax.f32 %v2628, 0.0
      %v2689 = vmax.f32 %v2633, 0.0
      %v2690 = vmax.f32 %v2636, 0.0
      %v2691 = vmax.f32 %v2641, 0.0
      %v2692 = vmax.f32 %v2644, 0.0
      %v2693 = vmax.f32 %v2649, 0.0
      %v2694 = vmax.f32 %v2652, 0.0
      %v2695 = vmax.f32 %v2657, 0.0
      %v2696 = vmax.f32 %v2660, 0.0
      %v2697 = vmax.f32 %v2665, 0.0
      %v2698 = vmax.f32 %v2668, 0.0
      %v2699 = vmax.f32 %v2673, 0.0
      %v2700 = vmax.f32 %v2676, 0.0
      %v2701 = vmax.f32 %v2681, 0.0
      %v2702 = vmax.f32 %v2684, 0.0
      %v2703 = vpack.c.bf16 %v2688, %v2687
      %v2704 = vpack.c.bf16 %v2690, %v2689
      %v2705 = vpack.c.bf16 %v2692, %v2691
      %v2706 = vpack.c.bf16 %v2694, %v2693
      %v2707 = vpack.c.bf16 %v2696, %v2695
      %v2708 = vpack.c.bf16 %v2698, %v2697
      %v2709 = vpack.c.bf16 %v2700, %v2699
      %v2710 = vpack.c.bf16 %v2702, %v2701
      %v2711 = vld [vmem:[%s8] sm:$0xf]
      %v2712 = vld [vmem:[%s8 + $0x4] sm:$0xf]
      %v2713 = vld [vmem:[%s8 + $0x8] sm:$0xf]
      %v2714 = vld [vmem:[%s8 + $0xc] sm:$0xf]
      %v2715 = vld [vmem:[%s8 + $0x10] sm:$0x3]
      %v2716 = vld [vmem:[%s18] sm:$0x1]
      %v2718 = vlaneseq
      %v2719 = vshrl.u32 %v2718, 7
      %v2720 = vsub.s32 0, %v2719
      %v2721 = vrot.slane %v2716, %v2720
      %v2728 = vunpack.c.l.b16 %v2711
      %v2729 = vunpack.c.l.b16 %v2712
      %v2730 = vunpack.c.l.b16 %v2713
      %v2731 = vunpack.c.l.b16 %v2714
      %v2732 = vunpack.c.l.b16 %v2715
      %v2733 = vpack.c.b16 %v2729, %v2728
      %v2734 = vpack.c.b16 %v2731, %v2730
      %v2735 = vpack.c.b16 %v2732, %v2732
      %v2739 = vsel %vm2074, %v2703, 0
      %v2742 = vsel %vm2074, %v2704, 0
      %v2745 = vsel %vm2074, %v2705, 0
      %v2748 = vsel %vm2074, %v2706, 0
      %v2751 = vsel %vm2074, %v2707, 0
      %v2754 = vsel %vm2074, %v2708, 0
      %v2757 = vsel %vm2074, %v2709, 0
      %v2760 = vsel %vm2074, %v2710, 0
      %v2763 = vsel %vm2099, %v2735, 0
      %2765 = vmatprep.subr.bf16.mxu0 0
      %2766 = vmatpush1.bf16.msra.mxu0 %v2733
      %2767 = vmatprep.subr.bf16.mxu0 0
      %2768 = vmatpush1.bf16.msra.mxu0 %v2734
      %2769 = vmatprep.subr.bf16.mxu0 0
      %2770 = vmatpush1.bf16.msra.mxu0 %v2763
      %2771 = vmatprep.subr.bf16.mxu0 0
      %2772 = vmatpush1.bf16.msra.mxu0 0
      %2773 = vmatprep.subr.bf16.mxu0 0
      %2774 = vmatpush1.bf16.msra.mxu0 0
      %2775 = vmatprep.subr.bf16.mxu0 0
      %2776 = vmatpush1.bf16.msra.mxu0 0
      %2777 = vmatprep.subr.bf16.mxu0 0
      %2778 = vmatpush1.bf16.msra.mxu0 0
      %2779 = vmatprep.subr.bf16.mxu0 0
      %2780 = vmatpush1.bf16.msra.mxu0 0
      %2781 = vmatprep.subr.bf16.mxu0 0
      %2782 = vmatpush1.bf16.msra.mxu0 0
      %2783 = vmatprep.subr.bf16.mxu0 0
      %2784 = vmatpush1.bf16.msra.mxu0 0
      %2785 = vmatprep.subr.bf16.mxu0 0
      %2786 = vmatpush1.bf16.msra.mxu0 0
      %2787 = vmatprep.subr.bf16.mxu0 0
      %2788 = vmatpush1.bf16.msra.mxu0 0
      %2789 = vmatprep.subr.bf16.mxu0 0
      %2790 = vmatpush1.bf16.msra.mxu0 0
      %2791 = vmatprep.subr.bf16.mxu0 0
      %2792 = vmatpush1.bf16.msra.mxu0 0
      %2793 = vmatprep.subr.bf16.mxu0 0
      %2794 = vmatpush1.bf16.msra.mxu0 0
      %2795 = vmatprep.subr.bf16.mxu0 0
      %2796 = vmatpush1.bf16.msra.mxu0 0
      %2797 = vmatprep.mubr.bf16.mxu0 0
      %2798 = vmatmul.mubr.bf16.gmra.mrb[0].mxu0 %v2739
      %v2799 = vpop.f32.mrb[0].mxu0
      %v2800 = vadd.f32 %v2721, %v2799
      %v2801 = vpop.f32.mrb[0].mxu0
      %v2802 = vpop.f32.mrb[0].mxu0
      %v2803 = vadd.f32 %v2721, %v2802
      %v2804 = vpop.f32.mrb[0].mxu0
      %2805 = vmatprep.mubr.bf16.mxu0 0
      %2806 = vmatmul.mubr.bf16.gmra.mrb[0].mxu0 %v2742
      %v2807 = vpop.f32.mrb[0].mxu0
      %v2808 = vadd.f32 %v2721, %v2807
      %v2809 = vpop.f32.mrb[0].mxu0
      %v2810 = vpop.f32.mrb[0].mxu0
      %v2811 = vadd.f32 %v2721, %v2810
      %v2812 = vpop.f32.mrb[0].mxu0
      %2813 = vmatprep.mubr.bf16.mxu0 0
      %2814 = vmatmul.mubr.bf16.gmra.mrb[0].mxu0 %v2745
      %v2815 = vpop.f32.mrb[0].mxu0
      %v2816 = vadd.f32 %v2721, %v2815
      %v2817 = vpop.f32.mrb[0].mxu0
      %v2818 = vpop.f32.mrb[0].mxu0
      %v2819 = vadd.f32 %v2721, %v2818
      %v2820 = vpop.f32.mrb[0].mxu0
      %2821 = vmatprep.mubr.bf16.mxu0 0
      %2822 = vmatmul.mubr.bf16.gmra.mrb[0].mxu0 %v2748
      %v2823 = vpop.f32.mrb[0].mxu0
      %v2824 = vadd.f32 %v2721, %v2823
      %v2825 = vpop.f32.mrb[0].mxu0
      %v2826 = vpop.f32.mrb[0].mxu0
      %v2827 = vadd.f32 %v2721, %v2826
      %v2828 = vpop.f32.mrb[0].mxu0
      %2829 = vmatprep.mubr.bf16.mxu0 0
      %2830 = vmatmul.mubr.bf16.gmra.mrb[0].mxu0 %v2751
      %v2831 = vpop.f32.mrb[0].mxu0
      %v2832 = vadd.f32 %v2721, %v2831
      %v2833 = vpop.f32.mrb[0].mxu0
      %v2834 = vpop.f32.mrb[0].mxu0
      %v2835 = vadd.f32 %v2721, %v2834
      %v2836 = vpop.f32.mrb[0].mxu0
      %2837 = vmatprep.mubr.bf16.mxu0 0
      %2838 = vmatmul.mubr.bf16.gmra.mrb[0].mxu0 %v2754
      %v2839 = vpop.f32.mrb[0].mxu0
      %v2840 = vadd.f32 %v2721, %v2839
      %v2841 = vpop.f32.mrb[0].mxu0
      %v2842 = vpop.f32.mrb[0].mxu0
      %v2843 = vadd.f32 %v2721, %v2842
      %v2844 = vpop.f32.mrb[0].mxu0
      %2845 = vmatprep.mubr.bf16.mxu0 0
      %2846 = vmatmul.mubr.bf16.gmra.mrb[0].mxu0 %v2757
      %v2847 = vpop.f32.mrb[0].mxu0
      %v2848 = vadd.f32 %v2721, %v2847
      %v2849 = vpop.f32.mrb[0].mxu0
      %v2850 = vpop.f32.mrb[0].mxu0
      %v2851 = vadd.f32 %v2721, %v2850
      %v2852 = vpop.f32.mrb[0].mxu0
      %2853 = vmatprep.mubr.bf16.mxu0 0
      %2854 = vmatmul.mubr.bf16.gmra.mrb[0].mxu0 %v2760
      %v2855 = vpop.f32.mrb[0].mxu0
      %v2856 = vadd.f32 %v2721, %v2855
      %v2857 = vpop.f32.mrb[0].mxu0
      %v2858 = vpop.f32.mrb[0].mxu0
      %v2859 = vadd.f32 %v2721, %v2858
      %v2860 = vpop.f32.mrb[0].mxu0
      %2861 = vdwg.mxu0
      %v2862 = vmax.f32 %v2800, 0.0
      %v2863 = vmax.f32 %v2803, 0.0
      %v2864 = vmax.f32 %v2808, 0.0
      %v2865 = vmax.f32 %v2811, 0.0
      %v2866 = vmax.f32 %v2816, 0.0
      %v2867 = vmax.f32 %v2819, 0.0
      %v2868 = vmax.f32 %v2824, 0.0
      %v2869 = vmax.f32 %v2827, 0.0
      %v2870 = vmax.f32 %v2832, 0.0
      %v2871 = vmax.f32 %v2835, 0.0
      %v2872 = vmax.f32 %v2840, 0.0
      %v2873 = vmax.f32 %v2843, 0.0
      %v2874 = vmax.f32 %v2848, 0.0
      %v2875 = vmax.f32 %v2851, 0.0
      %v2876 = vmax.f32 %v2856, 0.0
      %v2877 = vmax.f32 %v2859, 0.0
      %v2878 = vpack.c.bf16 %v2863, %v2862
      %v2879 = vpack.c.bf16 %v2865, %v2864
      %v2880 = vpack.c.bf16 %v2867, %v2866
      %v2881 = vpack.c.bf16 %v2869, %v2868
      %v2882 = vpack.c.bf16 %v2871, %v2870
      %v2883 = vpack.c.bf16 %v2873, %v2872
      %v2884 = vpack.c.bf16 %v2875, %v2874
      %v2885 = vpack.c.bf16 %v2877, %v2876
      %v2886 = vld [vmem:[%s9] sm:$0xf]
      %v2887 = vld [vmem:[%s9 + $0x4] sm:$0xf]
      %v2888 = vld [vmem:[%s9 + $0x8] sm:$0xf]
      %v2889 = vld [vmem:[%s9 + $0xc] sm:$0xf]
      %v2890 = vld [vmem:[%s9 + $0x10] sm:$0xf]
      %v2891 = vld [vmem:[%s9 + $0x14] sm:$0xf]
      %v2892 = vld [vmem:[%s9 + $0x18] sm:$0xf]
      %v2893 = vld [vmem:[%s9 + $0x1c] sm:$0xf]
      %v2894 = vld [vmem:[%s19] sm:$0x1]
      %v2896 = vlaneseq
      %v2897 = vshrl.u32 %v2896, 7
      %v2898 = vsub.s32 0, %v2897
      %v2899 = vrot.slane %v2894, %v2898
      %v2909 = vunpack.c.l.b16 %v2886
      %v2910 = vunpack.c.l.b16 %v2887
      %v2911 = vunpack.c.l.b16 %v2888
      %v2912 = vunpack.c.l.b16 %v2889
      %v2913 = vunpack.c.l.b16 %v2890
      %v2914 = vunpack.c.l.b16 %v2891
      %v2915 = vunpack.c.l.b16 %v2892
      %v2916 = vunpack.c.l.b16 %v2893
      %v2917 = vpack.c.b16 %v2910, %v2909
      %v2918 = vpack.c.b16 %v2912, %v2911
      %v2919 = vpack.c.b16 %v2914, %v2913
      %v2920 = vpack.c.b16 %v2916, %v2915
      %v2926 = vsel %vm1901, %v2878, 0
      %v2929 = vsel %vm1901, %v2879, 0
      %v2932 = vsel %vm1901, %v2880, 0
      %v2935 = vsel %vm1901, %v2881, 0
      %v2938 = vsel %vm1901, %v2882, 0
      %v2941 = vsel %vm1901, %v2883, 0
      %v2944 = vsel %vm1901, %v2884, 0
      %v2947 = vsel %vm1901, %v2885, 0
      %2949 = vmatprep.subr.bf16.mxu0 0
      %2950 = vmatpush1.bf16.msra.mxu0 %v2917
      %2951 = vmatprep.subr.bf16.mxu0 0
      %2952 = vmatpush1.bf16.msra.mxu0 %v2918
      %2953 = vmatprep.subr.bf16.mxu0 0
      %2954 = vmatpush1.bf16.msra.mxu0 %v2919
      %2955 = vmatprep.subr.bf16.mxu0 0
      %2956 = vmatpush1.bf16.msra.mxu0 %v2920
      %2957 = vmatprep.subr.bf16.mxu0 0
      %2958 = vmatpush1.bf16.msra.mxu0 0
      %2959 = vmatprep.subr.bf16.mxu0 0
      %2960 = vmatpush1.bf16.msra.mxu0 0
      %2961 = vmatprep.subr.bf16.mxu0 0
      %2962 = vmatpush1.bf16.msra.mxu0 0
      %2963 = vmatprep.subr.bf16.mxu0 0
      %2964 = vmatpush1.bf16.msra.mxu0 0
      %2965 = vmatprep.subr.bf16.mxu0 0
      %2966 = vmatpush1.bf16.msra.mxu0 0
      %2967 = vmatprep.subr.bf16.mxu0 0
      %2968 = vmatpush1.bf16.msra.mxu0 0
      %2969 = vmatprep.subr.bf16.mxu0 0
      %2970 = vmatpush1.bf16.msra.mxu0 0
      %2971 = vmatprep.subr.bf16.mxu0 0
      %2972 = vmatpush1.bf16.msra.mxu0 0
      %2973 = vmatprep.subr.bf16.mxu0 0
      %2974 = vmatpush1.bf16.msra.mxu0 0
      %2975 = vmatprep.subr.bf16.mxu0 0
      %2976 = vmatpush1.bf16.msra.mxu0 0
      %2977 = vmatprep.subr.bf16.mxu0 0
      %2978 = vmatpush1.bf16.msra.mxu0 0
      %2979 = vmatprep.subr.bf16.mxu0 0
      %2980 = vmatpush1.bf16.msra.mxu0 0
      %2981 = vmatprep.mubr.bf16.mxu0 0
      %2982 = vmatmul.mubr.bf16.gmra.mrb[0].mxu0 %v2926
      %v2983 = vpop.f32.mrb[0].mxu0
      %v2984 = vadd.f32 %v2899, %v2983
      %v2985 = vpop.f32.mrb[0].mxu0
      %v2986 = vpop.f32.mrb[0].mxu0
      %v2987 = vadd.f32 %v2899, %v2986
      %v2988 = vpop.f32.mrb[0].mxu0
      %2989 = vmatprep.mubr.bf16.mxu0 0
      %2990 = vmatmul.mubr.bf16.gmra.mrb[0].mxu0 %v2929
      %v2991 = vpop.f32.mrb[0].mxu0
      %v2992 = vadd.f32 %v2899, %v2991
      %v2993 = vpop.f32.mrb[0].mxu0
      %v2994 = vpop.f32.mrb[0].mxu0
      %v2995 = vadd.f32 %v2899, %v2994
      %v2996 = vpop.f32.mrb[0].mxu0
      %2997 = vmatprep.mubr.bf16.mxu0 0
      %2998 = vmatmul.mubr.bf16.gmra.mrb[0].mxu0 %v2932
      %v2999 = vpop.f32.mrb[0].mxu0
      %v3000 = vadd.f32 %v2899, %v2999
      %v3001 = vpop.f32.mrb[0].mxu0
      %v3002 = vpop.f32.mrb[0].mxu0
      %v3003 = vadd.f32 %v2899, %v3002
      %v3004 = vpop.f32.mrb[0].mxu0
      %3005 = vmatprep.mubr.bf16.mxu0 0
      %3006 = vmatmul.mubr.bf16.gmra.mrb[0].mxu0 %v2935
      %v3007 = vpop.f32.mrb[0].mxu0
      %v3008 = vadd.f32 %v2899, %v3007
      %v3009 = vpop.f32.mrb[0].mxu0
      %v3010 = vpop.f32.mrb[0].mxu0
      %v3011 = vadd.f32 %v2899, %v3010
      %v3012 = vpop.f32.mrb[0].mxu0
      %3013 = vmatprep.mubr.bf16.mxu0 0
      %3014 = vmatmul.mubr.bf16.gmra.mrb[0].mxu0 %v2938
      %v3015 = vpop.f32.mrb[0].mxu0
      %v3016 = vadd.f32 %v2899, %v3015
      %v3017 = vpop.f32.mrb[0].mxu0
      %v3018 = vpop.f32.mrb[0].mxu0
      %v3019 = vadd.f32 %v2899, %v3018
      %v3020 = vpop.f32.mrb[0].mxu0
      %3021 = vmatprep.mubr.bf16.mxu0 0
      %3022 = vmatmul.mubr.bf16.gmra.mrb[0].mxu0 %v2941
      %v3023 = vpop.f32.mrb[0].mxu0
      %v3024 = vadd.f32 %v2899, %v3023
      %v3025 = vpop.f32.mrb[0].mxu0
      %v3026 = vpop.f32.mrb[0].mxu0
      %v3027 = vadd.f32 %v2899, %v3026
      %v3028 = vpop.f32.mrb[0].mxu0
      %3029 = vmatprep.mubr.bf16.mxu0 0
      %3030 = vmatmul.mubr.bf16.gmra.mrb[0].mxu0 %v2944
      %v3031 = vpop.f32.mrb[0].mxu0
      %v3032 = vadd.f32 %v2899, %v3031
      %v3033 = vpop.f32.mrb[0].mxu0
      %v3034 = vpop.f32.mrb[0].mxu0
      %v3035 = vadd.f32 %v2899, %v3034
      %v3036 = vpop.f32.mrb[0].mxu0
      %3037 = vmatprep.mubr.bf16.mxu0 0
      %3038 = vmatmul.mubr.bf16.gmra.mrb[0].mxu0 %v2947
      %v3039 = vpop.f32.mrb[0].mxu0
      %v3040 = vadd.f32 %v2899, %v3039
      %v3041 = vpop.f32.mrb[0].mxu0
      %v3042 = vpop.f32.mrb[0].mxu0
      %v3043 = vadd.f32 %v2899, %v3042
      %v3044 = vpop.f32.mrb[0].mxu0
      %3045 = vdwg.mxu0
      %v3046 = vmax.f32 %v2984, 0.0
      %v3047 = vmax.f32 %v2987, 0.0
      %v3048 = vmax.f32 %v2992, 0.0
      %v3049 = vmax.f32 %v2995, 0.0
      %v3050 = vmax.f32 %v3000, 0.0
      %v3051 = vmax.f32 %v3003, 0.0
      %v3052 = vmax.f32 %v3008, 0.0
      %v3053 = vmax.f32 %v3011, 0.0
      %v3054 = vmax.f32 %v3016, 0.0
      %v3055 = vmax.f32 %v3019, 0.0
      %v3056 = vmax.f32 %v3024, 0.0
      %v3057 = vmax.f32 %v3027, 0.0
      %v3058 = vmax.f32 %v3032, 0.0
      %v3059 = vmax.f32 %v3035, 0.0
      %v3060 = vmax.f32 %v3040, 0.0
      %v3061 = vmax.f32 %v3043, 0.0
      %v3062 = vpack.c.bf16 %v3047, %v3046
      %v3063 = vpack.c.bf16 %v3049, %v3048
      %v3064 = vpack.c.bf16 %v3051, %v3050
      %v3065 = vpack.c.bf16 %v3053, %v3052
      %v3066 = vpack.c.bf16 %v3055, %v3054
      %v3067 = vpack.c.bf16 %v3057, %v3056
      %v3068 = vpack.c.bf16 %v3059, %v3058
      %v3069 = vpack.c.bf16 %v3061, %v3060
      %v3070 = vld [vmem:[%s10] sm:$0xff]
      %v3071 = vld [vmem:[%s10 + $0x8] sm:$0xff]
      %v3072 = vld [vmem:[%s10 + $0x10] sm:$0xff]
      %v3073 = vld [vmem:[%s10 + $0x18] sm:$0xf]
      %v3074 = vld [vmem:[%s10 + $0x1c] sm:$0xff]
      %v3075 = vld [vmem:[%s10 + $0x24] sm:$0xff]
      %v3076 = vld [vmem:[%s10 + $0x2c] sm:$0xff]
      %v3077 = vld [vmem:[%s10 + $0x34] sm:$0xf]
      %v3078 = vld [vmem:[%s10 + $0x38] sm:$0xff]
      %v3079 = vld [vmem:[%s10 + $0x40] sm:$0xff]
      %v3080 = vld [vmem:[%s10 + $0x48] sm:$0xff]
      %v3081 = vld [vmem:[%s10 + $0x50] sm:$0xf]
      %v3082 = vld [vmem:[%s10 + $0x54] sm:$0xff]
      %v3083 = vld [vmem:[%s10 + $0x5c] sm:$0xff]
      %v3084 = vld [vmem:[%s10 + $0x64] sm:$0xff]
      %v3085 = vld [vmem:[%s10 + $0x6c] sm:$0xf]
      %v3086 = vld [vmem:[%s10 + $0x70] sm:$0xff]
      %v3087 = vld [vmem:[%s10 + $0x78] sm:$0xff]
      %v3088 = vld [vmem:[%s10 + $0x80] sm:$0xff]
      %v3089 = vld [vmem:[%s10 + $0x88] sm:$0xf]
      %v3090 = vld [vmem:[%s10 + $0x8c] sm:$0xff]
      %v3091 = vld [vmem:[%s10 + $0x94] sm:$0xff]
      %v3092 = vld [vmem:[%s10 + $0x9c] sm:$0xff]
      %v3093 = vld [vmem:[%s10 + $0xa4] sm:$0xf]
      %v3094 = vld [vmem:[%s10 + $0xa8] sm:$0xff]
      %v3095 = vld [vmem:[%s10 + $0xb0] sm:$0xff]
      %v3096 = vld [vmem:[%s10 + $0xb8] sm:$0xff]
      %v3097 = vld [vmem:[%s10 + $0xc0] sm:$0xf]
      %v3098 = vld [vmem:[%s10 + $0xc4] sm:$0xff]
      %v3099 = vld [vmem:[%s10 + $0xcc] sm:$0xff]
      %v3100 = vld [vmem:[%s10 + $0xd4] sm:$0xff]
      %v3101 = vld [vmem:[%s10 + $0xdc] sm:$0xf]
      %v3102 = vld [vmem:[%s10 + $0xe0] sm:$0xff]
      %v3103 = vld [vmem:[%s10 + $0xe8] sm:$0xff]
      %v3104 = vld [vmem:[%s10 + $0xf0] sm:$0xff]
      %v3105 = vld [vmem:[%s10 + $0xf8] sm:$0xf]
      %v3106 = vld [vmem:[%s10 + $0xfc] sm:$0xff]
      %v3107 = vld [vmem:[%s10 + $0x104] sm:$0xff]
      %v3108 = vld [vmem:[%s10 + $0x10c] sm:$0xff]
      %v3109 = vld [vmem:[%s10 + $0x114] sm:$0xf]
      %v3110 = vld [vmem:[%s10 + $0x118] sm:$0xff]
      %v3111 = vld [vmem:[%s10 + $0x120] sm:$0xff]
      %v3112 = vld [vmem:[%s10 + $0x128] sm:$0xff]
      %v3113 = vld [vmem:[%s10 + $0x130] sm:$0xf]
      %v3114 = vld [vmem:[%s10 + $0x134] sm:$0xff]
      %v3115 = vld [vmem:[%s10 + $0x13c] sm:$0xff]
      %v3116 = vld [vmem:[%s10 + $0x144] sm:$0xff]
      %v3117 = vld [vmem:[%s10 + $0x14c] sm:$0xf]
      %v3118 = vld [vmem:[%s10 + $0x150] sm:$0xff]
      %v3119 = vld [vmem:[%s10 + $0x158] sm:$0xff]
      %v3120 = vld [vmem:[%s10 + $0x160] sm:$0xff]
      %v3121 = vld [vmem:[%s10 + $0x168] sm:$0xf]
      %v3122 = vld [vmem:[%s10 + $0x16c] sm:$0xff]
      %v3123 = vld [vmem:[%s10 + $0x174] sm:$0xff]
      %v3124 = vld [vmem:[%s10 + $0x17c] sm:$0xff]
      %v3125 = vld [vmem:[%s10 + $0x184] sm:$0xf]
      %v3126 = vld [vmem:[%s10 + $0x188] sm:$0xff]
      %v3127 = vld [vmem:[%s10 + $0x190] sm:$0xff]
      %v3128 = vld [vmem:[%s10 + $0x198] sm:$0xff]
      %v3129 = vld [vmem:[%s10 + $0x1a0] sm:$0xf]
      %v3130 = vld [vmem:[%s10 + $0x1a4] sm:$0xff]
      %v3131 = vld [vmem:[%s10 + $0x1ac] sm:$0xff]
      %v3132 = vld [vmem:[%s10 + $0x1b4] sm:$0xff]
      %v3133 = vld [vmem:[%s10 + $0x1bc] sm:$0xf]
      %v3134 = vld [vmem:[%s20] sm:$0x7f]
      %v3136 = vlaneseq
      %v3137 = vshrl.u32 %v3136, 7
      %v3138 = vsub.s32 0, %v3137
      %v3139 = vrot.slane %v3134, %v3138
      %v3140 = vlaneseq
      %v3141 = vshrl.u32 %v3140, 7
      %v3142 = vsub.s32 1, %v3141
      %v3143 = vrot.slane %v3134, %v3142
      %v3144 = vlaneseq
      %v3145 = vshrl.u32 %v3144, 7
      %v3146 = vsub.s32 2, %v3145
      %v3147 = vrot.slane %v3134, %v3146
      %v3148 = vlaneseq
      %v3149 = vshrl.u32 %v3148, 7
      %v3150 = vsub.s32 3, %v3149
      %v3151 = vrot.slane %v3134, %v3150
      %v3152 = vlaneseq
      %v3153 = vshrl.u32 %v3152, 7
      %v3154 = vsub.s32 4, %v3153
      %v3155 = vrot.slane %v3134, %v3154
      %v3156 = vlaneseq
      %v3157 = vshrl.u32 %v3156, 7
      %v3158 = vsub.s32 5, %v3157
      %v3159 = vrot.slane %v3134, %v3158
      %v3160 = vlaneseq
      %v3161 = vshrl.u32 %v3160, 7
      %v3162 = vsub.s32 6, %v3161
      %v3163 = vrot.slane %v3134, %v3162
      %v3235 = vunpack.c.l.b16 %v3070
      %v3236 = vunpack.c.h.b16 %v3070
      %v3237 = vunpack.c.l.b16 %v3071
      %v3238 = vunpack.c.h.b16 %v3071
      %v3239 = vunpack.c.l.b16 %v3072
      %v3240 = vunpack.c.h.b16 %v3072
      %v3241 = vunpack.c.l.b16 %v3073
      %v3242 = vunpack.c.l.b16 %v3074
      %v3243 = vunpack.c.h.b16 %v3074
      %v3244 = vunpack.c.l.b16 %v3075
      %v3245 = vunpack.c.h.b16 %v3075
      %v3246 = vunpack.c.l.b16 %v3076
      %v3247 = vunpack.c.h.b16 %v3076
      %v3248 = vunpack.c.l.b16 %v3077
      %v3249 = vunpack.c.l.b16 %v3078
      %v3250 = vunpack.c.h.b16 %v3078
      %v3251 = vunpack.c.l.b16 %v3079
      %v3252 = vunpack.c.h.b16 %v3079
      %v3253 = vunpack.c.l.b16 %v3080
      %v3254 = vunpack.c.h.b16 %v3080
      %v3255 = vunpack.c.l.b16 %v3081
      %v3256 = vunpack.c.l.b16 %v3082
      %v3257 = vunpack.c.h.b16 %v3082
      %v3258 = vunpack.c.l.b16 %v3083
      %v3259 = vunpack.c.h.b16 %v3083
      %v3260 = vunpack.c.l.b16 %v3084
      %v3261 = vunpack.c.h.b16 %v3084
      %v3262 = vunpack.c.l.b16 %v3085
      %v3263 = vunpack.c.l.b16 %v3086
      %v3264 = vunpack.c.h.b16 %v3086
      %v3265 = vunpack.c.l.b16 %v3087
      %v3266 = vunpack.c.h.b16 %v3087
      %v3267 = vunpack.c.l.b16 %v3088
      %v3268 = vunpack.c.h.b16 %v3088
      %v3269 = vunpack.c.l.b16 %v3089
      %v3270 = vunpack.c.l.b16 %v3090
      %v3271 = vunpack.c.h.b16 %v3090
      %v3272 = vunpack.c.l.b16 %v3091
      %v3273 = vunpack.c.h.b16 %v3091
      %v3274 = vunpack.c.l.b16 %v3092
      %v3275 = vunpack.c.h.b16 %v3092
      %v3276 = vunpack.c.l.b16 %v3093
      %v3277 = vunpack.c.l.b16 %v3094
      %v3278 = vunpack.c.h.b16 %v3094
      %v3279 = vunpack.c.l.b16 %v3095
      %v3280 = vunpack.c.h.b16 %v3095
      %v3281 = vunpack.c.l.b16 %v3096
      %v3282 = vunpack.c.h.b16 %v3096
      %v3283 = vunpack.c.l.b16 %v3097
      %v3284 = vunpack.c.l.b16 %v3098
      %v3285 = vunpack.c.h.b16 %v3098
      %v3286 = vunpack.c.l.b16 %v3099
      %v3287 = vunpack.c.h.b16 %v3099
      %v3288 = vunpack.c.l.b16 %v3100
      %v3289 = vunpack.c.h.b16 %v3100
      %v3290 = vunpack.c.l.b16 %v3101
      %v3291 = vunpack.c.l.b16 %v3102
      %v3292 = vunpack.c.h.b16 %v3102
      %v3293 = vunpack.c.l.b16 %v3103
      %v3294 = vunpack.c.h.b16 %v3103
      %v3295 = vunpack.c.l.b16 %v3104
      %v3296 = vunpack.c.h.b16 %v3104
      %v3297 = vunpack.c.l.b16 %v3105
      %v3298 = vunpack.c.l.b16 %v3106
      %v3299 = vunpack.c.h.b16 %v3106
      %v3300 = vunpack.c.l.b16 %v3107
      %v3301 = vunpack.c.h.b16 %v3107
      %v3302 = vunpack.c.l.b16 %v3108
      %v3303 = vunpack.c.h.b16 %v3108
      %v3304 = vunpack.c.l.b16 %v3109
      %v3305 = vunpack.c.l.b16 %v3110
      %v3306 = vunpack.c.h.b16 %v3110
      %v3307 = vunpack.c.l.b16 %v3111
      %v3308 = vunpack.c.h.b16 %v3111
      %v3309 = vunpack.c.l.b16 %v3112
      %v3310 = vunpack.c.h.b16 %v3112
      %v3311 = vunpack.c.l.b16 %v3113
      %v3312 = vunpack.c.l.b16 %v3114
      %v3313 = vunpack.c.h.b16 %v3114
      %v3314 = vunpack.c.l.b16 %v3115
      %v3315 = vunpack.c.h.b16 %v3115
      %v3316 = vunpack.c.l.b16 %v3116
      %v3317 = vunpack.c.h.b16 %v3116
      %v3318 = vunpack.c.l.b16 %v3117
      %v3319 = vunpack.c.l.b16 %v3118
      %v3320 = vunpack.c.h.b16 %v3118
      %v3321 = vunpack.c.l.b16 %v3119
      %v3322 = vunpack.c.h.b16 %v3119
      %v3323 = vunpack.c.l.b16 %v3120
      %v3324 = vunpack.c.h.b16 %v3120
      %v3325 = vunpack.c.l.b16 %v3121
      %v3326 = vunpack.c.l.b16 %v3122
      %v3327 = vunpack.c.h.b16 %v3122
      %v3328 = vunpack.c.l.b16 %v3123
      %v3329 = vunpack.c.h.b16 %v3123
      %v3330 = vunpack.c.l.b16 %v3124
      %v3331 = vunpack.c.h.b16 %v3124
      %v3332 = vunpack.c.l.b16 %v3125
      %v3333 = vunpack.c.l.b16 %v3126
      %v3334 = vunpack.c.h.b16 %v3126
      %v3335 = vunpack.c.l.b16 %v3127
      %v3336 = vunpack.c.h.b16 %v3127
      %v3337 = vunpack.c.l.b16 %v3128
      %v3338 = vunpack.c.h.b16 %v3128
      %v3339 = vunpack.c.l.b16 %v3129
      %v3340 = vunpack.c.l.b16 %v3130
      %v3341 = vunpack.c.h.b16 %v3130
      %v3342 = vunpack.c.l.b16 %v3131
      %v3343 = vunpack.c.h.b16 %v3131
      %v3344 = vunpack.c.l.b16 %v3132
      %v3345 = vunpack.c.h.b16 %v3132
      %v3346 = vunpack.c.l.b16 %v3133
      %v3347 = vpack.c.b16 %v3242, %v3235
      %v3348 = vpack.c.b16 %v3243, %v3236
      %v3349 = vpack.c.b16 %v3244, %v3237
      %v3350 = vpack.c.b16 %v3245, %v3238
      %v3351 = vpack.c.b16 %v3246, %v3239
      %v3352 = vpack.c.b16 %v3247, %v3240
      %v3353 = vpack.c.b16 %v3248, %v3241
      %v3354 = vpack.c.b16 %v3256, %v3249
      %v3355 = vpack.c.b16 %v3257, %v3250
      %v3356 = vpack.c.b16 %v3258, %v3251
      %v3357 = vpack.c.b16 %v3259, %v3252
      %v3358 = vpack.c.b16 %v3260, %v3253
      %v3359 = vpack.c.b16 %v3261, %v3254
      %v3360 = vpack.c.b16 %v3262, %v3255
      %v3361 = vpack.c.b16 %v3270, %v3263
      %v3362 = vpack.c.b16 %v3271, %v3264
      %v3363 = vpack.c.b16 %v3272, %v3265
      %v3364 = vpack.c.b16 %v3273, %v3266
      %v3365 = vpack.c.b16 %v3274, %v3267
      %v3366 = vpack.c.b16 %v3275, %v3268
      %v3367 = vpack.c.b16 %v3276, %v3269
      %v3368 = vpack.c.b16 %v3284, %v3277
      %v3369 = vpack.c.b16 %v3285, %v3278
      %v3370 = vpack.c.b16 %v3286, %v3279
      %v3371 = vpack.c.b16 %v3287, %v3280
      %v3372 = vpack.c.b16 %v3288, %v3281
      %v3373 = vpack.c.b16 %v3289, %v3282
      %v3374 = vpack.c.b16 %v3290, %v3283
      %v3375 = vpack.c.b16 %v3298, %v3291
      %v3376 = vpack.c.b16 %v3299, %v3292
      %v3377 = vpack.c.b16 %v3300, %v3293
      %v3378 = vpack.c.b16 %v3301, %v3294
      %v3379 = vpack.c.b16 %v3302, %v3295
      %v3380 = vpack.c.b16 %v3303, %v3296
      %v3381 = vpack.c.b16 %v3304, %v3297
      %v3382 = vpack.c.b16 %v3312, %v3305
      %v3383 = vpack.c.b16 %v3313, %v3306
      %v3384 = vpack.c.b16 %v3314, %v3307
      %v3385 = vpack.c.b16 %v3315, %v3308
      %v3386 = vpack.c.b16 %v3316, %v3309
      %v3387 = vpack.c.b16 %v3317, %v3310
      %v3388 = vpack.c.b16 %v3318, %v3311
      %v3389 = vpack.c.b16 %v3326, %v3319
      %v3390 = vpack.c.b16 %v3327, %v3320
      %v3391 = vpack.c.b16 %v3328, %v3321
      %v3392 = vpack.c.b16 %v3329, %v3322
      %v3393 = vpack.c.b16 %v3330, %v3323
      %v3394 = vpack.c.b16 %v3331, %v3324
      %v3395 = vpack.c.b16 %v3332, %v3325
      %v3396 = vpack.c.b16 %v3340, %v3333
      %v3397 = vpack.c.b16 %v3341, %v3334
      %v3398 = vpack.c.b16 %v3342, %v3335
      %v3399 = vpack.c.b16 %v3343, %v3336
      %v3400 = vpack.c.b16 %v3344, %v3337
      %v3401 = vpack.c.b16 %v3345, %v3338
      %v3402 = vpack.c.b16 %v3346, %v3339
      %3459 = vmatprep.subr.bf16.mxu0 %v3348
      %3460 = vmatpush1.bf16.msra.mxu0 %v3347
      %3461 = vmatprep.subr.bf16.mxu0 %v3355
      %3462 = vmatpush1.bf16.msra.mxu0 %v3354
      %3463 = vmatprep.subr.bf16.mxu0 %v3362
      %3464 = vmatpush1.bf16.msra.mxu0 %v3361
      %3465 = vmatprep.subr.bf16.mxu0 %v3369
      %3466 = vmatpush1.bf16.msra.mxu0 %v3368
      %3467 = vmatprep.subr.bf16.mxu0 %v3376
      %3468 = vmatpush1.bf16.msra.mxu0 %v3375
      %3469 = vmatprep.subr.bf16.mxu0 %v3383
      %3470 = vmatpush1.bf16.msra.mxu0 %v3382
      %3471 = vmatprep.subr.bf16.mxu0 %v3390
      %3472 = vmatpush1.bf16.msra.mxu0 %v3389
      %3473 = vmatprep.subr.bf16.mxu0 %v3397
      %3474 = vmatpush1.bf16.msra.mxu0 %v3396
      %3475 = vmatprep.subr.bf16.mxu0 0
      %3476 = vmatpush1.bf16.msra.mxu0 0
      %3477 = vmatprep.subr.bf16.mxu0 0
      %3478 = vmatpush1.bf16.msra.mxu0 0
      %3479 = vmatprep.subr.bf16.mxu0 0
      %3480 = vmatpush1.bf16.msra.mxu0 0
      %3481 = vmatprep.subr.bf16.mxu0 0
      %3482 = vmatpush1.bf16.msra.mxu0 0
      %3483 = vmatprep.subr.bf16.mxu0 0
      %3484 = vmatpush1.bf16.msra.mxu0 0
      %3485 = vmatprep.subr.bf16.mxu0 0
      %3486 = vmatpush1.bf16.msra.mxu0 0
      %3487 = vmatprep.subr.bf16.mxu0 0
      %3488 = vmatpush1.bf16.msra.mxu0 0
      %3489 = vmatprep.subr.bf16.mxu0 0
      %3490 = vmatpush1.bf16.msra.mxu0 0
      %3491 = vmatprep.mubr.bf16.mxu0 0
      %3492 = vmatmul.mubr.bf16.gmra.mrb[0].mxu0 %v3062
      %v3493 = vpop.f32.mrb[0].mxu0
      %v3494 = vadd.f32 %v3139, %v3493
      %v3495 = vpop.f32.mrb[0].mxu0
      %v3496 = vadd.f32 %v3143, %v3495
      %v3497 = vpop.f32.mrb[0].mxu0
      %v3498 = vadd.f32 %v3139, %v3497
      %v3499 = vpop.f32.mrb[0].mxu0
      %v3500 = vadd.f32 %v3143, %v3499
      %3501 = vmatprep.mubr.bf16.mxu0 0
      %3502 = vmatmul.mubr.bf16.gmra.mrb[0].mxu0 %v3063
      %v3503 = vpop.f32.mrb[0].mxu0
      %v3504 = vadd.f32 %v3139, %v3503
      %v3505 = vpop.f32.mrb[0].mxu0
      %v3506 = vadd.f32 %v3143, %v3505
      %v3507 = vpop.f32.mrb[0].mxu0
      %v3508 = vadd.f32 %v3139, %v3507
      %v3509 = vpop.f32.mrb[0].mxu0
      %v3510 = vadd.f32 %v3143, %v3509
      %3511 = vmatprep.mubr.bf16.mxu0 0
      %3512 = vmatmul.mubr.bf16.gmra.mrb[0].mxu0 %v3064
      %v3513 = vpop.f32.mrb[0].mxu0
      %v3514 = vadd.f32 %v3139, %v3513
      %v3515 = vpop.f32.mrb[0].mxu0
      %v3516 = vadd.f32 %v3143, %v3515
      %v3517 = vpop.f32.mrb[0].mxu0
      %v3518 = vadd.f32 %v3139, %v3517
      %v3519 = vpop.f32.mrb[0].mxu0
      %v3520 = vadd.f32 %v3143, %v3519
      %3521 = vmatprep.mubr.bf16.mxu0 0
      %3522 = vmatmul.mubr.bf16.gmra.mrb[0].mxu0 %v3065
      %v3523 = vpop.f32.mrb[0].mxu0
      %v3524 = vadd.f32 %v3139, %v3523
      %v3525 = vpop.f32.mrb[0].mxu0
      %v3526 = vadd.f32 %v3143, %v3525
      %v3527 = vpop.f32.mrb[0].mxu0
      %v3528 = vadd.f32 %v3139, %v3527
      %v3529 = vpop.f32.mrb[0].mxu0
      %v3530 = vadd.f32 %v3143, %v3529
      %3531 = vmatprep.mubr.bf16.mxu0 0
      %3532 = vmatmul.mubr.bf16.gmra.mrb[0].mxu0 %v3066
      %v3533 = vpop.f32.mrb[0].mxu0
      %v3534 = vadd.f32 %v3139, %v3533
      %v3535 = vpop.f32.mrb[0].mxu0
      %v3536 = vadd.f32 %v3143, %v3535
      %v3537 = vpop.f32.mrb[0].mxu0
      %v3538 = vadd.f32 %v3139, %v3537
      %v3539 = vpop.f32.mrb[0].mxu0
      %v3540 = vadd.f32 %v3143, %v3539
      %3541 = vmatprep.mubr.bf16.mxu0 0
      %3542 = vmatmul.mubr.bf16.gmra.mrb[0].mxu0 %v3067
      %v3543 = vpop.f32.mrb[0].mxu0
      %v3544 = vadd.f32 %v3139, %v3543
      %v3545 = vpop.f32.mrb[0].mxu0
      %v3546 = vadd.f32 %v3143, %v3545
      %v3547 = vpop.f32.mrb[0].mxu0
      %v3548 = vadd.f32 %v3139, %v3547
      %v3549 = vpop.f32.mrb[0].mxu0
      %v3550 = vadd.f32 %v3143, %v3549
      %3551 = vmatprep.mubr.bf16.mxu0 0
      %3552 = vmatmul.mubr.bf16.gmra.mrb[0].mxu0 %v3068
      %v3553 = vpop.f32.mrb[0].mxu0
      %v3554 = vadd.f32 %v3139, %v3553
      %v3555 = vpop.f32.mrb[0].mxu0
      %v3556 = vadd.f32 %v3143, %v3555
      %v3557 = vpop.f32.mrb[0].mxu0
      %v3558 = vadd.f32 %v3139, %v3557
      %v3559 = vpop.f32.mrb[0].mxu0
      %v3560 = vadd.f32 %v3143, %v3559
      %3561 = vmatprep.mubr.bf16.mxu0 0
      %3562 = vmatmul.mubr.bf16.gmra.mrb[0].mxu0 %v3069
      %v3563 = vpop.f32.mrb[0].mxu0
      %v3564 = vadd.f32 %v3139, %v3563
      %v3565 = vpop.f32.mrb[0].mxu0
      %v3566 = vadd.f32 %v3143, %v3565
      %v3567 = vpop.f32.mrb[0].mxu0
      %v3568 = vadd.f32 %v3139, %v3567
      %v3569 = vpop.f32.mrb[0].mxu0
      %v3570 = vadd.f32 %v3143, %v3569
      %3571 = vdwg.mxu0
      %3572 = vmatprep.subr.bf16.mxu0 %v3350
      %3573 = vmatpush1.bf16.msra.mxu0 %v3349
      %3574 = vmatprep.subr.bf16.mxu0 %v3357
      %3575 = vmatpush1.bf16.msra.mxu0 %v3356
      %3576 = vmatprep.subr.bf16.mxu0 %v3364
      %3577 = vmatpush1.bf16.msra.mxu0 %v3363
      %3578 = vmatprep.subr.bf16.mxu0 %v3371
      %3579 = vmatpush1.bf16.msra.mxu0 %v3370
      %3580 = vmatprep.subr.bf16.mxu0 %v3378
      %3581 = vmatpush1.bf16.msra.mxu0 %v3377
      %3582 = vmatprep.subr.bf16.mxu0 %v3385
      %3583 = vmatpush1.bf16.msra.mxu0 %v3384
      %3584 = vmatprep.subr.bf16.mxu0 %v3392
      %3585 = vmatpush1.bf16.msra.mxu0 %v3391
      %3586 = vmatprep.subr.bf16.mxu0 %v3399
      %3587 = vmatpush1.bf16.msra.mxu0 %v3398
      %3588 = vmatprep.subr.bf16.mxu0 0
      %3589 = vmatpush1.bf16.msra.mxu0 0
      %3590 = vmatprep.subr.bf16.mxu0 0
      %3591 = vmatpush1.bf16.msra.mxu0 0
      %3592 = vmatprep.subr.bf16.mxu0 0
      %3593 = vmatpush1.bf16.msra.mxu0 0
      %3594 = vmatprep.subr.bf16.mxu0 0
      %3595 = vmatpush1.bf16.msra.mxu0 0
      %3596 = vmatprep.subr.bf16.mxu0 0
      %3597 = vmatpush1.bf16.msra.mxu0 0
      %3598 = vmatprep.subr.bf16.mxu0 0
      %3599 = vmatpush1.bf16.msra.mxu0 0
      %3600 = vmatprep.subr.bf16.mxu0 0
      %3601 = vmatpush1.bf16.msra.mxu0 0
      %3602 = vmatprep.subr.bf16.mxu0 0
      %3603 = vmatpush1.bf16.msra.mxu0 0
      %3604 = vmatprep.mubr.bf16.mxu0 0
      %3605 = vmatmul.mubr.bf16.gmra.mrb[0].mxu0 %v3062
      %v3606 = vpop.f32.mrb[0].mxu0
      %v3607 = vadd.f32 %v3147, %v3606
      %v3608 = vpop.f32.mrb[0].mxu0
      %v3609 = vadd.f32 %v3151, %v3608
      %v3610 = vpop.f32.mrb[0].mxu0
      %v3611 = vadd.f32 %v3147, %v3610
      %v3612 = vpop.f32.mrb[0].mxu0
      %v3613 = vadd.f32 %v3151, %v3612
      %3614 = vmatprep.mubr.bf16.mxu0 0
      %3615 = vmatmul.mubr.bf16.gmra.mrb[0].mxu0 %v3063
      %v3616 = vpop.f32.mrb[0].mxu0
      %v3617 = vadd.f32 %v3147, %v3616
      %v3618 = vpop.f32.mrb[0].mxu0
      %v3619 = vadd.f32 %v3151, %v3618
      %v3620 = vpop.f32.mrb[0].mxu0
      %v3621 = vadd.f32 %v3147, %v3620
      %v3622 = vpop.f32.mrb[0].mxu0
      %v3623 = vadd.f32 %v3151, %v3622
      %3624 = vmatprep.mubr.bf16.mxu0 0
      %3625 = vmatmul.mubr.bf16.gmra.mrb[0].mxu0 %v3064
      %v3626 = vpop.f32.mrb[0].mxu0
      %v3627 = vadd.f32 %v3147, %v3626
      %v3628 = vpop.f32.mrb[0].mxu0
      %v3629 = vadd.f32 %v3151, %v3628
      %v3630 = vpop.f32.mrb[0].mxu0
      %v3631 = vadd.f32 %v3147, %v3630
      %v3632 = vpop.f32.mrb[0].mxu0
      %v3633 = vadd.f32 %v3151, %v3632
      %3634 = vmatprep.mubr.bf16.mxu0 0
      %3635 = vmatmul.mubr.bf16.gmra.mrb[0].mxu0 %v3065
      %v3636 = vpop.f32.mrb[0].mxu0
      %v3637 = vadd.f32 %v3147, %v3636
      %v3638 = vpop.f32.mrb[0].mxu0
      %v3639 = vadd.f32 %v3151, %v3638
      %v3640 = vpop.f32.mrb[0].mxu0
      %v3641 = vadd.f32 %v3147, %v3640
      %v3642 = vpop.f32.mrb[0].mxu0
      %v3643 = vadd.f32 %v3151, %v3642
      %3644 = vmatprep.mubr.bf16.mxu0 0
      %3645 = vmatmul.mubr.bf16.gmra.mrb[0].mxu0 %v3066
      %v3646 = vpop.f32.mrb[0].mxu0
      %v3647 = vadd.f32 %v3147, %v3646
      %v3648 = vpop.f32.mrb[0].mxu0
      %v3649 = vadd.f32 %v3151, %v3648
      %v3650 = vpop.f32.mrb[0].mxu0
      %v3651 = vadd.f32 %v3147, %v3650
      %v3652 = vpop.f32.mrb[0].mxu0
      %v3653 = vadd.f32 %v3151, %v3652
      %3654 = vmatprep.mubr.bf16.mxu0 0
      %3655 = vmatmul.mubr.bf16.gmra.mrb[0].mxu0 %v3067
      %v3656 = vpop.f32.mrb[0].mxu0
      %v3657 = vadd.f32 %v3147, %v3656
      %v3658 = vpop.f32.mrb[0].mxu0
      %v3659 = vadd.f32 %v3151, %v3658
      %v3660 = vpop.f32.mrb[0].mxu0
      %v3661 = vadd.f32 %v3147, %v3660
      %v3662 = vpop.f32.mrb[0].mxu0
      %v3663 = vadd.f32 %v3151, %v3662
      %3664 = vmatprep.mubr.bf16.mxu0 0
      %3665 = vmatmul.mubr.bf16.gmra.mrb[0].mxu0 %v3068
      %v3666 = vpop.f32.mrb[0].mxu0
      %v3667 = vadd.f32 %v3147, %v3666
      %v3668 = vpop.f32.mrb[0].mxu0
      %v3669 = vadd.f32 %v3151, %v3668
      %v3670 = vpop.f32.mrb[0].mxu0
      %v3671 = vadd.f32 %v3147, %v3670
      %v3672 = vpop.f32.mrb[0].mxu0
      %v3673 = vadd.f32 %v3151, %v3672
      %3674 = vmatprep.mubr.bf16.mxu0 0
      %3675 = vmatmul.mubr.bf16.gmra.mrb[0].mxu0 %v3069
      %v3676 = vpop.f32.mrb[0].mxu0
      %v3677 = vadd.f32 %v3147, %v3676
      %v3678 = vpop.f32.mrb[0].mxu0
      %v3679 = vadd.f32 %v3151, %v3678
      %v3680 = vpop.f32.mrb[0].mxu0
      %v3681 = vadd.f32 %v3147, %v3680
      %v3682 = vpop.f32.mrb[0].mxu0
      %v3683 = vadd.f32 %v3151, %v3682
      %3684 = vdwg.mxu0
      %3685 = vmatprep.subr.bf16.mxu0 %v3352
      %3686 = vmatpush1.bf16.msra.mxu0 %v3351
      %3687 = vmatprep.subr.bf16.mxu0 %v3359
      %3688 = vmatpush1.bf16.msra.mxu0 %v3358
      %3689 = vmatprep.subr.bf16.mxu0 %v3366
      %3690 = vmatpush1.bf16.msra.mxu0 %v3365
      %3691 = vmatprep.subr.bf16.mxu0 %v3373
      %3692 = vmatpush1.bf16.msra.mxu0 %v3372
      %3693 = vmatprep.subr.bf16.mxu0 %v3380
      %3694 = vmatpush1.bf16.msra.mxu0 %v3379
      %3695 = vmatprep.subr.bf16.mxu0 %v3387
      %3696 = vmatpush1.bf16.msra.mxu0 %v3386
      %3697 = vmatprep.subr.bf16.mxu0 %v3394
      %3698 = vmatpush1.bf16.msra.mxu0 %v3393
      %3699 = vmatprep.subr.bf16.mxu0 %v3401
      %3700 = vmatpush1.bf16.msra.mxu0 %v3400
      %3701 = vmatprep.subr.bf16.mxu0 0
      %3702 = vmatpush1.bf16.msra.mxu0 0
      %3703 = vmatprep.subr.bf16.mxu0 0
      %3704 = vmatpush1.bf16.msra.mxu0 0
      %3705 = vmatprep.subr.bf16.mxu0 0
      %3706 = vmatpush1.bf16.msra.mxu0 0
      %3707 = vmatprep.subr.bf16.mxu0 0
      %3708 = vmatpush1.bf16.msra.mxu0 0
      %3709 = vmatprep.subr.bf16.mxu0 0
      %3710 = vmatpush1.bf16.msra.mxu0 0
      %3711 = vmatprep.subr.bf16.mxu0 0
      %3712 = vmatpush1.bf16.msra.mxu0 0
      %3713 = vmatprep.subr.bf16.mxu0 0
      %3714 = vmatpush1.bf16.msra.mxu0 0
      %3715 = vmatprep.subr.bf16.mxu0 0
      %3716 = vmatpush1.bf16.msra.mxu0 0
      %3717 = vmatprep.mubr.bf16.mxu0 0
      %3718 = vmatmul.mubr.bf16.gmra.mrb[0].mxu0 %v3062
      %v3719 = vpop.f32.mrb[0].mxu0
      %v3720 = vadd.f32 %v3155, %v3719
      %v3721 = vpop.f32.mrb[0].mxu0
      %v3722 = vadd.f32 %v3159, %v3721
      %v3723 = vpop.f32.mrb[0].mxu0
      %v3724 = vadd.f32 %v3155, %v3723
      %v3725 = vpop.f32.mrb[0].mxu0
      %v3726 = vadd.f32 %v3159, %v3725
      %3727 = vmatprep.mubr.bf16.mxu0 0
      %3728 = vmatmul.mubr.bf16.gmra.mrb[0].mxu0 %v3063
      %v3729 = vpop.f32.mrb[0].mxu0
      %v3730 = vadd.f32 %v3155, %v3729
      %v3731 = vpop.f32.mrb[0].mxu0
      %v3732 = vadd.f32 %v3159, %v3731
      %v3733 = vpop.f32.mrb[0].mxu0
      %v3734 = vadd.f32 %v3155, %v3733
      %v3735 = vpop.f32.mrb[0].mxu0
      %v3736 = vadd.f32 %v3159, %v3735
      %3737 = vmatprep.mubr.bf16.mxu0 0
      %3738 = vmatmul.mubr.bf16.gmra.mrb[0].mxu0 %v3064
      %v3739 = vpop.f32.mrb[0].mxu0
      %v3740 = vadd.f32 %v3155, %v3739
      %v3741 = vpop.f32.mrb[0].mxu0
      %v3742 = vadd.f32 %v3159, %v3741
      %v3743 = vpop.f32.mrb[0].mxu0
      %v3744 = vadd.f32 %v3155, %v3743
      %v3745 = vpop.f32.mrb[0].mxu0
      %v3746 = vadd.f32 %v3159, %v3745
      %3747 = vmatprep.mubr.bf16.mxu0 0
      %3748 = vmatmul.mubr.bf16.gmra.mrb[0].mxu0 %v3065
      %v3749 = vpop.f32.mrb[0].mxu0
      %v3750 = vadd.f32 %v3155, %v3749
      %v3751 = vpop.f32.mrb[0].mxu0
      %v3752 = vadd.f32 %v3159, %v3751
      %v3753 = vpop.f32.mrb[0].mxu0
      %v3754 = vadd.f32 %v3155, %v3753
      %v3755 = vpop.f32.mrb[0].mxu0
      %v3756 = vadd.f32 %v3159, %v3755
      %3757 = vmatprep.mubr.bf16.mxu0 0
      %3758 = vmatmul.mubr.bf16.gmra.mrb[0].mxu0 %v3066
      %v3759 = vpop.f32.mrb[0].mxu0
      %v3760 = vadd.f32 %v3155, %v3759
      %v3761 = vpop.f32.mrb[0].mxu0
      %v3762 = vadd.f32 %v3159, %v3761
      %v3763 = vpop.f32.mrb[0].mxu0
      %v3764 = vadd.f32 %v3155, %v3763
      %v3765 = vpop.f32.mrb[0].mxu0
      %v3766 = vadd.f32 %v3159, %v3765
      %3767 = vmatprep.mubr.bf16.mxu0 0
      %3768 = vmatmul.mubr.bf16.gmra.mrb[0].mxu0 %v3067
      %v3769 = vpop.f32.mrb[0].mxu0
      %v3770 = vadd.f32 %v3155, %v3769
      %v3771 = vpop.f32.mrb[0].mxu0
      %v3772 = vadd.f32 %v3159, %v3771
      %v3773 = vpop.f32.mrb[0].mxu0
      %v3774 = vadd.f32 %v3155, %v3773
      %v3775 = vpop.f32.mrb[0].mxu0
      %v3776 = vadd.f32 %v3159, %v3775
      %3777 = vmatprep.mubr.bf16.mxu0 0
      %3778 = vmatmul.mubr.bf16.gmra.mrb[0].mxu0 %v3068
      %v3779 = vpop.f32.mrb[0].mxu0
      %v3780 = vadd.f32 %v3155, %v3779
      %v3781 = vpop.f32.mrb[0].mxu0
      %v3782 = vadd.f32 %v3159, %v3781
      %v3783 = vpop.f32.mrb[0].mxu0
      %v3784 = vadd.f32 %v3155, %v3783
      %v3785 = vpop.f32.mrb[0].mxu0
      %v3786 = vadd.f32 %v3159, %v3785
      %3787 = vmatprep.mubr.bf16.mxu0 0
      %3788 = vmatmul.mubr.bf16.gmra.mrb[0].mxu0 %v3069
      %v3789 = vpop.f32.mrb[0].mxu0
      %v3790 = vadd.f32 %v3155, %v3789
      %v3791 = vpop.f32.mrb[0].mxu0
      %v3792 = vadd.f32 %v3159, %v3791
      %v3793 = vpop.f32.mrb[0].mxu0
      %v3794 = vadd.f32 %v3155, %v3793
      %v3795 = vpop.f32.mrb[0].mxu0
      %v3796 = vadd.f32 %v3159, %v3795
      %3797 = vdwg.mxu0
      %3798 = vmatprep.subr.bf16.mxu0 0
      %3799 = vmatpush1.bf16.msra.mxu0 %v3353
      %3800 = vmatprep.subr.bf16.mxu0 0
      %3801 = vmatpush1.bf16.msra.mxu0 %v3360
      %3802 = vmatprep.subr.bf16.mxu0 0
      %3803 = vmatpush1.bf16.msra.mxu0 %v3367
      %3804 = vmatprep.subr.bf16.mxu0 0
      %3805 = vmatpush1.bf16.msra.mxu0 %v3374
      %3806 = vmatprep.subr.bf16.mxu0 0
      %3807 = vmatpush1.bf16.msra.mxu0 %v3381
      %3808 = vmatprep.subr.bf16.mxu0 0
      %3809 = vmatpush1.bf16.msra.mxu0 %v3388
      %3810 = vmatprep.subr.bf16.mxu0 0
      %3811 = vmatpush1.bf16.msra.mxu0 %v3395
      %3812 = vmatprep.subr.bf16.mxu0 0
      %3813 = vmatpush1.bf16.msra.mxu0 %v3402
      %3814 = vmatprep.subr.bf16.mxu0 0
      %3815 = vmatpush1.bf16.msra.mxu0 0
      %3816 = vmatprep.subr.bf16.mxu0 0
      %3817 = vmatpush1.bf16.msra.mxu0 0
      %3818 = vmatprep.subr.bf16.mxu0 0
      %3819 = vmatpush1.bf16.msra.mxu0 0
      %3820 = vmatprep.subr.bf16.mxu0 0
      %3821 = vmatpush1.bf16.msra.mxu0 0
      %3822 = vmatprep.subr.bf16.mxu0 0
      %3823 = vmatpush1.bf16.msra.mxu0 0
      %3824 = vmatprep.subr.bf16.mxu0 0
      %3825 = vmatpush1.bf16.msra.mxu0 0
      %3826 = vmatprep.subr.bf16.mxu0 0
      %3827 = vmatpush1.bf16.msra.mxu0 0
      %3828 = vmatprep.subr.bf16.mxu0 0
      %3829 = vmatpush1.bf16.msra.mxu0 0
      %3830 = vmatprep.mubr.bf16.mxu0 0
      %3831 = vmatmul.mubr.bf16.gmra.mrb[0].mxu0 %v3062
      %v3832 = vpop.f32.mrb[0].mxu0
      %v3833 = vadd.f32 %v3163, %v3832
      %v3834 = vpop.f32.mrb[0].mxu0
      %v3835 = vpop.f32.mrb[0].mxu0
      %v3836 = vadd.f32 %v3163, %v3835
      %v3837 = vpop.f32.mrb[0].mxu0
      %3838 = vmatprep.mubr.bf16.mxu0 0
      %3839 = vmatmul.mubr.bf16.gmra.mrb[0].mxu0 %v3063
      %v3840 = vpop.f32.mrb[0].mxu0
      %v3841 = vadd.f32 %v3163, %v3840
      %v3842 = vpop.f32.mrb[0].mxu0
      %v3843 = vpop.f32.mrb[0].mxu0
      %v3844 = vadd.f32 %v3163, %v3843
      %v3845 = vpop.f32.mrb[0].mxu0
      %3846 = vmatprep.mubr.bf16.mxu0 0
      %3847 = vmatmul.mubr.bf16.gmra.mrb[0].mxu0 %v3064
      %v3848 = vpop.f32.mrb[0].mxu0
      %v3849 = vadd.f32 %v3163, %v3848
      %v3850 = vpop.f32.mrb[0].mxu0
      %v3851 = vpop.f32.mrb[0].mxu0
      %v3852 = vadd.f32 %v3163, %v3851
      %v3853 = vpop.f32.mrb[0].mxu0
      %3854 = vmatprep.mubr.bf16.mxu0 0
      %3855 = vmatmul.mubr.bf16.gmra.mrb[0].mxu0 %v3065
      %v3856 = vpop.f32.mrb[0].mxu0
      %v3857 = vadd.f32 %v3163, %v3856
      %v3858 = vpop.f32.mrb[0].mxu0
      %v3859 = vpop.f32.mrb[0].mxu0
      %v3860 = vadd.f32 %v3163, %v3859
      %v3861 = vpop.f32.mrb[0].mxu0
      %3862 = vmatprep.mubr.bf16.mxu0 0
      %3863 = vmatmul.mubr.bf16.gmra.mrb[0].mxu0 %v3066
      %v3864 = vpop.f32.mrb[0].mxu0
      %v3865 = vadd.f32 %v3163, %v3864
      %v3866 = vpop.f32.mrb[0].mxu0
      %v3867 = vpop.f32.mrb[0].mxu0
      %v3868 = vadd.f32 %v3163, %v3867
      %v3869 = vpop.f32.mrb[0].mxu0
      %3870 = vmatprep.mubr.bf16.mxu0 0
      %3871 = vmatmul.mubr.bf16.gmra.mrb[0].mxu0 %v3067
      %v3872 = vpop.f32.mrb[0].mxu0
      %v3873 = vadd.f32 %v3163, %v3872
      %v3874 = vpop.f32.mrb[0].mxu0
      %v3875 = vpop.f32.mrb[0].mxu0
      %v3876 = vadd.f32 %v3163, %v3875
      %v3877 = vpop.f32.mrb[0].mxu0
      %3878 = vmatprep.mubr.bf16.mxu0 0
      %3879 = vmatmul.mubr.bf16.gmra.mrb[0].mxu0 %v3068
      %v3880 = vpop.f32.mrb[0].mxu0
      %v3881 = vadd.f32 %v3163, %v3880
      %v3882 = vpop.f32.mrb[0].mxu0
      %v3883 = vpop.f32.mrb[0].mxu0
      %v3884 = vadd.f32 %v3163, %v3883
      %v3885 = vpop.f32.mrb[0].mxu0
      %3886 = vmatprep.mubr.bf16.mxu0 0
      %3887 = vmatmul.mubr.bf16.gmra.mrb[0].mxu0 %v3069
      %v3888 = vpop.f32.mrb[0].mxu0
      %v3889 = vadd.f32 %v3163, %v3888
      %v3890 = vpop.f32.mrb[0].mxu0
      %v3891 = vpop.f32.mrb[0].mxu0
      %v3892 = vadd.f32 %v3163, %v3891
      %v3893 = vpop.f32.mrb[0].mxu0
      %3894 = vdwg.mxu0
      %v3895 = vxor.u32 %v3494, 2147483648
      %v3896 = vxor.u32 %v3496, 2147483648
      %v3897 = vxor.u32 %v3607, 2147483648
      %v3898 = vxor.u32 %v3609, 2147483648
      %v3899 = vxor.u32 %v3720, 2147483648
      %v3900 = vxor.u32 %v3722, 2147483648
      %v3901 = vxor.u32 %v3833, 2147483648
      %v3902 = vxor.u32 %v3498, 2147483648
      %v3903 = vxor.u32 %v3500, 2147483648
      %v3904 = vxor.u32 %v3611, 2147483648
      %v3905 = vxor.u32 %v3613, 2147483648
      %v3906 = vxor.u32 %v3724, 2147483648
      %v3907 = vxor.u32 %v3726, 2147483648
      %v3908 = vxor.u32 %v3836, 2147483648
      %v3909 = vxor.u32 %v3504, 2147483648
      %v3910 = vxor.u32 %v3506, 2147483648
      %v3911 = vxor.u32 %v3617, 2147483648
      %v3912 = vxor.u32 %v3619, 2147483648
      %v3913 = vxor.u32 %v3730, 2147483648
      %v3914 = vxor.u32 %v3732, 2147483648
      %v3915 = vxor.u32 %v3841, 2147483648
      %v3916 = vxor.u32 %v3508, 2147483648
      %v3917 = vxor.u32 %v3510, 2147483648
      %v3918 = vxor.u32 %v3621, 2147483648
      %v3919 = vxor.u32 %v3623, 2147483648
      %v3920 = vxor.u32 %v3734, 2147483648
      %v3921 = vxor.u32 %v3736, 2147483648
      %v3922 = vxor.u32 %v3844, 2147483648
      %v3923 = vxor.u32 %v3514, 2147483648
      %v3924 = vxor.u32 %v3516, 2147483648
      %v3925 = vxor.u32 %v3627, 2147483648
      %v3926 = vxor.u32 %v3629, 2147483648
      %v3927 = vxor.u32 %v3740, 2147483648
      %v3928 = vxor.u32 %v3742, 2147483648
      %v3929 = vxor.u32 %v3849, 2147483648
      %v3930 = vxor.u32 %v3518, 2147483648
      %v3931 = vxor.u32 %v3520, 2147483648
      %v3932 = vxor.u32 %v3631, 2147483648
      %v3933 = vxor.u32 %v3633, 2147483648
      %v3934 = vxor.u32 %v3744, 2147483648
      %v3935 = vxor.u32 %v3746, 2147483648
      %v3936 = vxor.u32 %v3852, 2147483648
      %v3937 = vxor.u32 %v3524, 2147483648
      %v3938 = vxor.u32 %v3526, 2147483648
      %v3939 = vxor.u32 %v3637, 2147483648
      %v3940 = vxor.u32 %v3639, 2147483648
      %v3941 = vxor.u32 %v3750, 2147483648
      %v3942 = vxor.u32 %v3752, 2147483648
      %v3943 = vxor.u32 %v3857, 2147483648
      %v3944 = vxor.u32 %v3528, 2147483648
      %v3945 = vxor.u32 %v3530, 2147483648
      %v3946 = vxor.u32 %v3641, 2147483648
      %v3947 = vxor.u32 %v3643, 2147483648
      %v3948 = vxor.u32 %v3754, 2147483648
      %v3949 = vxor.u32 %v3756, 2147483648
      %v3950 = vxor.u32 %v3860, 2147483648
      %v3951 = vxor.u32 %v3534, 2147483648
      %v3952 = vxor.u32 %v3536, 2147483648
      %v3953 = vxor.u32 %v3647, 2147483648
      %v3954 = vxor.u32 %v3649, 2147483648
      %v3955 = vxor.u32 %v3760, 2147483648
      %v3956 = vxor.u32 %v3762, 2147483648
      %v3957 = vxor.u32 %v3865, 2147483648
      %v3958 = vxor.u32 %v3538, 2147483648
      %v3959 = vxor.u32 %v3540, 2147483648
      %v3960 = vxor.u32 %v3651, 2147483648
      %v3961 = vxor.u32 %v3653, 2147483648
      %v3962 = vxor.u32 %v3764, 2147483648
      %v3963 = vxor.u32 %v3766, 2147483648
      %v3964 = vxor.u32 %v3868, 2147483648
      %v3965 = vxor.u32 %v3544, 2147483648
      %v3966 = vxor.u32 %v3546, 2147483648
      %v3967 = vxor.u32 %v3657, 2147483648
      %v3968 = vxor.u32 %v3659, 2147483648
      %v3969 = vxor.u32 %v3770, 2147483648
      %v3970 = vxor.u32 %v3772, 2147483648
      %v3971 = vxor.u32 %v3873, 2147483648
      %v3972 = vxor.u32 %v3548, 2147483648
      %v3973 = vxor.u32 %v3550, 2147483648
      %v3974 = vxor.u32 %v3661, 2147483648
      %v3975 = vxor.u32 %v3663, 2147483648
      %v3976 = vxor.u32 %v3774, 2147483648
      %v3977 = vxor.u32 %v3776, 2147483648
      %v3978 = vxor.u32 %v3876, 2147483648
      %v3979 = vxor.u32 %v3554, 2147483648
      %v3980 = vxor.u32 %v3556, 2147483648
      %v3981 = vxor.u32 %v3667, 2147483648
      %v3982 = vxor.u32 %v3669, 2147483648
      %v3983 = vxor.u32 %v3780, 2147483648
      %v3984 = vxor.u32 %v3782, 2147483648
      %v3985 = vxor.u32 %v3881, 2147483648
      %v3986 = vxor.u32 %v3558, 2147483648
      %v3987 = vxor.u32 %v3560, 2147483648
      %v3988 = vxor.u32 %v3671, 2147483648
      %v3989 = vxor.u32 %v3673, 2147483648
      %v3990 = vxor.u32 %v3784, 2147483648
      %v3991 = vxor.u32 %v3786, 2147483648
      %v3992 = vxor.u32 %v3884, 2147483648
      %v3993 = vxor.u32 %v3564, 2147483648
      %v3994 = vxor.u32 %v3566, 2147483648
      %v3995 = vxor.u32 %v3677, 2147483648
      %v3996 = vxor.u32 %v3679, 2147483648
      %v3997 = vxor.u32 %v3790, 2147483648
      %v3998 = vxor.u32 %v3792, 2147483648
      %v3999 = vxor.u32 %v3889, 2147483648
      %v4000 = vxor.u32 %v3568, 2147483648
      %v4001 = vxor.u32 %v3570, 2147483648
      %v4002 = vxor.u32 %v3681, 2147483648
      %v4003 = vxor.u32 %v3683, 2147483648
      %v4004 = vxor.u32 %v3794, 2147483648
      %v4005 = vxor.u32 %v3796, 2147483648
      %v4006 = vxor.u32 %v3892, 2147483648
      %v4007 = vmul.f32 %v3895, 1.442695
      %v4008 = vpow.pop %v4007
      %v4009 = vmul.f32 %v3896, 1.442695
      %v4010 = vpow.pop %v4009
      %v4011 = vmul.f32 %v3897, 1.442695
      %v4012 = vpow.pop %v4011
      %v4013 = vmul.f32 %v3898, 1.442695
      %v4014 = vpow.pop %v4013
      %v4015 = vmul.f32 %v3899, 1.442695
      %v4016 = vpow.pop %v4015
      %v4017 = vmul.f32 %v3900, 1.442695
      %v4018 = vpow.pop %v4017
      %v4019 = vmul.f32 %v3901, 1.442695
      %v4020 = vpow.pop %v4019
      %v4021 = vmul.f32 %v3902, 1.442695
      %v4022 = vpow.pop %v4021
      %v4023 = vmul.f32 %v3903, 1.442695
      %v4024 = vpow.pop %v4023
      %v4025 = vmul.f32 %v3904, 1.442695
      %v4026 = vpow.pop %v4025
      %v4027 = vmul.f32 %v3905, 1.442695
      %v4028 = vpow.pop %v4027
      %v4029 = vmul.f32 %v3906, 1.442695
      %v4030 = vpow.pop %v4029
      %v4031 = vmul.f32 %v3907, 1.442695
      %v4032 = vpow.pop %v4031
      %v4033 = vmul.f32 %v3908, 1.442695
      %v4034 = vpow.pop %v4033
      %v4035 = vmul.f32 %v3909, 1.442695
      %v4036 = vpow.pop %v4035
      %v4037 = vmul.f32 %v3910, 1.442695
      %v4038 = vpow.pop %v4037
      %v4039 = vmul.f32 %v3911, 1.442695
      %v4040 = vpow.pop %v4039
      %v4041 = vmul.f32 %v3912, 1.442695
      %v4042 = vpow.pop %v4041
      %v4043 = vmul.f32 %v3913, 1.442695
      %v4044 = vpow.pop %v4043
      %v4045 = vmul.f32 %v3914, 1.442695
      %v4046 = vpow.pop %v4045
      %v4047 = vmul.f32 %v3915, 1.442695
      %v4048 = vpow.pop %v4047
      %v4049 = vmul.f32 %v3916, 1.442695
      %v4050 = vpow.pop %v4049
      %v4051 = vmul.f32 %v3917, 1.442695
      %v4052 = vpow.pop %v4051
      %v4053 = vmul.f32 %v3918, 1.442695
      %v4054 = vpow.pop %v4053
      %v4055 = vmul.f32 %v3919, 1.442695
      %v4056 = vpow.pop %v4055
      %v4057 = vmul.f32 %v3920, 1.442695
      %v4058 = vpow.pop %v4057
      %v4059 = vmul.f32 %v3921, 1.442695
      %v4060 = vpow.pop %v4059
      %v4061 = vmul.f32 %v3922, 1.442695
      %v4062 = vpow.pop %v4061
      %v4063 = vmul.f32 %v3923, 1.442695
      %v4064 = vpow.pop %v4063
      %v4065 = vmul.f32 %v3924, 1.442695
      %v4066 = vpow.pop %v4065
      %v4067 = vmul.f32 %v3925, 1.442695
      %v4068 = vpow.pop %v4067
      %v4069 = vmul.f32 %v3926, 1.442695
      %v4070 = vpow.pop %v4069
      %v4071 = vmul.f32 %v3927, 1.442695
      %v4072 = vpow.pop %v4071
      %v4073 = vmul.f32 %v3928, 1.442695
      %v4074 = vpow.pop %v4073
      %v4075 = vmul.f32 %v3929, 1.442695
      %v4076 = vpow.pop %v4075
      %v4077 = vmul.f32 %v3930, 1.442695
      %v4078 = vpow.pop %v4077
      %v4079 = vmul.f32 %v3931, 1.442695
      %v4080 = vpow.pop %v4079
      %v4081 = vmul.f32 %v3932, 1.442695
      %v4082 = vpow.pop %v4081
      %v4083 = vmul.f32 %v3933, 1.442695
      %v4084 = vpow.pop %v4083
      %v4085 = vmul.f32 %v3934, 1.442695
      %v4086 = vpow.pop %v4085
      %v4087 = vmul.f32 %v3935, 1.442695
      %v4088 = vpow.pop %v4087
      %v4089 = vmul.f32 %v3936, 1.442695
      %v4090 = vpow.pop %v4089
      %v4091 = vmul.f32 %v3937, 1.442695
      %v4092 = vpow.pop %v4091
      %v4093 = vmul.f32 %v3938, 1.442695
      %v4094 = vpow.pop %v4093
      %v4095 = vmul.f32 %v3939, 1.442695
      %v4096 = vpow.pop %v4095
      %v4097 = vmul.f32 %v3940, 1.442695
      %v4098 = vpow.pop %v4097
      %v4099 = vmul.f32 %v3941, 1.442695
      %v4100 = vpow.pop %v4099
      %v4101 = vmul.f32 %v3942, 1.442695
      %v4102 = vpow.pop %v4101
      %v4103 = vmul.f32 %v3943, 1.442695
      %v4104 = vpow.pop %v4103
      %v4105 = vmul.f32 %v3944, 1.442695
      %v4106 = vpow.pop %v4105
      %v4107 = vmul.f32 %v3945, 1.442695
      %v4108 = vpow.pop %v4107
      %v4109 = vmul.f32 %v3946, 1.442695
      %v4110 = vpow.pop %v4109
      %v4111 = vmul.f32 %v3947, 1.442695
      %v4112 = vpow.pop %v4111
      %v4113 = vmul.f32 %v3948, 1.442695
      %v4114 = vpow.pop %v4113
      %v4115 = vmul.f32 %v3949, 1.442695
      %v4116 = vpow.pop %v4115
      %v4117 = vmul.f32 %v3950, 1.442695
      %v4118 = vpow.pop %v4117
      %v4119 = vmul.f32 %v3951, 1.442695
      %v4120 = vpow.pop %v4119
      %v4121 = vmul.f32 %v3952, 1.442695
      %v4122 = vpow.pop %v4121
      %v4123 = vmul.f32 %v3953, 1.442695
      %v4124 = vpow.pop %v4123
      %v4125 = vmul.f32 %v3954, 1.442695
      %v4126 = vpow.pop %v4125
      %v4127 = vmul.f32 %v3955, 1.442695
      %v4128 = vpow.pop %v4127
      %v4129 = vmul.f32 %v3956, 1.442695
      %v4130 = vpow.pop %v4129
      %v4131 = vmul.f32 %v3957, 1.442695
      %v4132 = vpow.pop %v4131
      %v4133 = vmul.f32 %v3958, 1.442695
      %v4134 = vpow.pop %v4133
      %v4135 = vmul.f32 %v3959, 1.442695
      %v4136 = vpow.pop %v4135
      %v4137 = vmul.f32 %v3960, 1.442695
      %v4138 = vpow.pop %v4137
      %v4139 = vmul.f32 %v3961, 1.442695
      %v4140 = vpow.pop %v4139
      %v4141 = vmul.f32 %v3962, 1.442695
      %v4142 = vpow.pop %v4141
      %v4143 = vmul.f32 %v3963, 1.442695
      %v4144 = vpow.pop %v4143
      %v4145 = vmul.f32 %v3964, 1.442695
      %v4146 = vpow.pop %v4145
      %v4147 = vmul.f32 %v3965, 1.442695
      %v4148 = vpow.pop %v4147
      %v4149 = vmul.f32 %v3966, 1.442695
      %v4150 = vpow.pop %v4149
      %v4151 = vmul.f32 %v3967, 1.442695
      %v4152 = vpow.pop %v4151
      %v4153 = vmul.f32 %v3968, 1.442695
      %v4154 = vpow.pop %v4153
      %v4155 = vmul.f32 %v3969, 1.442695
      %v4156 = vpow.pop %v4155
      %v4157 = vmul.f32 %v3970, 1.442695
      %v4158 = vpow.pop %v4157
      %v4159 = vmul.f32 %v3971, 1.442695
      %v4160 = vpow.pop %v4159
      %v4161 = vmul.f32 %v3972, 1.442695
      %v4162 = vpow.pop %v4161
      %v4163 = vmul.f32 %v3973, 1.442695
      %v4164 = vpow.pop %v4163
      %v4165 = vmul.f32 %v3974, 1.442695
      %v4166 = vpow.pop %v4165
      %v4167 = vmul.f32 %v3975, 1.442695
      %v4168 = vpow.pop %v4167
      %v4169 = vmul.f32 %v3976, 1.442695
      %v4170 = vpow.pop %v4169
      %v4171 = vmul.f32 %v3977, 1.442695
      %v4172 = vpow.pop %v4171
      %v4173 = vmul.f32 %v3978, 1.442695
      %v4174 = vpow.pop %v4173
      %v4175 = vmul.f32 %v3979, 1.442695
      %v4176 = vpow.pop %v4175
      %v4177 = vmul.f32 %v3980, 1.442695
      %v4178 = vpow.pop %v4177
      %v4179 = vmul.f32 %v3981, 1.442695
      %v4180 = vpow.pop %v4179
      %v4181 = vmul.f32 %v3982, 1.442695
      %v4182 = vpow.pop %v4181
      %v4183 = vmul.f32 %v3983, 1.442695
      %v4184 = vpow.pop %v4183
      %v4185 = vmul.f32 %v3984, 1.442695
      %v4186 = vpow.pop %v4185
      %v4187 = vmul.f32 %v3985, 1.442695
      %v4188 = vpow.pop %v4187
      %v4189 = vmul.f32 %v3986, 1.442695
      %v4190 = vpow.pop %v4189
      %v4191 = vmul.f32 %v3987, 1.442695
      %v4192 = vpow.pop %v4191
      %v4193 = vmul.f32 %v3988, 1.442695
      %v4194 = vpow.pop %v4193
      %v4195 = vmul.f32 %v3989, 1.442695
      %v4196 = vpow.pop %v4195
      %v4197 = vmul.f32 %v3990, 1.442695
      %v4198 = vpow.pop %v4197
      %v4199 = vmul.f32 %v3991, 1.442695
      %v4200 = vpow.pop %v4199
      %v4201 = vmul.f32 %v3992, 1.442695
      %v4202 = vpow.pop %v4201
      %v4203 = vmul.f32 %v3993, 1.442695
      %v4204 = vpow.pop %v4203
      %v4205 = vmul.f32 %v3994, 1.442695
      %v4206 = vpow.pop %v4205
      %v4207 = vmul.f32 %v3995, 1.442695
      %v4208 = vpow.pop %v4207
      %v4209 = vmul.f32 %v3996, 1.442695
      %v4210 = vpow.pop %v4209
      %v4211 = vmul.f32 %v3997, 1.442695
      %v4212 = vpow.pop %v4211
      %v4213 = vmul.f32 %v3998, 1.442695
      %v4214 = vpow.pop %v4213
      %v4215 = vmul.f32 %v3999, 1.442695
      %v4216 = vpow.pop %v4215
      %v4217 = vmul.f32 %v4000, 1.442695
      %v4218 = vpow.pop %v4217
      %v4219 = vmul.f32 %v4001, 1.442695
      %v4220 = vpow.pop %v4219
      %v4221 = vmul.f32 %v4002, 1.442695
      %v4222 = vpow.pop %v4221
      %v4223 = vmul.f32 %v4003, 1.442695
      %v4224 = vpow.pop %v4223
      %v4225 = vmul.f32 %v4004, 1.442695
      %v4226 = vpow.pop %v4225
      %v4227 = vmul.f32 %v4005, 1.442695
      %v4228 = vpow.pop %v4227
      %v4229 = vmul.f32 %v4006, 1.442695
      %v4230 = vpow.pop %v4229
      %v4231 = vadd.f32 %v4008, 1.0
      %v4232 = vadd.f32 %v4010, 1.0
      %v4233 = vadd.f32 %v4012, 1.0
      %v4234 = vadd.f32 %v4014, 1.0
      %v4235 = vadd.f32 %v4016, 1.0
      %v4236 = vadd.f32 %v4018, 1.0
      %v4237 = vadd.f32 %v4020, 1.0
      %v4238 = vadd.f32 %v4022, 1.0
      %v4239 = vadd.f32 %v4024, 1.0
      %v4240 = vadd.f32 %v4026, 1.0
      %v4241 = vadd.f32 %v4028, 1.0
      %v4242 = vadd.f32 %v4030, 1.0
      %v4243 = vadd.f32 %v4032, 1.0
      %v4244 = vadd.f32 %v4034, 1.0
      %v4245 = vadd.f32 %v4036, 1.0
      %v4246 = vadd.f32 %v4038, 1.0
      %v4247 = vadd.f32 %v4040, 1.0
      %v4248 = vadd.f32 %v4042, 1.0
      %v4249 = vadd.f32 %v4044, 1.0
      %v4250 = vadd.f32 %v4046, 1.0
      %v4251 = vadd.f32 %v4048, 1.0
      %v4252 = vadd.f32 %v4050, 1.0
      %v4253 = vadd.f32 %v4052, 1.0
      %v4254 = vadd.f32 %v4054, 1.0
      %v4255 = vadd.f32 %v4056, 1.0
      %v4256 = vadd.f32 %v4058, 1.0
      %v4257 = vadd.f32 %v4060, 1.0
      %v4258 = vadd.f32 %v4062, 1.0
      %v4259 = vadd.f32 %v4064, 1.0
      %v4260 = vadd.f32 %v4066, 1.0
      %v4261 = vadd.f32 %v4068, 1.0
      %v4262 = vadd.f32 %v4070, 1.0
      %v4263 = vadd.f32 %v4072, 1.0
      %v4264 = vadd.f32 %v4074, 1.0
      %v4265 = vadd.f32 %v4076, 1.0
      %v4266 = vadd.f32 %v4078, 1.0
      %v4267 = vadd.f32 %v4080, 1.0
      %v4268 = vadd.f32 %v4082, 1.0
      %v4269 = vadd.f32 %v4084, 1.0
      %v4270 = vadd.f32 %v4086, 1.0
      %v4271 = vadd.f32 %v4088, 1.0
      %v4272 = vadd.f32 %v4090, 1.0
      %v4273 = vadd.f32 %v4092, 1.0
      %v4274 = vadd.f32 %v4094, 1.0
      %v4275 = vadd.f32 %v4096, 1.0
      %v4276 = vadd.f32 %v4098, 1.0
      %v4277 = vadd.f32 %v4100, 1.0
      %v4278 = vadd.f32 %v4102, 1.0
      %v4279 = vadd.f32 %v4104, 1.0
      %v4280 = vadd.f32 %v4106, 1.0
      %v4281 = vadd.f32 %v4108, 1.0
      %v4282 = vadd.f32 %v4110, 1.0
      %v4283 = vadd.f32 %v4112, 1.0
      %v4284 = vadd.f32 %v4114, 1.0
      %v4285 = vadd.f32 %v4116, 1.0
      %v4286 = vadd.f32 %v4118, 1.0
      %v4287 = vadd.f32 %v4120, 1.0
      %v4288 = vadd.f32 %v4122, 1.0
      %v4289 = vadd.f32 %v4124, 1.0
      %v4290 = vadd.f32 %v4126, 1.0
      %v4291 = vadd.f32 %v4128, 1.0
      %v4292 = vadd.f32 %v4130, 1.0
      %v4293 = vadd.f32 %v4132, 1.0
      %v4294 = vadd.f32 %v4134, 1.0
      %v4295 = vadd.f32 %v4136, 1.0
      %v4296 = vadd.f32 %v4138, 1.0
      %v4297 = vadd.f32 %v4140, 1.0
      %v4298 = vadd.f32 %v4142, 1.0
      %v4299 = vadd.f32 %v4144, 1.0
      %v4300 = vadd.f32 %v4146, 1.0
      %v4301 = vadd.f32 %v4148, 1.0
      %v4302 = vadd.f32 %v4150, 1.0
      %v4303 = vadd.f32 %v4152, 1.0
      %v4304 = vadd.f32 %v4154, 1.0
      %v4305 = vadd.f32 %v4156, 1.0
      %v4306 = vadd.f32 %v4158, 1.0
      %v4307 = vadd.f32 %v4160, 1.0
      %v4308 = vadd.f32 %v4162, 1.0
      %v4309 = vadd.f32 %v4164, 1.0
      %v4310 = vadd.f32 %v4166, 1.0
      %v4311 = vadd.f32 %v4168, 1.0
      %v4312 = vadd.f32 %v4170, 1.0
      %v4313 = vadd.f32 %v4172, 1.0
      %v4314 = vadd.f32 %v4174, 1.0
      %v4315 = vadd.f32 %v4176, 1.0
      %v4316 = vadd.f32 %v4178, 1.0
      %v4317 = vadd.f32 %v4180, 1.0
      %v4318 = vadd.f32 %v4182, 1.0
      %v4319 = vadd.f32 %v4184, 1.0
      %v4320 = vadd.f32 %v4186, 1.0
      %v4321 = vadd.f32 %v4188, 1.0
      %v4322 = vadd.f32 %v4190, 1.0
      %v4323 = vadd.f32 %v4192, 1.0
      %v4324 = vadd.f32 %v4194, 1.0
      %v4325 = vadd.f32 %v4196, 1.0
      %v4326 = vadd.f32 %v4198, 1.0
      %v4327 = vadd.f32 %v4200, 1.0
      %v4328 = vadd.f32 %v4202, 1.0
      %v4329 = vadd.f32 %v4204, 1.0
      %v4330 = vadd.f32 %v4206, 1.0
      %v4331 = vadd.f32 %v4208, 1.0
      %v4332 = vadd.f32 %v4210, 1.0
      %v4333 = vadd.f32 %v4212, 1.0
      %v4334 = vadd.f32 %v4214, 1.0
      %v4335 = vadd.f32 %v4216, 1.0
      %v4336 = vadd.f32 %v4218, 1.0
      %v4337 = vadd.f32 %v4220, 1.0
      %v4338 = vadd.f32 %v4222, 1.0
      %v4339 = vadd.f32 %v4224, 1.0
      %v4340 = vadd.f32 %v4226, 1.0
      %v4341 = vadd.f32 %v4228, 1.0
      %v4342 = vadd.f32 %v4230, 1.0
      %v4343 = vrcp.pop %v4231
      %v4344 = vmul.f32 1.0, %v4343
      %v4345 = vrcp.pop %v4232
      %v4346 = vmul.f32 1.0, %v4345
      %v4347 = vrcp.pop %v4233
      %v4348 = vmul.f32 1.0, %v4347
      %v4349 = vrcp.pop %v4234
      %v4350 = vmul.f32 1.0, %v4349
      %v4351 = vrcp.pop %v4235
      %v4352 = vmul.f32 1.0, %v4351
      %v4353 = vrcp.pop %v4236
      %v4354 = vmul.f32 1.0, %v4353
      %v4355 = vrcp.pop %v4237
      %v4356 = vmul.f32 1.0, %v4355
      %v4357 = vrcp.pop %v4238
      %v4358 = vmul.f32 1.0, %v4357
      %v4359 = vrcp.pop %v4239
      %v4360 = vmul.f32 1.0, %v4359
      %v4361 = vrcp.pop %v4240
      %v4362 = vmul.f32 1.0, %v4361
      %v4363 = vrcp.pop %v4241
      %v4364 = vmul.f32 1.0, %v4363
      %v4365 = vrcp.pop %v4242
      %v4366 = vmul.f32 1.0, %v4365
      %v4367 = vrcp.pop %v4243
      %v4368 = vmul.f32 1.0, %v4367
      %v4369 = vrcp.pop %v4244
      %v4370 = vmul.f32 1.0, %v4369
      %v4371 = vrcp.pop %v4245
      %v4372 = vmul.f32 1.0, %v4371
      %v4373 = vrcp.pop %v4246
      %v4374 = vmul.f32 1.0, %v4373
      %v4375 = vrcp.pop %v4247
      %v4376 = vmul.f32 1.0, %v4375
      %v4377 = vrcp.pop %v4248
      %v4378 = vmul.f32 1.0, %v4377
      %v4379 = vrcp.pop %v4249
      %v4380 = vmul.f32 1.0, %v4379
      %v4381 = vrcp.pop %v4250
      %v4382 = vmul.f32 1.0, %v4381
      %v4383 = vrcp.pop %v4251
      %v4384 = vmul.f32 1.0, %v4383
      %v4385 = vrcp.pop %v4252
      %v4386 = vmul.f32 1.0, %v4385
      %v4387 = vrcp.pop %v4253
      %v4388 = vmul.f32 1.0, %v4387
      %v4389 = vrcp.pop %v4254
      %v4390 = vmul.f32 1.0, %v4389
      %v4391 = vrcp.pop %v4255
      %v4392 = vmul.f32 1.0, %v4391
      %v4393 = vrcp.pop %v4256
      %v4394 = vmul.f32 1.0, %v4393
      %v4395 = vrcp.pop %v4257
      %v4396 = vmul.f32 1.0, %v4395
      %v4397 = vrcp.pop %v4258
      %v4398 = vmul.f32 1.0, %v4397
      %v4399 = vrcp.pop %v4259
      %v4400 = vmul.f32 1.0, %v4399
      %v4401 = vrcp.pop %v4260
      %v4402 = vmul.f32 1.0, %v4401
      %v4403 = vrcp.pop %v4261
      %v4404 = vmul.f32 1.0, %v4403
      %v4405 = vrcp.pop %v4262
      %v4406 = vmul.f32 1.0, %v4405
      %v4407 = vrcp.pop %v4263
      %v4408 = vmul.f32 1.0, %v4407
      %v4409 = vrcp.pop %v4264
      %v4410 = vmul.f32 1.0, %v4409
      %v4411 = vrcp.pop %v4265
      %v4412 = vmul.f32 1.0, %v4411
      %v4413 = vrcp.pop %v4266
      %v4414 = vmul.f32 1.0, %v4413
      %v4415 = vrcp.pop %v4267
      %v4416 = vmul.f32 1.0, %v4415
      %v4417 = vrcp.pop %v4268
      %v4418 = vmul.f32 1.0, %v4417
      %v4419 = vrcp.pop %v4269
      %v4420 = vmul.f32 1.0, %v4419
      %v4421 = vrcp.pop %v4270
      %v4422 = vmul.f32 1.0, %v4421
      %v4423 = vrcp.pop %v4271
      %v4424 = vmul.f32 1.0, %v4423
      %v4425 = vrcp.pop %v4272
      %v4426 = vmul.f32 1.0, %v4425
      %v4427 = vrcp.pop %v4273
      %v4428 = vmul.f32 1.0, %v4427
      %v4429 = vrcp.pop %v4274
      %v4430 = vmul.f32 1.0, %v4429
      %v4431 = vrcp.pop %v4275
      %v4432 = vmul.f32 1.0, %v4431
      %v4433 = vrcp.pop %v4276
      %v4434 = vmul.f32 1.0, %v4433
      %v4435 = vrcp.pop %v4277
      %v4436 = vmul.f32 1.0, %v4435
      %v4437 = vrcp.pop %v4278
      %v4438 = vmul.f32 1.0, %v4437
      %v4439 = vrcp.pop %v4279
      %v4440 = vmul.f32 1.0, %v4439
      %v4441 = vrcp.pop %v4280
      %v4442 = vmul.f32 1.0, %v4441
      %v4443 = vrcp.pop %v4281
      %v4444 = vmul.f32 1.0, %v4443
      %v4445 = vrcp.pop %v4282
      %v4446 = vmul.f32 1.0, %v4445
      %v4447 = vrcp.pop %v4283
      %v4448 = vmul.f32 1.0, %v4447
      %v4449 = vrcp.pop %v4284
      %v4450 = vmul.f32 1.0, %v4449
      %v4451 = vrcp.pop %v4285
      %v4452 = vmul.f32 1.0, %v4451
      %v4453 = vrcp.pop %v4286
      %v4454 = vmul.f32 1.0, %v4453
      %v4455 = vrcp.pop %v4287
      %v4456 = vmul.f32 1.0, %v4455
      %v4457 = vrcp.pop %v4288
      %v4458 = vmul.f32 1.0, %v4457
      %v4459 = vrcp.pop %v4289
      %v4460 = vmul.f32 1.0, %v4459
      %v4461 = vrcp.pop %v4290
      %v4462 = vmul.f32 1.0, %v4461
      %v4463 = vrcp.pop %v4291
      %v4464 = vmul.f32 1.0, %v4463
      %v4465 = vrcp.pop %v4292
      %v4466 = vmul.f32 1.0, %v4465
      %v4467 = vrcp.pop %v4293
      %v4468 = vmul.f32 1.0, %v4467
      %v4469 = vrcp.pop %v4294
      %v4470 = vmul.f32 1.0, %v4469
      %v4471 = vrcp.pop %v4295
      %v4472 = vmul.f32 1.0, %v4471
      %v4473 = vrcp.pop %v4296
      %v4474 = vmul.f32 1.0, %v4473
      %v4475 = vrcp.pop %v4297
      %v4476 = vmul.f32 1.0, %v4475
      %v4477 = vrcp.pop %v4298
      %v4478 = vmul.f32 1.0, %v4477
      %v4479 = vrcp.pop %v4299
      %v4480 = vmul.f32 1.0, %v4479
      %v4481 = vrcp.pop %v4300
      %v4482 = vmul.f32 1.0, %v4481
      %v4483 = vrcp.pop %v4301
      %v4484 = vmul.f32 1.0, %v4483
      %v4485 = vrcp.pop %v4302
      %v4486 = vmul.f32 1.0, %v4485
      %v4487 = vrcp.pop %v4303
      %v4488 = vmul.f32 1.0, %v4487
      %v4489 = vrcp.pop %v4304
      %v4490 = vmul.f32 1.0, %v4489
      %v4491 = vrcp.pop %v4305
      %v4492 = vmul.f32 1.0, %v4491
      %v4493 = vrcp.pop %v4306
      %v4494 = vmul.f32 1.0, %v4493
      %v4495 = vrcp.pop %v4307
      %v4496 = vmul.f32 1.0, %v4495
      %v4497 = vrcp.pop %v4308
      %v4498 = vmul.f32 1.0, %v4497
      %v4499 = vrcp.pop %v4309
      %v4500 = vmul.f32 1.0, %v4499
      %v4501 = vrcp.pop %v4310
      %v4502 = vmul.f32 1.0, %v4501
      %v4503 = vrcp.pop %v4311
      %v4504 = vmul.f32 1.0, %v4503
      %v4505 = vrcp.pop %v4312
      %v4506 = vmul.f32 1.0, %v4505
      %v4507 = vrcp.pop %v4313
      %v4508 = vmul.f32 1.0, %v4507
      %v4509 = vrcp.pop %v4314
      %v4510 = vmul.f32 1.0, %v4509
      %v4511 = vrcp.pop %v4315
      %v4512 = vmul.f32 1.0, %v4511
      %v4513 = vrcp.pop %v4316
      %v4514 = vmul.f32 1.0, %v4513
      %v4515 = vrcp.pop %v4317
      %v4516 = vmul.f32 1.0, %v4515
      %v4517 = vrcp.pop %v4318
      %v4518 = vmul.f32 1.0, %v4517
      %v4519 = vrcp.pop %v4319
      %v4520 = vmul.f32 1.0, %v4519
      %v4521 = vrcp.pop %v4320
      %v4522 = vmul.f32 1.0, %v4521
      %v4523 = vrcp.pop %v4321
      %v4524 = vmul.f32 1.0, %v4523
      %v4525 = vrcp.pop %v4322
      %v4526 = vmul.f32 1.0, %v4525
      %v4527 = vrcp.pop %v4323
      %v4528 = vmul.f32 1.0, %v4527
      %v4529 = vrcp.pop %v4324
      %v4530 = vmul.f32 1.0, %v4529
      %v4531 = vrcp.pop %v4325
      %v4532 = vmul.f32 1.0, %v4531
      %v4533 = vrcp.pop %v4326
      %v4534 = vmul.f32 1.0, %v4533
      %v4535 = vrcp.pop %v4327
      %v4536 = vmul.f32 1.0, %v4535
      %v4537 = vrcp.pop %v4328
      %v4538 = vmul.f32 1.0, %v4537
      %v4539 = vrcp.pop %v4329
      %v4540 = vmul.f32 1.0, %v4539
      %v4541 = vrcp.pop %v4330
      %v4542 = vmul.f32 1.0, %v4541
      %v4543 = vrcp.pop %v4331
      %v4544 = vmul.f32 1.0, %v4543
      %v4545 = vrcp.pop %v4332
      %v4546 = vmul.f32 1.0, %v4545
      %v4547 = vrcp.pop %v4333
      %v4548 = vmul.f32 1.0, %v4547
      %v4549 = vrcp.pop %v4334
      %v4550 = vmul.f32 1.0, %v4549
      %v4551 = vrcp.pop %v4335
      %v4552 = vmul.f32 1.0, %v4551
      %v4553 = vrcp.pop %v4336
      %v4554 = vmul.f32 1.0, %v4553
      %v4555 = vrcp.pop %v4337
      %v4556 = vmul.f32 1.0, %v4555
      %v4557 = vrcp.pop %v4338
      %v4558 = vmul.f32 1.0, %v4557
      %v4559 = vrcp.pop %v4339
      %v4560 = vmul.f32 1.0, %v4559
      %v4561 = vrcp.pop %v4340
      %v4562 = vmul.f32 1.0, %v4561
      %v4563 = vrcp.pop %v4341
      %v4564 = vmul.f32 1.0, %v4563
      %v4565 = vrcp.pop %v4342
      %v4566 = vmul.f32 1.0, %v4565
      %v4567 = vpack.c.bf16 %v4358, %v4344
      %v4568 = vpack.c.bf16 %v4360, %v4346
      %v4569 = vpack.c.bf16 %v4362, %v4348
      %v4570 = vpack.c.bf16 %v4364, %v4350
      %v4571 = vpack.c.bf16 %v4366, %v4352
      %v4572 = vpack.c.bf16 %v4368, %v4354
      %v4573 = vpack.c.bf16 %v4370, %v4356
      %v4574 = vpack.c.bf16 %v4386, %v4372
      %v4575 = vpack.c.bf16 %v4388, %v4374
      %v4576 = vpack.c.bf16 %v4390, %v4376
      %v4577 = vpack.c.bf16 %v4392, %v4378
      %v4578 = vpack.c.bf16 %v4394, %v4380
      %v4579 = vpack.c.bf16 %v4396, %v4382
      %v4580 = vpack.c.bf16 %v4398, %v4384
      %v4581 = vpack.c.bf16 %v4414, %v4400
      %v4582 = vpack.c.bf16 %v4416, %v4402
      %v4583 = vpack.c.bf16 %v4418, %v4404
      %v4584 = vpack.c.bf16 %v4420, %v4406
      %v4585 = vpack.c.bf16 %v4422, %v4408
      %v4586 = vpack.c.bf16 %v4424, %v4410
      %v4587 = vpack.c.bf16 %v4426, %v4412
      %v4588 = vpack.c.bf16 %v4442, %v4428
      %v4589 = vpack.c.bf16 %v4444, %v4430
      %v4590 = vpack.c.bf16 %v4446, %v4432
      %v4591 = vpack.c.bf16 %v4448, %v4434
      %v4592 = vpack.c.bf16 %v4450, %v4436
      %v4593 = vpack.c.bf16 %v4452, %v4438
      %v4594 = vpack.c.bf16 %v4454, %v4440
      %v4595 = vpack.c.bf16 %v4470, %v4456
      %v4596 = vpack.c.bf16 %v4472, %v4458
      %v4597 = vpack.c.bf16 %v4474, %v4460
      %v4598 = vpack.c.bf16 %v4476, %v4462
      %v4599 = vpack.c.bf16 %v4478, %v4464
      %v4600 = vpack.c.bf16 %v4480, %v4466
      %v4601 = vpack.c.bf16 %v4482, %v4468
      %v4602 = vpack.c.bf16 %v4498, %v4484
      %v4603 = vpack.c.bf16 %v4500, %v4486
      %v4604 = vpack.c.bf16 %v4502, %v4488
      %v4605 = vpack.c.bf16 %v4504, %v4490
      %v4606 = vpack.c.bf16 %v4506, %v4492
      %v4607 = vpack.c.bf16 %v4508, %v4494
      %v4608 = vpack.c.bf16 %v4510, %v4496
      %v4609 = vpack.c.bf16 %v4526, %v4512
      %v4610 = vpack.c.bf16 %v4528, %v4514
      %v4611 = vpack.c.bf16 %v4530, %v4516
      %v4612 = vpack.c.bf16 %v4532, %v4518
      %v4613 = vpack.c.bf16 %v4534, %v4520
      %v4614 = vpack.c.bf16 %v4536, %v4522
      %v4615 = vpack.c.bf16 %v4538, %v4524
      %v4616 = vpack.c.bf16 %v4554, %v4540
      %v4617 = vpack.c.bf16 %v4556, %v4542
      %v4618 = vpack.c.bf16 %v4558, %v4544
      %v4619 = vpack.c.bf16 %v4560, %v4546
      %v4620 = vpack.c.bf16 %v4562, %v4548
      %v4621 = vpack.c.bf16 %v4564, %v4550
      %v4622 = vpack.c.bf16 %v4566, %v4552
      %v4679 = vunpack.c.l.b16 %v4567
      %v4680 = vunpack.c.l.b16 %v4568
      %v4681 = vunpack.c.l.b16 %v4569
      %v4682 = vunpack.c.l.b16 %v4570
      %v4683 = vunpack.c.l.b16 %v4571
      %v4684 = vunpack.c.l.b16 %v4572
      %v4685 = vunpack.c.l.b16 %v4573
      %v4686 = vunpack.c.h.b16 %v4567
      %v4687 = vunpack.c.h.b16 %v4568
      %v4688 = vunpack.c.h.b16 %v4569
      %v4689 = vunpack.c.h.b16 %v4570
      %v4690 = vunpack.c.h.b16 %v4571
      %v4691 = vunpack.c.h.b16 %v4572
      %v4692 = vunpack.c.h.b16 %v4573
      %v4693 = vunpack.c.l.b16 %v4574
      %v4694 = vunpack.c.l.b16 %v4575
      %v4695 = vunpack.c.l.b16 %v4576
      %v4696 = vunpack.c.l.b16 %v4577
      %v4697 = vunpack.c.l.b16 %v4578
      %v4698 = vunpack.c.l.b16 %v4579
      %v4699 = vunpack.c.l.b16 %v4580
      %v4700 = vunpack.c.h.b16 %v4574
      %v4701 = vunpack.c.h.b16 %v4575
      %v4702 = vunpack.c.h.b16 %v4576
      %v4703 = vunpack.c.h.b16 %v4577
      %v4704 = vunpack.c.h.b16 %v4578
      %v4705 = vunpack.c.h.b16 %v4579
      %v4706 = vunpack.c.h.b16 %v4580
      %v4707 = vunpack.c.l.b16 %v4581
      %v4708 = vunpack.c.l.b16 %v4582
      %v4709 = vunpack.c.l.b16 %v4583
      %v4710 = vunpack.c.l.b16 %v4584
      %v4711 = vunpack.c.l.b16 %v4585
      %v4712 = vunpack.c.l.b16 %v4586
      %v4713 = vunpack.c.l.b16 %v4587
      %v4714 = vunpack.c.h.b16 %v4581
      %v4715 = vunpack.c.h.b16 %v4582
      %v4716 = vunpack.c.h.b16 %v4583
      %v4717 = vunpack.c.h.b16 %v4584
      %v4718 = vunpack.c.h.b16 %v4585
      %v4719 = vunpack.c.h.b16 %v4586
      %v4720 = vunpack.c.h.b16 %v4587
      %v4721 = vunpack.c.l.b16 %v4588
      %v4722 = vunpack.c.l.b16 %v4589
      %v4723 = vunpack.c.l.b16 %v4590
      %v4724 = vunpack.c.l.b16 %v4591
      %v4725 = vunpack.c.l.b16 %v4592
      %v4726 = vunpack.c.l.b16 %v4593
      %v4727 = vunpack.c.l.b16 %v4594
      %v4728 = vunpack.c.h.b16 %v4588
      %v4729 = vunpack.c.h.b16 %v4589
      %v4730 = vunpack.c.h.b16 %v4590
      %v4731 = vunpack.c.h.b16 %v4591
      %v4732 = vunpack.c.h.b16 %v4592
      %v4733 = vunpack.c.h.b16 %v4593
      %v4734 = vunpack.c.h.b16 %v4594
      %v4735 = vunpack.c.l.b16 %v4595
      %v4736 = vunpack.c.l.b16 %v4596
      %v4737 = vunpack.c.l.b16 %v4597
      %v4738 = vunpack.c.l.b16 %v4598
      %v4739 = vunpack.c.l.b16 %v4599
      %v4740 = vunpack.c.l.b16 %v4600
      %v4741 = vunpack.c.l.b16 %v4601
      %v4742 = vunpack.c.h.b16 %v4595
      %v4743 = vunpack.c.h.b16 %v4596
      %v4744 = vunpack.c.h.b16 %v4597
      %v4745 = vunpack.c.h.b16 %v4598
      %v4746 = vunpack.c.h.b16 %v4599
      %v4747 = vunpack.c.h.b16 %v4600
      %v4748 = vunpack.c.h.b16 %v4601
      %v4749 = vunpack.c.l.b16 %v4602
      %v4750 = vunpack.c.l.b16 %v4603
      %v4751 = vunpack.c.l.b16 %v4604
      %v4752 = vunpack.c.l.b16 %v4605
      %v4753 = vunpack.c.l.b16 %v4606
      %v4754 = vunpack.c.l.b16 %v4607
      %v4755 = vunpack.c.l.b16 %v4608
      %v4756 = vunpack.c.h.b16 %v4602
      %v4757 = vunpack.c.h.b16 %v4603
      %v4758 = vunpack.c.h.b16 %v4604
      %v4759 = vunpack.c.h.b16 %v4605
      %v4760 = vunpack.c.h.b16 %v4606
      %v4761 = vunpack.c.h.b16 %v4607
      %v4762 = vunpack.c.h.b16 %v4608
      %v4763 = vunpack.c.l.b16 %v4609
      %v4764 = vunpack.c.l.b16 %v4610
      %v4765 = vunpack.c.l.b16 %v4611
      %v4766 = vunpack.c.l.b16 %v4612
      %v4767 = vunpack.c.l.b16 %v4613
      %v4768 = vunpack.c.l.b16 %v4614
      %v4769 = vunpack.c.l.b16 %v4615
      %v4770 = vunpack.c.h.b16 %v4609
      %v4771 = vunpack.c.h.b16 %v4610
      %v4772 = vunpack.c.h.b16 %v4611
      %v4773 = vunpack.c.h.b16 %v4612
      %v4774 = vunpack.c.h.b16 %v4613
      %v4775 = vunpack.c.h.b16 %v4614
      %v4776 = vunpack.c.h.b16 %v4615
      %v4777 = vunpack.c.l.b16 %v4616
      %v4778 = vunpack.c.l.b16 %v4617
      %v4779 = vunpack.c.l.b16 %v4618
      %v4780 = vunpack.c.l.b16 %v4619
      %v4781 = vunpack.c.l.b16 %v4620
      %v4782 = vunpack.c.l.b16 %v4621
      %v4783 = vunpack.c.l.b16 %v4622
      %v4784 = vunpack.c.h.b16 %v4616
      %v4785 = vunpack.c.h.b16 %v4617
      %v4786 = vunpack.c.h.b16 %v4618
      %v4787 = vunpack.c.h.b16 %v4619
      %v4788 = vunpack.c.h.b16 %v4620
      %v4789 = vunpack.c.h.b16 %v4621
      %v4790 = vunpack.c.h.b16 %v4622
      %v4791 = vpack.c.b16 %v4680, %v4679
      %v4792 = vpack.c.b16 %v4682, %v4681
      %v4793 = vpack.c.b16 %v4684, %v4683
      %v4794 = vpack.c.b16 %v4685, %v4685
      %v4795 = vpack.c.b16 %v4687, %v4686
      %v4796 = vpack.c.b16 %v4689, %v4688
      %v4797 = vpack.c.b16 %v4691, %v4690
      %v4798 = vpack.c.b16 %v4692, %v4692
      %v4799 = vpack.c.b16 %v4694, %v4693
      %v4800 = vpack.c.b16 %v4696, %v4695
      %v4801 = vpack.c.b16 %v4698, %v4697
      %v4802 = vpack.c.b16 %v4699, %v4699
      %v4803 = vpack.c.b16 %v4701, %v4700
      %v4804 = vpack.c.b16 %v4703, %v4702
      %v4805 = vpack.c.b16 %v4705, %v4704
      %v4806 = vpack.c.b16 %v4706, %v4706
      %v4807 = vpack.c.b16 %v4708, %v4707
      %v4808 = vpack.c.b16 %v4710, %v4709
      %v4809 = vpack.c.b16 %v4712, %v4711
      %v4810 = vpack.c.b16 %v4713, %v4713
      %v4811 = vpack.c.b16 %v4715, %v4714
      %v4812 = vpack.c.b16 %v4717, %v4716
      %v4813 = vpack.c.b16 %v4719, %v4718
      %v4814 = vpack.c.b16 %v4720, %v4720
      %v4815 = vpack.c.b16 %v4722, %v4721
      %v4816 = vpack.c.b16 %v4724, %v4723
      %v4817 = vpack.c.b16 %v4726, %v4725
      %v4818 = vpack.c.b16 %v4727, %v4727
      %v4819 = vpack.c.b16 %v4729, %v4728
      %v4820 = vpack.c.b16 %v4731, %v4730
      %v4821 = vpack.c.b16 %v4733, %v4732
      %v4822 = vpack.c.b16 %v4734, %v4734
      %v4823 = vpack.c.b16 %v4736, %v4735
      %v4824 = vpack.c.b16 %v4738, %v4737
      %v4825 = vpack.c.b16 %v4740, %v4739
      %v4826 = vpack.c.b16 %v4741, %v4741
      %v4827 = vpack.c.b16 %v4743, %v4742
      %v4828 = vpack.c.b16 %v4745, %v4744
      %v4829 = vpack.c.b16 %v4747, %v4746
      %v4830 = vpack.c.b16 %v4748, %v4748
      %v4831 = vpack.c.b16 %v4750, %v4749
      %v4832 = vpack.c.b16 %v4752, %v4751
      %v4833 = vpack.c.b16 %v4754, %v4753
      %v4834 = vpack.c.b16 %v4755, %v4755
      %v4835 = vpack.c.b16 %v4757, %v4756
      %v4836 = vpack.c.b16 %v4759, %v4758
      %v4837 = vpack.c.b16 %v4761, %v4760
      %v4838 = vpack.c.b16 %v4762, %v4762
      %v4839 = vpack.c.b16 %v4764, %v4763
      %v4840 = vpack.c.b16 %v4766, %v4765
      %v4841 = vpack.c.b16 %v4768, %v4767
      %v4842 = vpack.c.b16 %v4769, %v4769
      %v4843 = vpack.c.b16 %v4771, %v4770
      %v4844 = vpack.c.b16 %v4773, %v4772
      %v4845 = vpack.c.b16 %v4775, %v4774
      %v4846 = vpack.c.b16 %v4776, %v4776
      %v4847 = vpack.c.b16 %v4778, %v4777
      %v4848 = vpack.c.b16 %v4780, %v4779
      %v4849 = vpack.c.b16 %v4782, %v4781
      %v4850 = vpack.c.b16 %v4783, %v4783
      %v4851 = vpack.c.b16 %v4785, %v4784
      %v4852 = vpack.c.b16 %v4787, %v4786
      %v4853 = vpack.c.b16 %v4789, %v4788
      %v4854 = vpack.c.b16 %v4790, %v4790
      %4919 = vst [vmem:[%s663] sm:$0xff] %v4791
      %4920 = vst [vmem:[%s663 + $0x8] sm:$0xff] %v4792
      %4921 = vst [vmem:[%s663 + $0x10] sm:$0xff] %v4793
      %vm4922 = vcmask 125952
      %4923 = vst.msk [vmem:[%s663 + $0x18] sm:$0xf] %vm4922, %v4794
      %4924 = vst [vmem:[%s663 + $0x1c] sm:$0xff] %v4795
      %4925 = vst [vmem:[%s663 + $0x24] sm:$0xff] %v4796
      %4926 = vst [vmem:[%s663 + $0x2c] sm:$0xff] %v4797
      %4927 = vst.msk [vmem:[%s663 + $0x34] sm:$0xf] %vm4922, %v4798
      %4928 = vst [vmem:[%s663 + $0x38] sm:$0xff] %v4799
      %4929 = vst [vmem:[%s663 + $0x40] sm:$0xff] %v4800
      %4930 = vst [vmem:[%s663 + $0x48] sm:$0xff] %v4801
      %4931 = vst.msk [vmem:[%s663 + $0x50] sm:$0xf] %vm4922, %v4802
      %4932 = vst [vmem:[%s663 + $0x54] sm:$0xff] %v4803
      %4933 = vst [vmem:[%s663 + $0x5c] sm:$0xff] %v4804
      %4934 = vst [vmem:[%s663 + $0x64] sm:$0xff] %v4805
      %4935 = vst.msk [vmem:[%s663 + $0x6c] sm:$0xf] %vm4922, %v4806
      %4936 = vst [vmem:[%s663 + $0x70] sm:$0xff] %v4807
      %4937 = vst [vmem:[%s663 + $0x78] sm:$0xff] %v4808
      %4938 = vst [vmem:[%s663 + $0x80] sm:$0xff] %v4809
      %4939 = vst.msk [vmem:[%s663 + $0x88] sm:$0xf] %vm4922, %v4810
      %4940 = vst [vmem:[%s663 + $0x8c] sm:$0xff] %v4811
      %4941 = vst [vmem:[%s663 + $0x94] sm:$0xff] %v4812
      %4942 = vst [vmem:[%s663 + $0x9c] sm:$0xff] %v4813
      %4943 = vst.msk [vmem:[%s663 + $0xa4] sm:$0xf] %vm4922, %v4814
      %4944 = vst [vmem:[%s663 + $0xa8] sm:$0xff] %v4815
      %4945 = vst [vmem:[%s663 + $0xb0] sm:$0xff] %v4816
      %4946 = vst [vmem:[%s663 + $0xb8] sm:$0xff] %v4817
      %4947 = vst.msk [vmem:[%s663 + $0xc0] sm:$0xf] %vm4922, %v4818
      %4948 = vst [vmem:[%s663 + $0xc4] sm:$0xff] %v4819
      %4949 = vst [vmem:[%s663 + $0xcc] sm:$0xff] %v4820
      %4950 = vst [vmem:[%s663 + $0xd4] sm:$0xff] %v4821
      %4951 = vst.msk [vmem:[%s663 + $0xdc] sm:$0xf] %vm4922, %v4822
      %4952 = vst [vmem:[%s663 + $0xe0] sm:$0xff] %v4823
      %4953 = vst [vmem:[%s663 + $0xe8] sm:$0xff] %v4824
      %4954 = vst [vmem:[%s663 + $0xf0] sm:$0xff] %v4825
      %4955 = vst.msk [vmem:[%s663 + $0xf8] sm:$0xf] %vm4922, %v4826
      %4956 = vst [vmem:[%s663 + $0xfc] sm:$0xff] %v4827
      %4957 = vst [vmem:[%s663 + $0x104] sm:$0xff] %v4828
      %4958 = vst [vmem:[%s663 + $0x10c] sm:$0xff] %v4829
      %4959 = vst.msk [vmem:[%s663 + $0x114] sm:$0xf] %vm4922, %v4830
      %4960 = vst [vmem:[%s663 + $0x118] sm:$0xff] %v4831
      %4961 = vst [vmem:[%s663 + $0x120] sm:$0xff] %v4832
      %4962 = vst [vmem:[%s663 + $0x128] sm:$0xff] %v4833
      %4963 = vst.msk [vmem:[%s663 + $0x130] sm:$0xf] %vm4922, %v4834
      %4964 = vst [vmem:[%s663 + $0x134] sm:$0xff] %v4835
      %4965 = vst [vmem:[%s663 + $0x13c] sm:$0xff] %v4836
      %4966 = vst [vmem:[%s663 + $0x144] sm:$0xff] %v4837
      %4967 = vst.msk [vmem:[%s663 + $0x14c] sm:$0xf] %vm4922, %v4838
      %4968 = vst [vmem:[%s663 + $0x150] sm:$0xff] %v4839
      %4969 = vst [vmem:[%s663 + $0x158] sm:$0xff] %v4840
      %4970 = vst [vmem:[%s663 + $0x160] sm:$0xff] %v4841
      %4971 = vst.msk [vmem:[%s663 + $0x168] sm:$0xf] %vm4922, %v4842
      %4972 = vst [vmem:[%s663 + $0x16c] sm:$0xff] %v4843
      %4973 = vst [vmem:[%s663 + $0x174] sm:$0xff] %v4844
      %4974 = vst [vmem:[%s663 + $0x17c] sm:$0xff] %v4845
      %4975 = vst.msk [vmem:[%s663 + $0x184] sm:$0xf] %vm4922, %v4846
      %4976 = vst [vmem:[%s663 + $0x188] sm:$0xff] %v4847
      %4977 = vst [vmem:[%s663 + $0x190] sm:$0xff] %v4848
      %4978 = vst [vmem:[%s663 + $0x198] sm:$0xff] %v4849
      %4979 = vst.msk [vmem:[%s663 + $0x1a0] sm:$0xf] %vm4922, %v4850
      %4980 = vst [vmem:[%s663 + $0x1a4] sm:$0xff] %v4851
      %4981 = vst [vmem:[%s663 + $0x1ac] sm:$0xff] %v4852
      %4982 = vst [vmem:[%s663 + $0x1b4] sm:$0xff] %v4853
      %4983 = vst.msk [vmem:[%s663 + $0x1bc] sm:$0xf] %vm4922, %v4854
      %s4984 = smul.u32 16, %s32
      %p4985 = scmp.lt.s32.totalorder %s4984, 31
      %s4986 = scalar_select %p4985, %s4984, 31
      %s4987 = smul.addr %s4986, 7
      %s4988 = smul.addr %s4987, 4
      %s4989 = scalar_lea.vmem %s21, %s4988
      // Predicated region
      $region105: #{ae_forward.1} parent=103 // pred_check
        %p4990 = pneg %p496
      $region106: #{ae_forward.1} parent=103 // pred_check_branch
        %4992 = sbr.rel (%p4990) target = $region108
      $region107: #{ae_forward.1} parent=103 // pred_region
        %s4993 = smul.u32 16, %s32
      $region108: #{ae_forward.1} parent=103 // pred_fallthru
        _
    $region104: #{ae_forward.1} parent=5 // pred_fallthru
      _
    %p4994 = scmp.le.s32.totalorder 2, %s27
    // Predicated region
    $region109: #{ae_forward.1} parent=5 // pred_check
      %p4995 = pneg %p4994
    $region110: #{ae_forward.1} parent=5 // pred_check_branch
      %4997 = sbr.rel (%p4995) target = $region112
    $region111: #{ae_forward.1} parent=5 // pred_region
      %s4998 = ssub.s32 %s27, 2
      // Predicated region
      $region113: #{ae_forward.1} parent=111 // pred_check
        %p4999 = pneg %p502
      $region114: #{ae_forward.1} parent=111 // pred_check_branch
        %5001 = sbr.rel (%p4999) target = $region116
      $region115: #{ae_forward.1} parent=111 // pred_region
        %s5002 = smul.u32 16, %s33
        %p5003 = scmp.lt.s32.totalorder %s5002, 31
        %s5004 = scalar_select %p5003, %s5002, 31
        %s5005 = smul.addr %s5004, 7
        %s5006 = smul.addr %s5005, 4
        %s5007 = scalar_lea.vmem %s21, %s5006
      $region116: #{ae_forward.1} parent=111 // pred_fallthru
        _
    $region112: #{ae_forward.1} parent=5 // pred_fallthru
      _
  $region6: #{ae_forward.1} parent=0 // loop_footer
    %s31 = sadd.s32 1, %s27
  $region7: #{ae_forward.1} parent=0 // loop_footer_branch
    %26 = sbr.rel target = $region3
  $region8: #{ae_forward.1} parent=0 // loop_exit
    _

</llo_original>
